<compile_context>
chip_gen: v6e
topology: v6e:2x2x1
jax: 0.10.0
libtpu: 0.0.40
codegen_flags: <defaults>
</compile_context>

<pallas_src>
from functools import partial

import jax
import jax.numpy as jnp
from jax.experimental import pallas as pl
from jax.experimental.pallas import tpu as pltpu

EPS = 1e-5  # GroupNorm / BatchNorm eps (PyTorch default)


# --------------------------------------------------------------------------
# The fused MobileVitBlock kernel (one batch sample per grid step)
# --------------------------------------------------------------------------
def _mobilevit_block_kernel(
        x_ref, tapw_ref, cvec_ref, c1w_ref, m_ref, mt_ref, vecs_ref,
        wqkv_ref, wo_ref, w1_ref, w2_ref, gvec_ref, cpw_ref, o_ref,
        *, H, W, C, D, CH, KH, KW, depth):
    HW = H * W
    QR = 2 * D + 16                      # fused-qkv rows: [k | ones | . | q | . | v]
    pad_h = (KH - 1) // 2
    pad_w = (KW - 1) // 2
    f32, bf16 = jnp.float32, jnp.bfloat16

    def norm_coeffs(t, g, b):
        # GroupNorm(num_groups=1): E[x] and E[x^2] in one pass (independent
        # reductions overlap); returns per-row scale / offset columns so the big
        # tile only sees one fma.
        mu = jnp.mean(t)
        ms = jnp.mean(t * t)
        a = g * jax.lax.rsqrt(ms - mu * mu + EPS)
        return a, b - mu * a

    # ---- conv_kxk: depthwise KxK conv + folded BN + SiLU ---------------------
    # Each tap is a lane roll of the (C, HW) tile; border mask and BN scale are
    # pre-folded into tapw so the unrolled loop is pure roll + fma.
    x0 = x_ref[0].astype(f32)                                     # (C, HW)
    acc = jnp.zeros((C, HW), f32)
    for ki in range(KH):
        for kj in range(KW):
            off = (ki - pad_h) * W + (kj - pad_w)
            shifted = x0 if off == 0 else pltpu.roll(x0, shift=(-off) % HW, axis=1)
            acc = acc + shifted * tapw_ref[ki * KW + kj]
    cv = cvec_ref[...]                                            # (C, 3)
    y = acc + cv[:, 0:1]                                          # folded BN bias
    y = y * jax.nn.sigmoid(y)                                     # SiLU

    # ---- conv_1x1: channels -> transformer_dim (no bias / norm / act) --------
    x = jnp.dot(c1w_ref[...], y.astype(bf16), preferred_element_type=f32)  # (D, HW)

    m_b = m_ref[...]                                              # (PP, HW) bf16 0/1
    mt_b = mt_ref[...]                                            # (HW, PP) bf16 0/1

    # ---- LinearTransformerBlock x depth (Dropout / StochasticDepth identity) -
    for d in range(depth):
        vs = vecs_ref[d]                                          # (VR, 8) f32 slab

        # norm1
        a1, o1 = norm_coeffs(x, vs[:D, 0:1], vs[:D, 1:2])
        xn = x * a1 + o1

        # fused qkv projection; row D is an all-ones row (zero weight, bias 1)
        # so the softmax denominator comes out of the same membership matmul.
        qkv = jnp.dot(wqkv_ref[d], xn.astype(bf16),
                      preferred_element_type=f32) + vs[:QR, 2:3]  # (QR, HW)
        q = qkv[D + 8:D + 9]                                      # (1, HW)
        v = qkv[D + 16:QR]                                        # (D, HW)

        # MobileViT-v2 separable attention (softmax over the num_patches axis).
        e = jnp.exp(q - jnp.max(q))                               # global max cancels
        kqe = qkv[0:D + 8] * e                                    # rows: [k*e ; e ; 0]
        r = jnp.dot(kqe.astype(bf16), mt_b, preferred_element_type=f32)  # (D+8, PP)
        den = jnp.maximum(r[D:D + 1], 1e-30)                      # guard padded groups
        ctx = r[0:D] / den                                        # (D, PP)
        ctxf = jnp.dot(ctx.astype(bf16), m_b, preferred_element_type=f32)  # (D, HW)
        attn = jnp.maximum(v, 0.0) * ctxf                         # relu(value)*context
        attn = jnp.dot(wo_ref[d], attn.astype(bf16),
                       preferred_element_type=f32) + vs[:D, 3:4]
        x = x + attn                                              # residual 1

        # norm2 + MLP (1x1 -> SiLU -> 1x1)
        a2, o2 = norm_coeffs(x, vs[:D, 4:5], vs[:D, 5:6])
        xn2 = x * a2 + o2
        h = jnp.dot(w1_ref[d], xn2.astype(bf16),
                    preferred_element_type=f32) + vs[:CH, 6:7]    # (CH, HW)
        h = h * jax.nn.sigmoid(h)                                 # SiLU
        h = jnp.dot(w2_ref[d], h.astype(bf16),
                    preferred_element_type=f32) + vs[:D, 7:8]     # (D, HW)
        x = x + h                                                 # residual 2

    # ---- final GroupNorm(num_groups=1) ---------------------------------------
    gv = gvec_ref[...]                                            # (D, 2)
    ag, og = norm_coeffs(x, gv[:, 0:1], gv[:, 1:2])
    x = x * ag + og

    # ---- conv_proj: 1x1 transformer_dim -> channels + folded BN + SiLU -------
    z = jnp.dot(cpw_ref[...], x.astype(bf16), preferred_element_type=f32)  # (C, HW)
    z = z * cv[:, 1:2] + cv[:, 2:3]
    z = z * jax.nn.sigmoid(z)
    o_ref[0] = z.astype(o_ref.dtype)                              # lane-dense store


# --------------------------------------------------------------------------
# Wrapper: single pallas_call; all packing is tiny one-off XLA work under jit
# --------------------------------------------------------------------------
def mobilevit_block_forward(x_nchw, params, patch_size, kernel_size):
    B, C, H, W = x_nchw.shape
    ph, pw = patch_size
    KH, KW = kernel_size
    # TODO(synk): bilinear F.interpolate(align_corners=True) pre-resize when H/W are
    # not multiples of patch_size; inputs here are divisible so it is a no-op.
    assert H % ph == 0 and W % pw == 0
    D = params["c1_w"].shape[0]
    CH = params["w1"].shape[1]
    depth = params["qkv_w"].shape[0]
    assert D % 8 == 0 and CH % 8 == 0
    HW = H * W
    P = ph * pw
    PP = ((P + 7) // 8) * 8              # patch-area groups padded to a sublane multiple
    QR = 2 * D + 16                      # fused qkv rows (8-aligned k/q/v segments)
    VR = max(QR, ((CH + 7) // 8) * 8)
    pad_h, pad_w = (KH - 1) // 2, (KW - 1) // 2
    f32, bf16 = jnp.float32, jnp.bfloat16

    hh = jnp.arange(H, dtype=jnp.int32)[:, None]
    ww = jnp.arange(W, dtype=jnp.int32)[None, :]

    # Depthwise taps: fold BN scale + per-tap border-validity mask into one
    # (KH*KW, C, HW) multiplier so the in-kernel tap loop is pure roll + fma.
    masks = []
    for ki in range(KH):
        for kj in range(KW):
            di, dj = ki - pad_h, kj - pad_w
            valid = ((hh + di >= 0) & (hh + di < H) &
                     (ww + dj >= 0) & (ww + dj < W))
            masks.append(valid.reshape(HW))
    masks = jnp.stack(masks).astype(f32)                            # (KH*KW, HW)
    dw_folded = params["dw_w"] * params["dw_scale"][None, :]        # (KH*KW, C)
    tapw = dw_folded[:, :, None] * masks[:, None, :]                # (KH*KW, C, HW)

    cvec = jnp.stack([params["dw_bias"], params["cp_scale"],
                      params["cp_bias"]], axis=-1)                  # (C, 3)
    gvec = jnp.stack([params["gn_g"], params["gn_b"]], axis=-1)     # (D, 2)

    # Patch-membership matrices (exact 0/1 in bf16): pixel (h, w) belongs to
    # within-patch group (h % ph) * pw + (w % pw).  Softmax-over-patches and the
    # context sum become two tiny MXU matmuls (permutation invariant, so the
    # PyTorch unfold/fold reshuffle is never materialized).
    pidx = ((hh % ph) * pw + (ww % pw)).reshape(HW)
    gids = jnp.arange(PP, dtype=jnp.int32)
    m = (gids[:, None] == pidx[None, :]).astype(bf16)               # (PP, HW)
    mt = (pidx[:, None] == gids[None, :]).astype(bf16)              # (HW, PP)

    # Fused qkv weight, row layout [k 0:D | ones D | q D+8 | v D+16:QR]; the
    # 'ones' row (zero weight, bias 1.0) turns the softmax denominator into one
    # extra row of the numerator matmul.
    qw, qb = params["qkv_w"], params["qkv_b"]        # (depth, 1+2D, D), (depth, 1+2D)
    wqkv = jnp.zeros((depth, QR, D), f32)
    wqkv = wqkv.at[:, 0:D].set(qw[:, 1:1 + D])
    wqkv = wqkv.at[:, D + 8:D + 9].set(qw[:, 0:1])
    wqkv = wqkv.at[:, D + 16:QR].set(qw[:, 1 + D:])
    bqkv = jnp.zeros((depth, QR), f32)
    bqkv = bqkv.at[:, 0:D].set(qb[:, 1:1 + D])
    bqkv = bqkv.at[:, D].set(1.0)
    bqkv = bqkv.at[:, D + 8].set(qb[:, 0])
    bqkv = bqkv.at[:, D + 16:QR].set(qb[:, 1 + D:])

    # All per-block 1-D params in one f32 slab (lane column j holds vector j).
    vecs = jnp.zeros((depth, VR, 8), f32)
    vecs = vecs.at[:, :D, 0].set(params["g1"]).at[:, :D, 1].set(params["b1"])
    vecs = vecs.at[:, :QR, 2].set(bqkv)
    vecs = vecs.at[:, :D, 3].set(params["bo"])
    vecs = vecs.at[:, :D, 4].set(params["g2"]).at[:, :D, 5].set(params["b2"])
    vecs = vecs.at[:, :CH, 6].set(params["bm1"]).at[:, :D, 7].set(params["bm2"])

    x2 = x_nchw.reshape(B, C, HW)    # NCHW is channels-major already: free collapse

    ops = (tapw, cvec, params["c1_w"].astype(bf16), m, mt, vecs,
           wqkv.astype(bf16), params["wo"].astype(bf16),
           params["w1"].astype(bf16), params["w2"].astype(bf16),
           gvec, params["cp_w"].astype(bf16))

    # VMEM budget: padded weight footprint + double-buffered I/O + f32 temps.
    def padded_bytes(a):
        s = a.shape
        lanes = ((s[-1] + 127) // 128) * 128
        subl = ((s[-2] + 7) // 8) * 8
        lead = 1
        for v in s[:-2]:
            lead *= v
        return lead * subl * lanes * a.dtype.itemsize

    weight_bytes = sum(padded_bytes(a) for a in ops)
    io_bytes = 2 * (2 * C * HW * x_nchw.dtype.itemsize)
    work_bytes = HW * 4 * (2 * QR + 2 * CH + 8 * D + 4 * C)
    vmem_limit = int(min(32 << 20,
                         max(16 << 20, 4 * (weight_bytes + io_bytes + work_bytes))))

    kernel = partial(_mobilevit_block_kernel, H=H, W=W, C=C, D=D, CH=CH,
                     KH=KH, KW=KW, depth=depth)
    in_specs = [pl.BlockSpec((1, C, HW), lambda b: (b, 0, 0))] + [
        pl.BlockSpec(a.shape, lambda b, _n=a.ndim: (0,) * _n) for a in ops]

    y = pl.pallas_call(
        kernel,
        out_shape=jax.ShapeDtypeStruct((B, C, HW), x_nchw.dtype),
        grid=(B,),
        in_specs=in_specs,
        out_specs=pl.BlockSpec((1, C, HW), lambda b: (b, 0, 0)),
        compiler_params=pltpu.CompilerParams(
            dimension_semantics=("parallel",),
            vmem_limit_bytes=vmem_limit),
    )(x2, *ops)
    return y.reshape(B, C, H, W)


# --------------------------------------------------------------------------
# Parameter construction (deterministic, synthetic; BN folded for eval mode).
# Weights are kept in the PyTorch (out, in) orientation.
# --------------------------------------------------------------------------
def _nrm(key, shape, s=0.1):
    return jax.random.normal(key, shape, jnp.float32) * s


def _fold_bn(key, C):
    k1, k2, k3, k4 = jax.random.split(key, 4)
    gamma = 1.0 + _nrm(k1, (C,), 0.05)
    beta = _nrm(k2, (C,), 0.05)
    mean = _nrm(k3, (C,), 0.05)
    var = 1.0 + jnp.abs(_nrm(k4, (C,), 0.05))
    scale = gamma / jnp.sqrt(var + EPS)
    bias = beta - mean * scale
    return scale, bias


def make_params(key, channels, transformer_dim, kernel_size, depth, mlp_ratio):
    D = transformer_dim
    CH = int(D * mlp_ratio)
    KH, KW = kernel_size
    keys = jax.random.split(key, 7 + depth)
    dw_scale, dw_bias = _fold_bn(keys[1], channels)
    cp_scale, cp_bias = _fold_bn(keys[4], channels)

    def blk(k):
        kk = jax.random.split(k, 12)
        return dict(
            qkv_w=_nrm(kk[0], (1 + 2 * D, D)), qkv_b=_nrm(kk[1], (1 + 2 * D,)),
            wo=_nrm(kk[2], (D, D)), bo=_nrm(kk[3], (D,)),
            g1=1.0 + _nrm(kk[4], (D,), 0.05), b1=_nrm(kk[5], (D,), 0.05),
            g2=1.0 + _nrm(kk[6], (D,), 0.05), b2=_nrm(kk[7], (D,), 0.05),
            w1=_nrm(kk[8], (CH, D)), bm1=_nrm(kk[9], (CH,)),
            w2=_nrm(kk[10], (D, CH)), bm2=_nrm(kk[11], (D,)),
        )

    blocks = [blk(keys[7 + i]) for i in range(depth)]
    stk = {name: jnp.stack([b[name] for b in blocks]) for name in blocks[0]}
    return dict(
        dw_w=_nrm(keys[0], (KH * KW, channels)),        # depthwise taps (flat, per-C)
        dw_scale=dw_scale, dw_bias=dw_bias,             # folded BN of conv_kxk
        c1_w=_nrm(keys[2], (D, channels)),              # conv_1x1 (out, in), no bias
        cp_w=_nrm(keys[3], (channels, D)),              # conv_proj (out, in)
        cp_scale=cp_scale, cp_bias=cp_bias,             # folded BN of conv_proj
        gn_g=1.0 + _nrm(keys[5], (D,), 0.05),           # final GroupNorm affine
        gn_b=_nrm(keys[6], (D,), 0.05),
        **stk,
    )


if __name__ == "__main__":
    key = jax.random.PRNGKey(0)
    kx, kp = jax.random.split(key)

    # module config: channels=16, kernel=(3,3), stride=(1,1), transformer_dim=32,
    # depth=2, mlp_ratio=2.0, patch_size=(2,2); input 2x16x16x16 (NCHW).
    B, C, H, W = 2, 16, 16, 16
    transformer_dim = 32
    transformer_depth = 2
    mlp_ratio = 2.0
    patch_size = (2, 2)
    kernel_size = (3, 3)

    x_nchw = jax.random.normal(kx, (B, C, H, W), jnp.float32)   # PyTorch-style NCHW
    params = make_params(kp, C, transformer_dim, kernel_size,
                         transformer_depth, mlp_ratio)

    fwd = jax.jit(partial(mobilevit_block_forward,
                          patch_size=patch_size, kernel_size=kernel_size))
    y = fwd(x_nchw, params)
    y = jax.block_until_ready(y)
    assert y.shape == (B, C, H, W)
    assert bool(jnp.all(jnp.isfinite(y)))
    print("KERNEL_OK")
</pallas_src>

<mosaic_0001>
module attributes {stable_mosaic.version = 11 : i64} {
  func.func @_mobilevit_block_kernel(%arg0: i32, %arg1: memref<1x16x256xf32, #tpu.memory_space<vmem>>, %arg2: memref<9x16x256xf32, #tpu.memory_space<vmem>>, %arg3: memref<16x3xf32, #tpu.memory_space<vmem>>, %arg4: memref<32x16xbf16, #tpu.memory_space<vmem>>, %arg5: memref<8x256xbf16, #tpu.memory_space<vmem>>, %arg6: memref<256x8xbf16, #tpu.memory_space<vmem>>, %arg7: memref<2x80x8xf32, #tpu.memory_space<vmem>>, %arg8: memref<2x80x32xbf16, #tpu.memory_space<vmem>>, %arg9: memref<2x32x32xbf16, #tpu.memory_space<vmem>>, %arg10: memref<2x64x32xbf16, #tpu.memory_space<vmem>>, %arg11: memref<2x32x64xbf16, #tpu.memory_space<vmem>>, %arg12: memref<32x2xf32, #tpu.memory_space<vmem>>, %arg13: memref<16x32xbf16, #tpu.memory_space<vmem>>, %arg14: memref<1x16x256xf32, #tpu.memory_space<vmem>>) attributes {dimension_semantics = [#tpu.dimension_semantics<parallel>], iteration_bounds = array<i64: 2>, scalar_prefetch = 0 : i64, scratch_operands = 0 : i64, tpu.core_type = #tpu.core_type<tc>, window_params = [{transform_indices = @transform_0, window_bounds = array<i64: 1, 16, 256>}, {pipeline_mode = #tpu.pipeline_mode<synchronous>, transform_indices = @transform_1, window_bounds = array<i64: 9, 16, 256>}, {pipeline_mode = #tpu.pipeline_mode<synchronous>, transform_indices = @transform_2, window_bounds = array<i64: 16, 3>}, {pipeline_mode = #tpu.pipeline_mode<synchronous>, transform_indices = @transform_3, window_bounds = array<i64: 32, 16>}, {pipeline_mode = #tpu.pipeline_mode<synchronous>, transform_indices = @transform_4, window_bounds = array<i64: 8, 256>}, {pipeline_mode = #tpu.pipeline_mode<synchronous>, transform_indices = @transform_5, window_bounds = array<i64: 256, 8>}, {pipeline_mode = #tpu.pipeline_mode<synchronous>, transform_indices = @transform_6, window_bounds = array<i64: 2, 80, 8>}, {pipeline_mode = #tpu.pipeline_mode<synchronous>, transform_indices = @transform_7, window_bounds = array<i64: 2, 80, 32>}, {pipeline_mode = #tpu.pipeline_mode<synchronous>, transform_indices = @transform_8, window_bounds = array<i64: 2, 32, 32>}, {pipeline_mode = #tpu.pipeline_mode<synchronous>, transform_indices = @transform_9, window_bounds = array<i64: 2, 64, 32>}, {pipeline_mode = #tpu.pipeline_mode<synchronous>, transform_indices = @transform_10, window_bounds = array<i64: 2, 32, 64>}, {pipeline_mode = #tpu.pipeline_mode<synchronous>, transform_indices = @transform_11, window_bounds = array<i64: 32, 2>}, {pipeline_mode = #tpu.pipeline_mode<synchronous>, transform_indices = @transform_12, window_bounds = array<i64: 16, 32>}, {transform_indices = @transform_13, window_bounds = array<i64: 1, 16, 256>}]} {
    %c0 = arith.constant 0 : index
    %c0_0 = arith.constant 0 : index
    %c0_1 = arith.constant 0 : index
    %0 = vector.load %arg1[%c0, %c0_0, %c0_1] : memref<1x16x256xf32, #tpu.memory_space<vmem>>, vector<1x16x256xf32>
    %1 = vector.shape_cast %0 : vector<1x16x256xf32> to vector<16x256xf32>
    %cst = arith.constant 0.000000e+00 : f32
    %2 = vector.broadcast %cst : f32 to vector<16x256xf32>
    %c17_i32 = arith.constant 17 : i32
    %3 = tpu.dynamic_rotate %1 by %c17_i32 dim 1 : vector<16x256xf32>, i32 -> vector<16x256xf32>
    %c0_2 = arith.constant 0 : index
    %c0_3 = arith.constant 0 : index
    %c0_4 = arith.constant 0 : index
    %4 = vector.load %arg2[%c0_2, %c0_3, %c0_4] : memref<9x16x256xf32, #tpu.memory_space<vmem>>, vector<1x16x256xf32>
    %5 = vector.shape_cast %4 : vector<1x16x256xf32> to vector<16x256xf32>
    %6 = arith.mulf %3, %5 : vector<16x256xf32>
    %7 = arith.addf %2, %6 : vector<16x256xf32>
    %c16_i32 = arith.constant 16 : i32
    %8 = tpu.dynamic_rotate %1 by %c16_i32 dim 1 : vector<16x256xf32>, i32 -> vector<16x256xf32>
    %c1 = arith.constant 1 : index
    %c0_5 = arith.constant 0 : index
    %c0_6 = arith.constant 0 : index
    %9 = vector.load %arg2[%c1, %c0_5, %c0_6] : memref<9x16x256xf32, #tpu.memory_space<vmem>>, vector<1x16x256xf32>
    %10 = vector.shape_cast %9 : vector<1x16x256xf32> to vector<16x256xf32>
    %11 = arith.mulf %8, %10 : vector<16x256xf32>
    %12 = arith.addf %7, %11 : vector<16x256xf32>
    %c15_i32 = arith.constant 15 : i32
    %13 = tpu.dynamic_rotate %1 by %c15_i32 dim 1 : vector<16x256xf32>, i32 -> vector<16x256xf32>
    %c2 = arith.constant 2 : index
    %c0_7 = arith.constant 0 : index
    %c0_8 = arith.constant 0 : index
    %14 = vector.load %arg2[%c2, %c0_7, %c0_8] : memref<9x16x256xf32, #tpu.memory_space<vmem>>, vector<1x16x256xf32>
    %15 = vector.shape_cast %14 : vector<1x16x256xf32> to vector<16x256xf32>
    %16 = arith.mulf %13, %15 : vector<16x256xf32>
    %17 = arith.addf %12, %16 : vector<16x256xf32>
    %c1_i32 = arith.constant 1 : i32
    %18 = tpu.dynamic_rotate %1 by %c1_i32 dim 1 : vector<16x256xf32>, i32 -> vector<16x256xf32>
    %c3 = arith.constant 3 : index
    %c0_9 = arith.constant 0 : index
    %c0_10 = arith.constant 0 : index
    %19 = vector.load %arg2[%c3, %c0_9, %c0_10] : memref<9x16x256xf32, #tpu.memory_space<vmem>>, vector<1x16x256xf32>
    %20 = vector.shape_cast %19 : vector<1x16x256xf32> to vector<16x256xf32>
    %21 = arith.mulf %18, %20 : vector<16x256xf32>
    %22 = arith.addf %17, %21 : vector<16x256xf32>
    %c4 = arith.constant 4 : index
    %c0_11 = arith.constant 0 : index
    %c0_12 = arith.constant 0 : index
    %23 = vector.load %arg2[%c4, %c0_11, %c0_12] : memref<9x16x256xf32, #tpu.memory_space<vmem>>, vector<1x16x256xf32>
    %24 = vector.shape_cast %23 : vector<1x16x256xf32> to vector<16x256xf32>
    %25 = arith.mulf %1, %24 : vector<16x256xf32>
    %26 = arith.addf %22, %25 : vector<16x256xf32>
    %c255_i32 = arith.constant 255 : i32
    %27 = tpu.dynamic_rotate %1 by %c255_i32 dim 1 : vector<16x256xf32>, i32 -> vector<16x256xf32>
    %c5 = arith.constant 5 : index
    %c0_13 = arith.constant 0 : index
    %c0_14 = arith.constant 0 : index
    %28 = vector.load %arg2[%c5, %c0_13, %c0_14] : memref<9x16x256xf32, #tpu.memory_space<vmem>>, vector<1x16x256xf32>
    %29 = vector.shape_cast %28 : vector<1x16x256xf32> to vector<16x256xf32>
    %30 = arith.mulf %27, %29 : vector<16x256xf32>
    %31 = arith.addf %26, %30 : vector<16x256xf32>
    %c241_i32 = arith.constant 241 : i32
    %32 = tpu.dynamic_rotate %1 by %c241_i32 dim 1 : vector<16x256xf32>, i32 -> vector<16x256xf32>
    %c6 = arith.constant 6 : index
    %c0_15 = arith.constant 0 : index
    %c0_16 = arith.constant 0 : index
    %33 = vector.load %arg2[%c6, %c0_15, %c0_16] : memref<9x16x256xf32, #tpu.memory_space<vmem>>, vector<1x16x256xf32>
    %34 = vector.shape_cast %33 : vector<1x16x256xf32> to vector<16x256xf32>
    %35 = arith.mulf %32, %34 : vector<16x256xf32>
    %36 = arith.addf %31, %35 : vector<16x256xf32>
    %c240_i32 = arith.constant 240 : i32
    %37 = tpu.dynamic_rotate %1 by %c240_i32 dim 1 : vector<16x256xf32>, i32 -> vector<16x256xf32>
    %c7 = arith.constant 7 : index
    %c0_17 = arith.constant 0 : index
    %c0_18 = arith.constant 0 : index
    %38 = vector.load %arg2[%c7, %c0_17, %c0_18] : memref<9x16x256xf32, #tpu.memory_space<vmem>>, vector<1x16x256xf32>
    %39 = vector.shape_cast %38 : vector<1x16x256xf32> to vector<16x256xf32>
    %40 = arith.mulf %37, %39 : vector<16x256xf32>
    %41 = arith.addf %36, %40 : vector<16x256xf32>
    %c239_i32 = arith.constant 239 : i32
    %42 = tpu.dynamic_rotate %1 by %c239_i32 dim 1 : vector<16x256xf32>, i32 -> vector<16x256xf32>
    %c8 = arith.constant 8 : index
    %c0_19 = arith.constant 0 : index
    %c0_20 = arith.constant 0 : index
    %43 = vector.load %arg2[%c8, %c0_19, %c0_20] : memref<9x16x256xf32, #tpu.memory_space<vmem>>, vector<1x16x256xf32>
    %44 = vector.shape_cast %43 : vector<1x16x256xf32> to vector<16x256xf32>
    %45 = arith.mulf %42, %44 : vector<16x256xf32>
    %46 = arith.addf %41, %45 : vector<16x256xf32>
    %c0_21 = arith.constant 0 : index
    %c0_22 = arith.constant 0 : index
    %47 = vector.load %arg3[%c0_21, %c0_22] : memref<16x3xf32, #tpu.memory_space<vmem>>, vector<16x3xf32>
    %48 = vector.extract_strided_slice %47 {offsets = [0, 0], sizes = [16, 1], strides = [1, 1]} : vector<16x3xf32> to vector<16x1xf32>
    %49 = vector.broadcast %48 : vector<16x1xf32> to vector<16x256xf32>
    %50 = arith.addf %46, %49 : vector<16x256xf32>
    %51 = arith.negf %50 : vector<16x256xf32>
    %52 = math.exp %51 : vector<16x256xf32>
    %cst_23 = arith.constant 1.000000e+00 : f32
    %53 = vector.broadcast %cst_23 : f32 to vector<16x256xf32>
    %54 = arith.addf %53, %52 : vector<16x256xf32>
    %55 = arith.divf %53, %54 : vector<16x256xf32>
    %56 = arith.mulf %50, %55 : vector<16x256xf32>
    %c0_24 = arith.constant 0 : index
    %c0_25 = arith.constant 0 : index
    %57 = vector.load %arg4[%c0_24, %c0_25] : memref<32x16xbf16, #tpu.memory_space<vmem>>, vector<32x16xbf16>
    %58 = arith.truncf %56 : vector<16x256xf32> to vector<16x256xbf16>
    %cst_26 = arith.constant dense<0.000000e+00> : vector<32x256xf32>
    %59 = tpu.matmul %57, %58, %cst_26 {dimension_numbers = #tpu.dot_dimension_numbers<[1], [0], [0], [1], [0, 0, 1, 1], [], []>} : vector<32x16xbf16>, vector<16x256xbf16>, vector<32x256xf32> -> vector<32x256xf32>
    %c0_27 = arith.constant 0 : index
    %c0_28 = arith.constant 0 : index
    %60 = vector.load %arg5[%c0_27, %c0_28] : memref<8x256xbf16, #tpu.memory_space<vmem>>, vector<8x256xbf16>
    %c0_29 = arith.constant 0 : index
    %c0_30 = arith.constant 0 : index
    %61 = vector.load %arg6[%c0_29, %c0_30] : memref<256x8xbf16, #tpu.memory_space<vmem>>, vector<256x8xbf16>
    %c0_31 = arith.constant 0 : index
    %c0_32 = arith.constant 0 : index
    %c0_33 = arith.constant 0 : index
    %62 = vector.load %arg7[%c0_31, %c0_32, %c0_33] : memref<2x80x8xf32, #tpu.memory_space<vmem>>, vector<1x80x8xf32>
    %63 = vector.shape_cast %62 : vector<1x80x8xf32> to vector<80x8xf32>
    %64 = vector.extract_strided_slice %63 {offsets = [0, 0], sizes = [32, 1], strides = [1, 1]} : vector<80x8xf32> to vector<32x1xf32>
    %65 = vector.extract_strided_slice %63 {offsets = [0, 1], sizes = [32, 1], strides = [1, 1]} : vector<80x8xf32> to vector<32x1xf32>
    %66 = vector.shape_cast %59 : vector<32x256xf32> to vector<1x32x256xf32>
    %cst_34 = arith.constant dense<0.000000e+00> : vector<1xf32>
    %67 = vector.multi_reduction <add>, %66, %cst_34 [1, 2] : vector<1x32x256xf32> to vector<1xf32>
    %68 = vector.shape_cast %67 : vector<1xf32> to vector<1x1x1xf32>
    %69 = vector.extract %68[0, 0, 0] : f32 from vector<1x1x1xf32>
    %cst_35 = arith.constant 8.192000e+03 : f32
    %70 = arith.divf %69, %cst_35 : f32
    %71 = arith.mulf %59, %59 : vector<32x256xf32>
    %72 = vector.shape_cast %71 : vector<32x256xf32> to vector<1x32x256xf32>
    %cst_36 = arith.constant dense<0.000000e+00> : vector<1xf32>
    %73 = vector.multi_reduction <add>, %72, %cst_36 [1, 2] : vector<1x32x256xf32> to vector<1xf32>
    %74 = vector.shape_cast %73 : vector<1xf32> to vector<1x1x1xf32>
    %75 = vector.extract %74[0, 0, 0] : f32 from vector<1x1x1xf32>
    %cst_37 = arith.constant 8.192000e+03 : f32
    %76 = arith.divf %75, %cst_37 : f32
    %77 = arith.mulf %70, %70 : f32
    %78 = arith.subf %76, %77 : f32
    %cst_38 = arith.constant 9.99999974E-6 : f32
    %79 = arith.addf %78, %cst_38 : f32
    %80 = math.rsqrt %79 : f32
    %81 = vector.broadcast %80 : f32 to vector<32x1xf32>
    %82 = arith.mulf %64, %81 : vector<32x1xf32>
    %83 = vector.broadcast %70 : f32 to vector<32x1xf32>
    %84 = arith.mulf %83, %82 : vector<32x1xf32>
    %85 = arith.subf %65, %84 : vector<32x1xf32>
    %86 = vector.broadcast %82 : vector<32x1xf32> to vector<32x256xf32>
    %87 = arith.mulf %59, %86 : vector<32x256xf32>
    %88 = vector.broadcast %85 : vector<32x1xf32> to vector<32x256xf32>
    %89 = arith.addf %87, %88 : vector<32x256xf32>
    %c0_39 = arith.constant 0 : index
    %c0_40 = arith.constant 0 : index
    %c0_41 = arith.constant 0 : index
    %90 = vector.load %arg8[%c0_39, %c0_40, %c0_41] : memref<2x80x32xbf16, #tpu.memory_space<vmem>>, vector<1x80x32xbf16>
    %91 = vector.shape_cast %90 : vector<1x80x32xbf16> to vector<80x32xbf16>
    %92 = arith.truncf %89 : vector<32x256xf32> to vector<32x256xbf16>
    %cst_42 = arith.constant dense<0.000000e+00> : vector<80x256xf32>
    %93 = tpu.matmul %91, %92, %cst_42 {dimension_numbers = #tpu.dot_dimension_numbers<[1], [0], [0], [1], [0, 0, 1, 1], [], []>} : vector<80x32xbf16>, vector<32x256xbf16>, vector<80x256xf32> -> vector<80x256xf32>
    %94 = vector.extract_strided_slice %63 {offsets = [0, 2], sizes = [80, 1], strides = [1, 1]} : vector<80x8xf32> to vector<80x1xf32>
    %95 = vector.broadcast %94 : vector<80x1xf32> to vector<80x256xf32>
    %96 = arith.addf %93, %95 : vector<80x256xf32>
    %97 = vector.extract_strided_slice %96 {offsets = [40, 0], sizes = [1, 256], strides = [1, 1]} : vector<80x256xf32> to vector<1x256xf32>
    %98 = vector.extract_strided_slice %96 {offsets = [48, 0], sizes = [32, 256], strides = [1, 1]} : vector<80x256xf32> to vector<32x256xf32>
    %99 = vector.shape_cast %97 : vector<1x256xf32> to vector<1x1x256xf32>
    %cst_43 = arith.constant dense<0xFF800000> : vector<1xf32>
    %100 = vector.multi_reduction <maximumf>, %99, %cst_43 [1, 2] : vector<1x1x256xf32> to vector<1xf32>
    %101 = vector.shape_cast %100 : vector<1xf32> to vector<1x1x1xf32>
    %102 = vector.extract %101[0, 0, 0] : f32 from vector<1x1x1xf32>
    %103 = vector.broadcast %102 : f32 to vector<1x256xf32>
    %104 = arith.subf %97, %103 : vector<1x256xf32>
    %105 = math.exp %104 : vector<1x256xf32>
    %106 = vector.extract_strided_slice %96 {offsets = [0, 0], sizes = [40, 256], strides = [1, 1]} : vector<80x256xf32> to vector<40x256xf32>
    %107 = vector.broadcast %105 : vector<1x256xf32> to vector<40x256xf32>
    %108 = arith.mulf %106, %107 : vector<40x256xf32>
    %109 = arith.truncf %108 : vector<40x256xf32> to vector<40x256xbf16>
    %cst_44 = arith.constant dense<0.000000e+00> : vector<40x8xf32>
    %110 = tpu.matmul %109, %61, %cst_44 {dimension_numbers = #tpu.dot_dimension_numbers<[1], [0], [0], [1], [0, 0, 1, 1], [], []>} : vector<40x256xbf16>, vector<256x8xbf16>, vector<40x8xf32> -> vector<40x8xf32>
    %111 = vector.extract_strided_slice %110 {offsets = [32, 0], sizes = [1, 8], strides = [1, 1]} : vector<40x8xf32> to vector<1x8xf32>
    %cst_45 = arith.constant 1.000000e-30 : f32
    %112 = vector.broadcast %cst_45 : f32 to vector<1x8xf32>
    %113 = arith.maximumf %111, %112 : vector<1x8xf32>
    %114 = vector.extract_strided_slice %110 {offsets = [0, 0], sizes = [32, 8], strides = [1, 1]} : vector<40x8xf32> to vector<32x8xf32>
    %115 = vector.broadcast %113 : vector<1x8xf32> to vector<32x8xf32>
    %116 = arith.divf %114, %115 : vector<32x8xf32>
    %117 = arith.truncf %116 : vector<32x8xf32> to vector<32x8xbf16>
    %cst_46 = arith.constant dense<0.000000e+00> : vector<32x256xf32>
    %118 = tpu.matmul %117, %60, %cst_46 {dimension_numbers = #tpu.dot_dimension_numbers<[1], [0], [0], [1], [0, 0, 1, 1], [], []>} : vector<32x8xbf16>, vector<8x256xbf16>, vector<32x256xf32> -> vector<32x256xf32>
    %cst_47 = arith.constant 0.000000e+00 : f32
    %119 = vector.broadcast %cst_47 : f32 to vector<32x256xf32>
    %120 = arith.maximumf %98, %119 : vector<32x256xf32>
    %121 = arith.mulf %120, %118 : vector<32x256xf32>
    %c0_48 = arith.constant 0 : index
    %c0_49 = arith.constant 0 : index
    %c0_50 = arith.constant 0 : index
    %122 = vector.load %arg9[%c0_48, %c0_49, %c0_50] : memref<2x32x32xbf16, #tpu.memory_space<vmem>>, vector<1x32x32xbf16>
    %123 = vector.shape_cast %122 : vector<1x32x32xbf16> to vector<32x32xbf16>
    %124 = arith.truncf %121 : vector<32x256xf32> to vector<32x256xbf16>
    %cst_51 = arith.constant dense<0.000000e+00> : vector<32x256xf32>
    %125 = tpu.matmul %123, %124, %cst_51 {dimension_numbers = #tpu.dot_dimension_numbers<[1], [0], [0], [1], [0, 0, 1, 1], [], []>} : vector<32x32xbf16>, vector<32x256xbf16>, vector<32x256xf32> -> vector<32x256xf32>
    %126 = vector.extract_strided_slice %63 {offsets = [0, 3], sizes = [32, 1], strides = [1, 1]} : vector<80x8xf32> to vector<32x1xf32>
    %127 = vector.broadcast %126 : vector<32x1xf32> to vector<32x256xf32>
    %128 = arith.addf %125, %127 : vector<32x256xf32>
    %129 = arith.addf %59, %128 : vector<32x256xf32>
    %130 = vector.extract_strided_slice %63 {offsets = [0, 4], sizes = [32, 1], strides = [1, 1]} : vector<80x8xf32> to vector<32x1xf32>
    %131 = vector.extract_strided_slice %63 {offsets = [0, 5], sizes = [32, 1], strides = [1, 1]} : vector<80x8xf32> to vector<32x1xf32>
    %132 = vector.shape_cast %129 : vector<32x256xf32> to vector<1x32x256xf32>
    %cst_52 = arith.constant dense<0.000000e+00> : vector<1xf32>
    %133 = vector.multi_reduction <add>, %132, %cst_52 [1, 2] : vector<1x32x256xf32> to vector<1xf32>
    %134 = vector.shape_cast %133 : vector<1xf32> to vector<1x1x1xf32>
    %135 = vector.extract %134[0, 0, 0] : f32 from vector<1x1x1xf32>
    %cst_53 = arith.constant 8.192000e+03 : f32
    %136 = arith.divf %135, %cst_53 : f32
    %137 = arith.mulf %129, %129 : vector<32x256xf32>
    %138 = vector.shape_cast %137 : vector<32x256xf32> to vector<1x32x256xf32>
    %cst_54 = arith.constant dense<0.000000e+00> : vector<1xf32>
    %139 = vector.multi_reduction <add>, %138, %cst_54 [1, 2] : vector<1x32x256xf32> to vector<1xf32>
    %140 = vector.shape_cast %139 : vector<1xf32> to vector<1x1x1xf32>
    %141 = vector.extract %140[0, 0, 0] : f32 from vector<1x1x1xf32>
    %cst_55 = arith.constant 8.192000e+03 : f32
    %142 = arith.divf %141, %cst_55 : f32
    %143 = arith.mulf %136, %136 : f32
    %144 = arith.subf %142, %143 : f32
    %cst_56 = arith.constant 9.99999974E-6 : f32
    %145 = arith.addf %144, %cst_56 : f32
    %146 = math.rsqrt %145 : f32
    %147 = vector.broadcast %146 : f32 to vector<32x1xf32>
    %148 = arith.mulf %130, %147 : vector<32x1xf32>
    %149 = vector.broadcast %136 : f32 to vector<32x1xf32>
    %150 = arith.mulf %149, %148 : vector<32x1xf32>
    %151 = arith.subf %131, %150 : vector<32x1xf32>
    %152 = vector.broadcast %148 : vector<32x1xf32> to vector<32x256xf32>
    %153 = arith.mulf %129, %152 : vector<32x256xf32>
    %154 = vector.broadcast %151 : vector<32x1xf32> to vector<32x256xf32>
    %155 = arith.addf %153, %154 : vector<32x256xf32>
    %c0_57 = arith.constant 0 : index
    %c0_58 = arith.constant 0 : index
    %c0_59 = arith.constant 0 : index
    %156 = vector.load %arg10[%c0_57, %c0_58, %c0_59] : memref<2x64x32xbf16, #tpu.memory_space<vmem>>, vector<1x64x32xbf16>
    %157 = vector.shape_cast %156 : vector<1x64x32xbf16> to vector<64x32xbf16>
    %158 = arith.truncf %155 : vector<32x256xf32> to vector<32x256xbf16>
    %cst_60 = arith.constant dense<0.000000e+00> : vector<64x256xf32>
    %159 = tpu.matmul %157, %158, %cst_60 {dimension_numbers = #tpu.dot_dimension_numbers<[1], [0], [0], [1], [0, 0, 1, 1], [], []>} : vector<64x32xbf16>, vector<32x256xbf16>, vector<64x256xf32> -> vector<64x256xf32>
    %160 = vector.extract_strided_slice %63 {offsets = [0, 6], sizes = [64, 1], strides = [1, 1]} : vector<80x8xf32> to vector<64x1xf32>
    %161 = vector.broadcast %160 : vector<64x1xf32> to vector<64x256xf32>
    %162 = arith.addf %159, %161 : vector<64x256xf32>
    %163 = arith.negf %162 : vector<64x256xf32>
    %164 = math.exp %163 : vector<64x256xf32>
    %cst_61 = arith.constant 1.000000e+00 : f32
    %165 = vector.broadcast %cst_61 : f32 to vector<64x256xf32>
    %166 = arith.addf %165, %164 : vector<64x256xf32>
    %167 = arith.divf %165, %166 : vector<64x256xf32>
    %168 = arith.mulf %162, %167 : vector<64x256xf32>
    %c0_62 = arith.constant 0 : index
    %c0_63 = arith.constant 0 : index
    %c0_64 = arith.constant 0 : index
    %169 = vector.load %arg11[%c0_62, %c0_63, %c0_64] : memref<2x32x64xbf16, #tpu.memory_space<vmem>>, vector<1x32x64xbf16>
    %170 = vector.shape_cast %169 : vector<1x32x64xbf16> to vector<32x64xbf16>
    %171 = arith.truncf %168 : vector<64x256xf32> to vector<64x256xbf16>
    %cst_65 = arith.constant dense<0.000000e+00> : vector<32x256xf32>
    %172 = tpu.matmul %170, %171, %cst_65 {dimension_numbers = #tpu.dot_dimension_numbers<[1], [0], [0], [1], [0, 0, 1, 1], [], []>} : vector<32x64xbf16>, vector<64x256xbf16>, vector<32x256xf32> -> vector<32x256xf32>
    %173 = vector.extract_strided_slice %63 {offsets = [0, 7], sizes = [32, 1], strides = [1, 1]} : vector<80x8xf32> to vector<32x1xf32>
    %174 = vector.broadcast %173 : vector<32x1xf32> to vector<32x256xf32>
    %175 = arith.addf %172, %174 : vector<32x256xf32>
    %176 = arith.addf %129, %175 : vector<32x256xf32>
    %c1_66 = arith.constant 1 : index
    %c0_67 = arith.constant 0 : index
    %c0_68 = arith.constant 0 : index
    %177 = vector.load %arg7[%c1_66, %c0_67, %c0_68] : memref<2x80x8xf32, #tpu.memory_space<vmem>>, vector<1x80x8xf32>
    %178 = vector.shape_cast %177 : vector<1x80x8xf32> to vector<80x8xf32>
    %179 = vector.extract_strided_slice %178 {offsets = [0, 0], sizes = [32, 1], strides = [1, 1]} : vector<80x8xf32> to vector<32x1xf32>
    %180 = vector.extract_strided_slice %178 {offsets = [0, 1], sizes = [32, 1], strides = [1, 1]} : vector<80x8xf32> to vector<32x1xf32>
    %181 = vector.shape_cast %176 : vector<32x256xf32> to vector<1x32x256xf32>
    %cst_69 = arith.constant dense<0.000000e+00> : vector<1xf32>
    %182 = vector.multi_reduction <add>, %181, %cst_69 [1, 2] : vector<1x32x256xf32> to vector<1xf32>
    %183 = vector.shape_cast %182 : vector<1xf32> to vector<1x1x1xf32>
    %184 = vector.extract %183[0, 0, 0] : f32 from vector<1x1x1xf32>
    %cst_70 = arith.constant 8.192000e+03 : f32
    %185 = arith.divf %184, %cst_70 : f32
    %186 = arith.mulf %176, %176 : vector<32x256xf32>
    %187 = vector.shape_cast %186 : vector<32x256xf32> to vector<1x32x256xf32>
    %cst_71 = arith.constant dense<0.000000e+00> : vector<1xf32>
    %188 = vector.multi_reduction <add>, %187, %cst_71 [1, 2] : vector<1x32x256xf32> to vector<1xf32>
    %189 = vector.shape_cast %188 : vector<1xf32> to vector<1x1x1xf32>
    %190 = vector.extract %189[0, 0, 0] : f32 from vector<1x1x1xf32>
    %cst_72 = arith.constant 8.192000e+03 : f32
    %191 = arith.divf %190, %cst_72 : f32
    %192 = arith.mulf %185, %185 : f32
    %193 = arith.subf %191, %192 : f32
    %cst_73 = arith.constant 9.99999974E-6 : f32
    %194 = arith.addf %193, %cst_73 : f32
    %195 = math.rsqrt %194 : f32
    %196 = vector.broadcast %195 : f32 to vector<32x1xf32>
    %197 = arith.mulf %179, %196 : vector<32x1xf32>
    %198 = vector.broadcast %185 : f32 to vector<32x1xf32>
    %199 = arith.mulf %198, %197 : vector<32x1xf32>
    %200 = arith.subf %180, %199 : vector<32x1xf32>
    %201 = vector.broadcast %197 : vector<32x1xf32> to vector<32x256xf32>
    %202 = arith.mulf %176, %201 : vector<32x256xf32>
    %203 = vector.broadcast %200 : vector<32x1xf32> to vector<32x256xf32>
    %204 = arith.addf %202, %203 : vector<32x256xf32>
    %c1_74 = arith.constant 1 : index
    %c0_75 = arith.constant 0 : index
    %c0_76 = arith.constant 0 : index
    %205 = vector.load %arg8[%c1_74, %c0_75, %c0_76] : memref<2x80x32xbf16, #tpu.memory_space<vmem>>, vector<1x80x32xbf16>
    %206 = vector.shape_cast %205 : vector<1x80x32xbf16> to vector<80x32xbf16>
    %207 = arith.truncf %204 : vector<32x256xf32> to vector<32x256xbf16>
    %cst_77 = arith.constant dense<0.000000e+00> : vector<80x256xf32>
    %208 = tpu.matmul %206, %207, %cst_77 {dimension_numbers = #tpu.dot_dimension_numbers<[1], [0], [0], [1], [0, 0, 1, 1], [], []>} : vector<80x32xbf16>, vector<32x256xbf16>, vector<80x256xf32> -> vector<80x256xf32>
    %209 = vector.extract_strided_slice %178 {offsets = [0, 2], sizes = [80, 1], strides = [1, 1]} : vector<80x8xf32> to vector<80x1xf32>
    %210 = vector.broadcast %209 : vector<80x1xf32> to vector<80x256xf32>
    %211 = arith.addf %208, %210 : vector<80x256xf32>
    %212 = vector.extract_strided_slice %211 {offsets = [40, 0], sizes = [1, 256], strides = [1, 1]} : vector<80x256xf32> to vector<1x256xf32>
    %213 = vector.extract_strided_slice %211 {offsets = [48, 0], sizes = [32, 256], strides = [1, 1]} : vector<80x256xf32> to vector<32x256xf32>
    %214 = vector.shape_cast %212 : vector<1x256xf32> to vector<1x1x256xf32>
    %cst_78 = arith.constant dense<0xFF800000> : vector<1xf32>
    %215 = vector.multi_reduction <maximumf>, %214, %cst_78 [1, 2] : vector<1x1x256xf32> to vector<1xf32>
    %216 = vector.shape_cast %215 : vector<1xf32> to vector<1x1x1xf32>
    %217 = vector.extract %216[0, 0, 0] : f32 from vector<1x1x1xf32>
    %218 = vector.broadcast %217 : f32 to vector<1x256xf32>
    %219 = arith.subf %212, %218 : vector<1x256xf32>
    %220 = math.exp %219 : vector<1x256xf32>
    %221 = vector.extract_strided_slice %211 {offsets = [0, 0], sizes = [40, 256], strides = [1, 1]} : vector<80x256xf32> to vector<40x256xf32>
    %222 = vector.broadcast %220 : vector<1x256xf32> to vector<40x256xf32>
    %223 = arith.mulf %221, %222 : vector<40x256xf32>
    %224 = arith.truncf %223 : vector<40x256xf32> to vector<40x256xbf16>
    %cst_79 = arith.constant dense<0.000000e+00> : vector<40x8xf32>
    %225 = tpu.matmul %224, %61, %cst_79 {dimension_numbers = #tpu.dot_dimension_numbers<[1], [0], [0], [1], [0, 0, 1, 1], [], []>} : vector<40x256xbf16>, vector<256x8xbf16>, vector<40x8xf32> -> vector<40x8xf32>
    %226 = vector.extract_strided_slice %225 {offsets = [32, 0], sizes = [1, 8], strides = [1, 1]} : vector<40x8xf32> to vector<1x8xf32>
    %cst_80 = arith.constant 1.000000e-30 : f32
    %227 = vector.broadcast %cst_80 : f32 to vector<1x8xf32>
    %228 = arith.maximumf %226, %227 : vector<1x8xf32>
    %229 = vector.extract_strided_slice %225 {offsets = [0, 0], sizes = [32, 8], strides = [1, 1]} : vector<40x8xf32> to vector<32x8xf32>
    %230 = vector.broadcast %228 : vector<1x8xf32> to vector<32x8xf32>
    %231 = arith.divf %229, %230 : vector<32x8xf32>
    %232 = arith.truncf %231 : vector<32x8xf32> to vector<32x8xbf16>
    %cst_81 = arith.constant dense<0.000000e+00> : vector<32x256xf32>
    %233 = tpu.matmul %232, %60, %cst_81 {dimension_numbers = #tpu.dot_dimension_numbers<[1], [0], [0], [1], [0, 0, 1, 1], [], []>} : vector<32x8xbf16>, vector<8x256xbf16>, vector<32x256xf32> -> vector<32x256xf32>
    %cst_82 = arith.constant 0.000000e+00 : f32
    %234 = vector.broadcast %cst_82 : f32 to vector<32x256xf32>
    %235 = arith.maximumf %213, %234 : vector<32x256xf32>
    %236 = arith.mulf %235, %233 : vector<32x256xf32>
    %c1_83 = arith.constant 1 : index
    %c0_84 = arith.constant 0 : index
    %c0_85 = arith.constant 0 : index
    %237 = vector.load %arg9[%c1_83, %c0_84, %c0_85] : memref<2x32x32xbf16, #tpu.memory_space<vmem>>, vector<1x32x32xbf16>
    %238 = vector.shape_cast %237 : vector<1x32x32xbf16> to vector<32x32xbf16>
    %239 = arith.truncf %236 : vector<32x256xf32> to vector<32x256xbf16>
    %cst_86 = arith.constant dense<0.000000e+00> : vector<32x256xf32>
    %240 = tpu.matmul %238, %239, %cst_86 {dimension_numbers = #tpu.dot_dimension_numbers<[1], [0], [0], [1], [0, 0, 1, 1], [], []>} : vector<32x32xbf16>, vector<32x256xbf16>, vector<32x256xf32> -> vector<32x256xf32>
    %241 = vector.extract_strided_slice %178 {offsets = [0, 3], sizes = [32, 1], strides = [1, 1]} : vector<80x8xf32> to vector<32x1xf32>
    %242 = vector.broadcast %241 : vector<32x1xf32> to vector<32x256xf32>
    %243 = arith.addf %240, %242 : vector<32x256xf32>
    %244 = arith.addf %176, %243 : vector<32x256xf32>
    %245 = vector.extract_strided_slice %178 {offsets = [0, 4], sizes = [32, 1], strides = [1, 1]} : vector<80x8xf32> to vector<32x1xf32>
    %246 = vector.extract_strided_slice %178 {offsets = [0, 5], sizes = [32, 1], strides = [1, 1]} : vector<80x8xf32> to vector<32x1xf32>
    %247 = vector.shape_cast %244 : vector<32x256xf32> to vector<1x32x256xf32>
    %cst_87 = arith.constant dense<0.000000e+00> : vector<1xf32>
    %248 = vector.multi_reduction <add>, %247, %cst_87 [1, 2] : vector<1x32x256xf32> to vector<1xf32>
    %249 = vector.shape_cast %248 : vector<1xf32> to vector<1x1x1xf32>
    %250 = vector.extract %249[0, 0, 0] : f32 from vector<1x1x1xf32>
    %cst_88 = arith.constant 8.192000e+03 : f32
    %251 = arith.divf %250, %cst_88 : f32
    %252 = arith.mulf %244, %244 : vector<32x256xf32>
    %253 = vector.shape_cast %252 : vector<32x256xf32> to vector<1x32x256xf32>
    %cst_89 = arith.constant dense<0.000000e+00> : vector<1xf32>
    %254 = vector.multi_reduction <add>, %253, %cst_89 [1, 2] : vector<1x32x256xf32> to vector<1xf32>
    %255 = vector.shape_cast %254 : vector<1xf32> to vector<1x1x1xf32>
    %256 = vector.extract %255[0, 0, 0] : f32 from vector<1x1x1xf32>
    %cst_90 = arith.constant 8.192000e+03 : f32
    %257 = arith.divf %256, %cst_90 : f32
    %258 = arith.mulf %251, %251 : f32
    %259 = arith.subf %257, %258 : f32
    %cst_91 = arith.constant 9.99999974E-6 : f32
    %260 = arith.addf %259, %cst_91 : f32
    %261 = math.rsqrt %260 : f32
    %262 = vector.broadcast %261 : f32 to vector<32x1xf32>
    %263 = arith.mulf %245, %262 : vector<32x1xf32>
    %264 = vector.broadcast %251 : f32 to vector<32x1xf32>
    %265 = arith.mulf %264, %263 : vector<32x1xf32>
    %266 = arith.subf %246, %265 : vector<32x1xf32>
    %267 = vector.broadcast %263 : vector<32x1xf32> to vector<32x256xf32>
    %268 = arith.mulf %244, %267 : vector<32x256xf32>
    %269 = vector.broadcast %266 : vector<32x1xf32> to vector<32x256xf32>
    %270 = arith.addf %268, %269 : vector<32x256xf32>
    %c1_92 = arith.constant 1 : index
    %c0_93 = arith.constant 0 : index
    %c0_94 = arith.constant 0 : index
    %271 = vector.load %arg10[%c1_92, %c0_93, %c0_94] : memref<2x64x32xbf16, #tpu.memory_space<vmem>>, vector<1x64x32xbf16>
    %272 = vector.shape_cast %271 : vector<1x64x32xbf16> to vector<64x32xbf16>
    %273 = arith.truncf %270 : vector<32x256xf32> to vector<32x256xbf16>
    %cst_95 = arith.constant dense<0.000000e+00> : vector<64x256xf32>
    %274 = tpu.matmul %272, %273, %cst_95 {dimension_numbers = #tpu.dot_dimension_numbers<[1], [0], [0], [1], [0, 0, 1, 1], [], []>} : vector<64x32xbf16>, vector<32x256xbf16>, vector<64x256xf32> -> vector<64x256xf32>
    %275 = vector.extract_strided_slice %178 {offsets = [0, 6], sizes = [64, 1], strides = [1, 1]} : vector<80x8xf32> to vector<64x1xf32>
    %276 = vector.broadcast %275 : vector<64x1xf32> to vector<64x256xf32>
    %277 = arith.addf %274, %276 : vector<64x256xf32>
    %278 = arith.negf %277 : vector<64x256xf32>
    %279 = math.exp %278 : vector<64x256xf32>
    %cst_96 = arith.constant 1.000000e+00 : f32
    %280 = vector.broadcast %cst_96 : f32 to vector<64x256xf32>
    %281 = arith.addf %280, %279 : vector<64x256xf32>
    %282 = arith.divf %280, %281 : vector<64x256xf32>
    %283 = arith.mulf %277, %282 : vector<64x256xf32>
    %c1_97 = arith.constant 1 : index
    %c0_98 = arith.constant 0 : index
    %c0_99 = arith.constant 0 : index
    %284 = vector.load %arg11[%c1_97, %c0_98, %c0_99] : memref<2x32x64xbf16, #tpu.memory_space<vmem>>, vector<1x32x64xbf16>
    %285 = vector.shape_cast %284 : vector<1x32x64xbf16> to vector<32x64xbf16>
    %286 = arith.truncf %283 : vector<64x256xf32> to vector<64x256xbf16>
    %cst_100 = arith.constant dense<0.000000e+00> : vector<32x256xf32>
    %287 = tpu.matmul %285, %286, %cst_100 {dimension_numbers = #tpu.dot_dimension_numbers<[1], [0], [0], [1], [0, 0, 1, 1], [], []>} : vector<32x64xbf16>, vector<64x256xbf16>, vector<32x256xf32> -> vector<32x256xf32>
    %288 = vector.extract_strided_slice %178 {offsets = [0, 7], sizes = [32, 1], strides = [1, 1]} : vector<80x8xf32> to vector<32x1xf32>
    %289 = vector.broadcast %288 : vector<32x1xf32> to vector<32x256xf32>
    %290 = arith.addf %287, %289 : vector<32x256xf32>
    %291 = arith.addf %244, %290 : vector<32x256xf32>
    %c0_101 = arith.constant 0 : index
    %c0_102 = arith.constant 0 : index
    %292 = vector.load %arg12[%c0_101, %c0_102] : memref<32x2xf32, #tpu.memory_space<vmem>>, vector<32x2xf32>
    %293 = vector.extract_strided_slice %292 {offsets = [0, 0], sizes = [32, 1], strides = [1, 1]} : vector<32x2xf32> to vector<32x1xf32>
    %294 = vector.extract_strided_slice %292 {offsets = [0, 1], sizes = [32, 1], strides = [1, 1]} : vector<32x2xf32> to vector<32x1xf32>
    %295 = vector.shape_cast %291 : vector<32x256xf32> to vector<1x32x256xf32>
    %cst_103 = arith.constant dense<0.000000e+00> : vector<1xf32>
    %296 = vector.multi_reduction <add>, %295, %cst_103 [1, 2] : vector<1x32x256xf32> to vector<1xf32>
    %297 = vector.shape_cast %296 : vector<1xf32> to vector<1x1x1xf32>
    %298 = vector.extract %297[0, 0, 0] : f32 from vector<1x1x1xf32>
    %cst_104 = arith.constant 8.192000e+03 : f32
    %299 = arith.divf %298, %cst_104 : f32
    %300 = arith.mulf %291, %291 : vector<32x256xf32>
    %301 = vector.shape_cast %300 : vector<32x256xf32> to vector<1x32x256xf32>
    %cst_105 = arith.constant dense<0.000000e+00> : vector<1xf32>
    %302 = vector.multi_reduction <add>, %301, %cst_105 [1, 2] : vector<1x32x256xf32> to vector<1xf32>
    %303 = vector.shape_cast %302 : vector<1xf32> to vector<1x1x1xf32>
    %304 = vector.extract %303[0, 0, 0] : f32 from vector<1x1x1xf32>
    %cst_106 = arith.constant 8.192000e+03 : f32
    %305 = arith.divf %304, %cst_106 : f32
    %306 = arith.mulf %299, %299 : f32
    %307 = arith.subf %305, %306 : f32
    %cst_107 = arith.constant 9.99999974E-6 : f32
    %308 = arith.addf %307, %cst_107 : f32
    %309 = math.rsqrt %308 : f32
    %310 = vector.broadcast %309 : f32 to vector<32x1xf32>
    %311 = arith.mulf %293, %310 : vector<32x1xf32>
    %312 = vector.broadcast %299 : f32 to vector<32x1xf32>
    %313 = arith.mulf %312, %311 : vector<32x1xf32>
    %314 = arith.subf %294, %313 : vector<32x1xf32>
    %315 = vector.broadcast %311 : vector<32x1xf32> to vector<32x256xf32>
    %316 = arith.mulf %291, %315 : vector<32x256xf32>
    %317 = vector.broadcast %314 : vector<32x1xf32> to vector<32x256xf32>
    %318 = arith.addf %316, %317 : vector<32x256xf32>
    %c0_108 = arith.constant 0 : index
    %c0_109 = arith.constant 0 : index
    %319 = vector.load %arg13[%c0_108, %c0_109] : memref<16x32xbf16, #tpu.memory_space<vmem>>, vector<16x32xbf16>
    %320 = arith.truncf %318 : vector<32x256xf32> to vector<32x256xbf16>
    %cst_110 = arith.constant dense<0.000000e+00> : vector<16x256xf32>
    %321 = tpu.matmul %319, %320, %cst_110 {dimension_numbers = #tpu.dot_dimension_numbers<[1], [0], [0], [1], [0, 0, 1, 1], [], []>} : vector<16x32xbf16>, vector<32x256xbf16>, vector<16x256xf32> -> vector<16x256xf32>
    %322 = vector.extract_strided_slice %47 {offsets = [0, 1], sizes = [16, 1], strides = [1, 1]} : vector<16x3xf32> to vector<16x1xf32>
    %323 = vector.broadcast %322 : vector<16x1xf32> to vector<16x256xf32>
    %324 = arith.mulf %321, %323 : vector<16x256xf32>
    %325 = vector.extract_strided_slice %47 {offsets = [0, 2], sizes = [16, 1], strides = [1, 1]} : vector<16x3xf32> to vector<16x1xf32>
    %326 = vector.broadcast %325 : vector<16x1xf32> to vector<16x256xf32>
    %327 = arith.addf %324, %326 : vector<16x256xf32>
    %328 = arith.negf %327 : vector<16x256xf32>
    %329 = math.exp %328 : vector<16x256xf32>
    %cst_111 = arith.constant 1.000000e+00 : f32
    %330 = vector.broadcast %cst_111 : f32 to vector<16x256xf32>
    %331 = arith.addf %330, %329 : vector<16x256xf32>
    %332 = arith.divf %330, %331 : vector<16x256xf32>
    %333 = arith.mulf %327, %332 : vector<16x256xf32>
    %c0_112 = arith.constant 0 : index
    %c0_113 = arith.constant 0 : index
    %c0_114 = arith.constant 0 : index
    %334 = vector.load %arg14[%c0_112, %c0_113, %c0_114] : memref<1x16x256xf32, #tpu.memory_space<vmem>>, vector<1x16x256xf32>
    %335 = vector.shape_cast %334 : vector<1x16x256xf32> to vector<16x256xf32>
    %336 = vector.shape_cast %333 : vector<16x256xf32> to vector<1x16x256xf32>
    tpu.vector_store %arg14[%c0_112, %c0_113, %c0_114], %336 {strides = array<i32>} : memref<1x16x256xf32, #tpu.memory_space<vmem>>, vector<1x16x256xf32>,
    return
  }
  func.func @transform_0(%arg0: i32) -> (i32, i32, i32) {
    %c0_i32 = arith.constant 0 : i32
    %c0_i32_0 = arith.constant 0 : i32
    %c0_i32_1 = arith.constant 0 : i32
    return %arg0, %c0_i32, %c0_i32_0 : i32, i32, i32
  }
  func.func @transform_1(%arg0: i32) -> (i32, i32, i32) {
    %c0_i32 = arith.constant 0 : i32
    %c0_i32_0 = arith.constant 0 : i32
    %c0_i32_1 = arith.constant 0 : i32
    %c0_i32_2 = arith.constant 0 : i32
    return %c0_i32, %c0_i32_0, %c0_i32_1 : i32, i32, i32
  }
  func.func @transform_2(%arg0: i32) -> (i32, i32) {
    %c0_i32 = arith.constant 0 : i32
    %c0_i32_0 = arith.constant 0 : i32
    %c0_i32_1 = arith.constant 0 : i32
    return %c0_i32, %c0_i32_0 : i32, i32
  }
  func.func @transform_3(%arg0: i32) -> (i32, i32) {
    %c0_i32 = arith.constant 0 : i32
    %c0_i32_0 = arith.constant 0 : i32
    %c0_i32_1 = arith.constant 0 : i32
    return %c0_i32, %c0_i32_0 : i32, i32
  }
  func.func @transform_4(%arg0: i32) -> (i32, i32) {
    %c0_i32 = arith.constant 0 : i32
    %c0_i32_0 = arith.constant 0 : i32
    %c0_i32_1 = arith.constant 0 : i32
    return %c0_i32, %c0_i32_0 : i32, i32
  }
  func.func @transform_5(%arg0: i32) -> (i32, i32) {
    %c0_i32 = arith.constant 0 : i32
    %c0_i32_0 = arith.constant 0 : i32
    %c0_i32_1 = arith.constant 0 : i32
    return %c0_i32, %c0_i32_0 : i32, i32
  }
  func.func @transform_6(%arg0: i32) -> (i32, i32, i32) {
    %c0_i32 = arith.constant 0 : i32
    %c0_i32_0 = arith.constant 0 : i32
    %c0_i32_1 = arith.constant 0 : i32
    %c0_i32_2 = arith.constant 0 : i32
    return %c0_i32, %c0_i32_0, %c0_i32_1 : i32, i32, i32
  }
  func.func @transform_7(%arg0: i32) -> (i32, i32, i32) {
    %c0_i32 = arith.constant 0 : i32
    %c0_i32_0 = arith.constant 0 : i32
    %c0_i32_1 = arith.constant 0 : i32
    %c0_i32_2 = arith.constant 0 : i32
    return %c0_i32, %c0_i32_0, %c0_i32_1 : i32, i32, i32
  }
  func.func @transform_8(%arg0: i32) -> (i32, i32, i32) {
    %c0_i32 = arith.constant 0 : i32
    %c0_i32_0 = arith.constant 0 : i32
    %c0_i32_1 = arith.constant 0 : i32
    %c0_i32_2 = arith.constant 0 : i32
    return %c0_i32, %c0_i32_0, %c0_i32_1 : i32, i32, i32
  }
  func.func @transform_9(%arg0: i32) -> (i32, i32, i32) {
    %c0_i32 = arith.constant 0 : i32
    %c0_i32_0 = arith.constant 0 : i32
    %c0_i32_1 = arith.constant 0 : i32
    %c0_i32_2 = arith.constant 0 : i32
    return %c0_i32, %c0_i32_0, %c0_i32_1 : i32, i32, i32
  }
  func.func @transform_10(%arg0: i32) -> (i32, i32, i32) {
    %c0_i32 = arith.constant 0 : i32
    %c0_i32_0 = arith.constant 0 : i32
    %c0_i32_1 = arith.constant 0 : i32
    %c0_i32_2 = arith.constant 0 : i32
    return %c0_i32, %c0_i32_0, %c0_i32_1 : i32, i32, i32
  }
  func.func @transform_11(%arg0: i32) -> (i32, i32) {
    %c0_i32 = arith.constant 0 : i32
    %c0_i32_0 = arith.constant 0 : i32
    %c0_i32_1 = arith.constant 0 : i32
    return %c0_i32, %c0_i32_0 : i32, i32
  }
  func.func @transform_12(%arg0: i32) -> (i32, i32) {
    %c0_i32 = arith.constant 0 : i32
    %c0_i32_0 = arith.constant 0 : i32
    %c0_i32_1 = arith.constant 0 : i32
    return %c0_i32, %c0_i32_0 : i32, i32
  }
  func.func @transform_13(%arg0: i32) -> (i32, i32, i32) {
    %c0_i32 = arith.constant 0 : i32
    %c0_i32_0 = arith.constant 0 : i32
    %c0_i32_1 = arith.constant 0 : i32
    return %arg0, %c0_i32, %c0_i32_0 : i32, i32, i32
  }
}

</mosaic_0001>

<llo_original>
// kernel: mobilevit_block_forward.1
$region0: #{mobilevit_block_forward.1}
  #allocation0 [shape = 'u32[]', space=smem, size = 0x4, offset = 0x4, fixed_abs, tag = 'smem constant byte address 0x4 - core index']
  #allocation1 [shape = 'u32[144,128]{1,0:T(1,128)}', space=vmem, size = 0x12000, scoped, tag = 'internal scratch']
  %s0 = inlined_call_operand.vmem [shape: f32[2,16,256], index: 0, kind: input, shape index: {}]
  %s1 = inlined_call_operand.vmem [shape: f32[9,16,256], index: 1, kind: input, shape index: {}]
  %s2 = inlined_call_operand.vmem [shape: f32[16,3], index: 2, kind: input, shape index: {}]
  %s3 = inlined_call_operand.vmem [shape: bf16[32,16], index: 3, kind: input, shape index: {}]
  %s4 = inlined_call_operand.vmem [shape: bf16[8,256], index: 4, kind: input, shape index: {}]
  %s5 = inlined_call_operand.vmem [shape: bf16[256,8], index: 5, kind: input, shape index: {}]
  %s6 = inlined_call_operand.vmem [shape: f32[2,80,8], index: 6, kind: input, shape index: {}]
  %s7 = inlined_call_operand.vmem [shape: bf16[2,80,32], index: 7, kind: input, shape index: {}]
  %s8 = inlined_call_operand.vmem [shape: bf16[2,32,32], index: 8, kind: input, shape index: {}]
  %s9 = inlined_call_operand.vmem [shape: bf16[2,64,32], index: 9, kind: input, shape index: {}]
  %s10 = inlined_call_operand.vmem [shape: bf16[2,32,64], index: 10, kind: input, shape index: {}]
  %s11 = inlined_call_operand.vmem [shape: f32[32,2], index: 11, kind: input, shape index: {}]
  %s12 = inlined_call_operand.vmem [shape: bf16[16,32], index: 12, kind: input, shape index: {}]
  %s13 = inlined_call_operand.vmem [shape: f32[2,16,256], index: 13, kind: output, shape index: {}]
  %s14 = sld [smem:[#allocation0]]
  $region85: #{mobilevit_block_forward.1} parent=0
    _
  %s16 = ssub.s32 1, %s14
  %s17 = scalar_select 0, %s16, %s14
  loop: start=0, step=1, limit=4
  $region2: #{mobilevit_block_forward.1} parent=0 // loop_pre_header
    _
  $region3: #{mobilevit_block_forward.1} parent=0 // loop_header
    %s19 = sphi 0, %s23
    %p20 = scmp.ge.s32.totalorder %s19, 4
    %s29 = sphi 0, %s31
    %s32 = sphi 0, %s29
    %s33 = sphi 0, %s32
    %s49 = sphi 0, %s33
    %s53 = sphi 0, %s53
    %s55 = sphi 0, %s53
    %s56 = sphi 0, %s55
    %s70 = sphi 0, %s56
    %s74 = sphi 0, %s74
    %s76 = sphi 0, %s74
    %s77 = sphi 0, %s76
    %s91 = sphi 0, %s77
    %s95 = sphi 0, %s95
    %s97 = sphi 0, %s95
    %s98 = sphi 0, %s97
    %s112 = sphi 0, %s98
    %s116 = sphi 0, %s116
    %s118 = sphi 0, %s116
    %s119 = sphi 0, %s118
    %s133 = sphi 0, %s119
    %s137 = sphi 0, %s137
    %s139 = sphi 0, %s137
    %s140 = sphi 0, %s139
    %s154 = sphi 0, %s140
    %s158 = sphi 0, %s158
    %s160 = sphi 0, %s158
    %s161 = sphi 0, %s160
    %s175 = sphi 0, %s161
    %s179 = sphi 0, %s179
    %s181 = sphi 0, %s179
    %s182 = sphi 0, %s181
    %s196 = sphi 0, %s182
    %s200 = sphi 0, %s200
    %s202 = sphi 0, %s200
    %s203 = sphi 0, %s202
    %s217 = sphi 0, %s203
    %s221 = sphi 0, %s221
    %s223 = sphi 0, %s221
    %s224 = sphi 0, %s223
    %s238 = sphi 0, %s224
    %s242 = sphi 0, %s242
    %s244 = sphi 0, %s242
    %s245 = sphi 0, %s244
    %s259 = sphi 0, %s245
    %s263 = sphi 0, %s263
    %s265 = sphi 0, %s263
    %s266 = sphi 0, %s265
    %s280 = sphi 0, %s266
    %s284 = sphi 0, %s284
    %s286 = sphi 0, %s284
    %s287 = sphi 0, %s286
    %s301 = sphi 0, %s287
    %s307 = sphi 0, %s309
    %s310 = sphi 0, %s307
    %s311 = sphi 0, %s310
    %s327 = sphi 0, %s311
  $region4: #{mobilevit_block_forward.1} parent=0 // loop_header_branch
    %22 = sbr.rel (%p20) target = $region8
  $region5: #{mobilevit_block_forward.1} parent=0 // loop_body
    %s24 = ssub.s32 %s19, 1
    %s25 = ssub.s32 %s19, 2
    %s26 = sadd.s32 %s19, 1
    %s27 = ssub.s32 %s19, %s26
    %p28 = scmp.eq.s32.totalorder %s27, 0
    %s30 = sadd.s32 %s29, 1
    %s31 = scalar_select %p28, %s29, %s30
    %p34 = pneg %p28
    %p35 = scmp.eq.s32.totalorder %s19, 1
    %p36 = por %p34, %p35
    %p37 = scmp.ne.s32.totalorder %s29, %s32
    %p38 = scmp.eq.s32.totalorder %s19, 0
    %p39 = por %p37, %p38
    %p40 = scmp.ne.s32.totalorder %s29, %s32
    %p41 = scmp.eq.s32.totalorder %s24, 1
    %p42 = por %p40, %p41
    %p43 = scmp.ne.s32.totalorder %s32, %s33
    %p44 = scmp.eq.s32.totalorder %s24, 0
    %p45 = por %p43, %p44
    %p46 = scmp.ne.s32.totalorder %s32, %s33
    %p47 = scmp.eq.s32.totalorder %s25, 1
    %p48 = por %p46, %p47
    %p50 = scmp.ne.s32.totalorder %s33, %s49
    %p51 = scmp.eq.s32.totalorder %s25, 0
    %p52 = por %p50, %p51
    %s54 = sadd.s32 %s53, 1
    %p57 = scmp.eq.s32.totalorder %s19, 1
    %p58 = scmp.ne.s32.totalorder %s53, %s55
    %p59 = scmp.eq.s32.totalorder %s19, 0
    %p60 = por %p58, %p59
    %p61 = scmp.ne.s32.totalorder %s53, %s55
    %p62 = scmp.eq.s32.totalorder %s24, 1
    %p63 = por %p61, %p62
    %p64 = scmp.ne.s32.totalorder %s55, %s56
    %p65 = scmp.eq.s32.totalorder %s24, 0
    %p66 = por %p64, %p65
    %p67 = scmp.ne.s32.totalorder %s55, %s56
    %p68 = scmp.eq.s32.totalorder %s25, 1
    %p69 = por %p67, %p68
    %p71 = scmp.ne.s32.totalorder %s56, %s70
    %p72 = scmp.eq.s32.totalorder %s25, 0
    %p73 = por %p71, %p72
    %s75 = sadd.s32 %s74, 1
    %p78 = scmp.eq.s32.totalorder %s19, 1
    %p79 = scmp.ne.s32.totalorder %s74, %s76
    %p80 = scmp.eq.s32.totalorder %s19, 0
    %p81 = por %p79, %p80
    %p82 = scmp.ne.s32.totalorder %s74, %s76
    %p83 = scmp.eq.s32.totalorder %s24, 1
    %p84 = por %p82, %p83
    %p85 = scmp.ne.s32.totalorder %s76, %s77
    %p86 = scmp.eq.s32.totalorder %s24, 0
    %p87 = por %p85, %p86
    %p88 = scmp.ne.s32.totalorder %s76, %s77
    %p89 = scmp.eq.s32.totalorder %s25, 1
    %p90 = por %p88, %p89
    %p92 = scmp.ne.s32.totalorder %s77, %s91
    %p93 = scmp.eq.s32.totalorder %s25, 0
    %p94 = por %p92, %p93
    %s96 = sadd.s32 %s95, 1
    %p99 = scmp.eq.s32.totalorder %s19, 1
    %p100 = scmp.ne.s32.totalorder %s95, %s97
    %p101 = scmp.eq.s32.totalorder %s19, 0
    %p102 = por %p100, %p101
    %p103 = scmp.ne.s32.totalorder %s95, %s97
    %p104 = scmp.eq.s32.totalorder %s24, 1
    %p105 = por %p103, %p104
    %p106 = scmp.ne.s32.totalorder %s97, %s98
    %p107 = scmp.eq.s32.totalorder %s24, 0
    %p108 = por %p106, %p107
    %p109 = scmp.ne.s32.totalorder %s97, %s98
    %p110 = scmp.eq.s32.totalorder %s25, 1
    %p111 = por %p109, %p110
    %p113 = scmp.ne.s32.totalorder %s98, %s112
    %p114 = scmp.eq.s32.totalorder %s25, 0
    %p115 = por %p113, %p114
    %s117 = sadd.s32 %s116, 1
    %p120 = scmp.eq.s32.totalorder %s19, 1
    %p121 = scmp.ne.s32.totalorder %s116, %s118
    %p122 = scmp.eq.s32.totalorder %s19, 0
    %p123 = por %p121, %p122
    %p124 = scmp.ne.s32.totalorder %s116, %s118
    %p125 = scmp.eq.s32.totalorder %s24, 1
    %p126 = por %p124, %p125
    %p127 = scmp.ne.s32.totalorder %s118, %s119
    %p128 = scmp.eq.s32.totalorder %s24, 0
    %p129 = por %p127, %p128
    %p130 = scmp.ne.s32.totalorder %s118, %s119
    %p131 = scmp.eq.s32.totalorder %s25, 1
    %p132 = por %p130, %p131
    %p134 = scmp.ne.s32.totalorder %s119, %s133
    %p135 = scmp.eq.s32.totalorder %s25, 0
    %p136 = por %p134, %p135
    %s138 = sadd.s32 %s137, 1
    %p141 = scmp.eq.s32.totalorder %s19, 1
    %p142 = scmp.ne.s32.totalorder %s137, %s139
    %p143 = scmp.eq.s32.totalorder %s19, 0
    %p144 = por %p142, %p143
    %p145 = scmp.ne.s32.totalorder %s137, %s139
    %p146 = scmp.eq.s32.totalorder %s24, 1
    %p147 = por %p145, %p146
    %p148 = scmp.ne.s32.totalorder %s139, %s140
    %p149 = scmp.eq.s32.totalorder %s24, 0
    %p150 = por %p148, %p149
    %p151 = scmp.ne.s32.totalorder %s139, %s140
    %p152 = scmp.eq.s32.totalorder %s25, 1
    %p153 = por %p151, %p152
    %p155 = scmp.ne.s32.totalorder %s140, %s154
    %p156 = scmp.eq.s32.totalorder %s25, 0
    %p157 = por %p155, %p156
    %s159 = sadd.s32 %s158, 1
    %p162 = scmp.eq.s32.totalorder %s19, 1
    %p163 = scmp.ne.s32.totalorder %s158, %s160
    %p164 = scmp.eq.s32.totalorder %s19, 0
    %p165 = por %p163, %p164
    %p166 = scmp.ne.s32.totalorder %s158, %s160
    %p167 = scmp.eq.s32.totalorder %s24, 1
    %p168 = por %p166, %p167
    %p169 = scmp.ne.s32.totalorder %s160, %s161
    %p170 = scmp.eq.s32.totalorder %s24, 0
    %p171 = por %p169, %p170
    %p172 = scmp.ne.s32.totalorder %s160, %s161
    %p173 = scmp.eq.s32.totalorder %s25, 1
    %p174 = por %p172, %p173
    %p176 = scmp.ne.s32.totalorder %s161, %s175
    %p177 = scmp.eq.s32.totalorder %s25, 0
    %p178 = por %p176, %p177
    %s180 = sadd.s32 %s179, 1
    %p183 = scmp.eq.s32.totalorder %s19, 1
    %p184 = scmp.ne.s32.totalorder %s179, %s181
    %p185 = scmp.eq.s32.totalorder %s19, 0
    %p186 = por %p184, %p185
    %p187 = scmp.ne.s32.totalorder %s179, %s181
    %p188 = scmp.eq.s32.totalorder %s24, 1
    %p189 = por %p187, %p188
    %p190 = scmp.ne.s32.totalorder %s181, %s182
    %p191 = scmp.eq.s32.totalorder %s24, 0
    %p192 = por %p190, %p191
    %p193 = scmp.ne.s32.totalorder %s181, %s182
    %p194 = scmp.eq.s32.totalorder %s25, 1
    %p195 = por %p193, %p194
    %p197 = scmp.ne.s32.totalorder %s182, %s196
    %p198 = scmp.eq.s32.totalorder %s25, 0
    %p199 = por %p197, %p198
    %s201 = sadd.s32 %s200, 1
    %p204 = scmp.eq.s32.totalorder %s19, 1
    %p205 = scmp.ne.s32.totalorder %s200, %s202
    %p206 = scmp.eq.s32.totalorder %s19, 0
    %p207 = por %p205, %p206
    %p208 = scmp.ne.s32.totalorder %s200, %s202
    %p209 = scmp.eq.s32.totalorder %s24, 1
    %p210 = por %p208, %p209
    %p211 = scmp.ne.s32.totalorder %s202, %s203
    %p212 = scmp.eq.s32.totalorder %s24, 0
    %p213 = por %p211, %p212
    %p214 = scmp.ne.s32.totalorder %s202, %s203
    %p215 = scmp.eq.s32.totalorder %s25, 1
    %p216 = por %p214, %p215
    %p218 = scmp.ne.s32.totalorder %s203, %s217
    %p219 = scmp.eq.s32.totalorder %s25, 0
    %p220 = por %p218, %p219
    %s222 = sadd.s32 %s221, 1
    %p225 = scmp.eq.s32.totalorder %s19, 1
    %p226 = scmp.ne.s32.totalorder %s221, %s223
    %p227 = scmp.eq.s32.totalorder %s19, 0
    %p228 = por %p226, %p227
    %p229 = scmp.ne.s32.totalorder %s221, %s223
    %p230 = scmp.eq.s32.totalorder %s24, 1
    %p231 = por %p229, %p230
    %p232 = scmp.ne.s32.totalorder %s223, %s224
    %p233 = scmp.eq.s32.totalorder %s24, 0
    %p234 = por %p232, %p233
    %p235 = scmp.ne.s32.totalorder %s223, %s224
    %p236 = scmp.eq.s32.totalorder %s25, 1
    %p237 = por %p235, %p236
    %p239 = scmp.ne.s32.totalorder %s224, %s238
    %p240 = scmp.eq.s32.totalorder %s25, 0
    %p241 = por %p239, %p240
    %s243 = sadd.s32 %s242, 1
    %p246 = scmp.eq.s32.totalorder %s19, 1
    %p247 = scmp.ne.s32.totalorder %s242, %s244
    %p248 = scmp.eq.s32.totalorder %s19, 0
    %p249 = por %p247, %p248
    %p250 = scmp.ne.s32.totalorder %s242, %s244
    %p251 = scmp.eq.s32.totalorder %s24, 1
    %p252 = por %p250, %p251
    %p253 = scmp.ne.s32.totalorder %s244, %s245
    %p254 = scmp.eq.s32.totalorder %s24, 0
    %p255 = por %p253, %p254
    %p256 = scmp.ne.s32.totalorder %s244, %s245
    %p257 = scmp.eq.s32.totalorder %s25, 1
    %p258 = por %p256, %p257
    %p260 = scmp.ne.s32.totalorder %s245, %s259
    %p261 = scmp.eq.s32.totalorder %s25, 0
    %p262 = por %p260, %p261
    %s264 = sadd.s32 %s263, 1
    %p267 = scmp.eq.s32.totalorder %s19, 1
    %p268 = scmp.ne.s32.totalorder %s263, %s265
    %p269 = scmp.eq.s32.totalorder %s19, 0
    %p270 = por %p268, %p269
    %p271 = scmp.ne.s32.totalorder %s263, %s265
    %p272 = scmp.eq.s32.totalorder %s24, 1
    %p273 = por %p271, %p272
    %p274 = scmp.ne.s32.totalorder %s265, %s266
    %p275 = scmp.eq.s32.totalorder %s24, 0
    %p276 = por %p274, %p275
    %p277 = scmp.ne.s32.totalorder %s265, %s266
    %p278 = scmp.eq.s32.totalorder %s25, 1
    %p279 = por %p277, %p278
    %p281 = scmp.ne.s32.totalorder %s266, %s280
    %p282 = scmp.eq.s32.totalorder %s25, 0
    %p283 = por %p281, %p282
    %s285 = sadd.s32 %s284, 1
    %p288 = scmp.eq.s32.totalorder %s19, 1
    %p289 = scmp.ne.s32.totalorder %s284, %s286
    %p290 = scmp.eq.s32.totalorder %s19, 0
    %p291 = por %p289, %p290
    %p292 = scmp.ne.s32.totalorder %s284, %s286
    %p293 = scmp.eq.s32.totalorder %s24, 1
    %p294 = por %p292, %p293
    %p295 = scmp.ne.s32.totalorder %s286, %s287
    %p296 = scmp.eq.s32.totalorder %s24, 0
    %p297 = por %p295, %p296
    %p298 = scmp.ne.s32.totalorder %s286, %s287
    %p299 = scmp.eq.s32.totalorder %s25, 1
    %p300 = por %p298, %p299
    %p302 = scmp.ne.s32.totalorder %s287, %s301
    %p303 = scmp.eq.s32.totalorder %s25, 0
    %p304 = por %p302, %p303
    %s305 = ssub.s32 %s19, %s26
    %p306 = scmp.eq.s32.totalorder %s305, 0
    %s308 = sadd.s32 %s307, 1
    %s309 = scalar_select %p306, %s307, %s308
    %p312 = pneg %p306
    %p313 = scmp.eq.s32.totalorder %s19, 1
    %p314 = por %p312, %p313
    %p315 = scmp.ne.s32.totalorder %s307, %s310
    %p316 = scmp.eq.s32.totalorder %s19, 0
    %p317 = por %p315, %p316
    %p318 = scmp.ne.s32.totalorder %s307, %s310
    %p319 = scmp.eq.s32.totalorder %s24, 1
    %p320 = por %p318, %p319
    %p321 = scmp.ne.s32.totalorder %s310, %s311
    %p322 = scmp.eq.s32.totalorder %s24, 0
    %p323 = por %p321, %p322
    %p324 = scmp.ne.s32.totalorder %s310, %s311
    %p325 = scmp.eq.s32.totalorder %s25, 1
    %p326 = por %p324, %p325
    %p328 = scmp.ne.s32.totalorder %s311, %s327
    %p329 = scmp.eq.s32.totalorder %s25, 0
    %p330 = por %p328, %p329
    %p331 = scmp.le.s32.totalorder 1, %s19
    %p332 = scmp.lt.s32.totalorder %s19, 3
    %p333 = pnand %p331, %p332
    %p334 = pneg %p333
    // Predicated region
    $region9: #{mobilevit_block_forward.1} parent=5 // pred_check
      _
    $region10: #{mobilevit_block_forward.1} parent=5 // pred_check_branch
      %336 = sbr.rel (%p333) target = $region12
    $region11: #{mobilevit_block_forward.1} parent=5 // pred_region
      %s337 = ssub.s32 %s19, 1
      // Predicated region
      $region13: #{mobilevit_block_forward.1} parent=11 // pred_check
        %p338 = pneg %p66
      $region14: #{mobilevit_block_forward.1} parent=11 // pred_check_branch
        %340 = sbr.rel (%p338) target = $region16
      $region15: #{mobilevit_block_forward.1} parent=11 // pred_region
        _
      $region16: #{mobilevit_block_forward.1} parent=11 // pred_fallthru
        _
      // Predicated region
      $region17: #{mobilevit_block_forward.1} parent=11 // pred_check
        %p341 = pneg %p87
      $region18: #{mobilevit_block_forward.1} parent=11 // pred_check_branch
        %343 = sbr.rel (%p341) target = $region20
      $region19: #{mobilevit_block_forward.1} parent=11 // pred_region
        _
      $region20: #{mobilevit_block_forward.1} parent=11 // pred_fallthru
        _
      // Predicated region
      $region21: #{mobilevit_block_forward.1} parent=11 // pred_check
        %p344 = pneg %p108
      $region22: #{mobilevit_block_forward.1} parent=11 // pred_check_branch
        %346 = sbr.rel (%p344) target = $region24
      $region23: #{mobilevit_block_forward.1} parent=11 // pred_region
        _
      $region24: #{mobilevit_block_forward.1} parent=11 // pred_fallthru
        _
      // Predicated region
      $region25: #{mobilevit_block_forward.1} parent=11 // pred_check
        %p347 = pneg %p129
      $region26: #{mobilevit_block_forward.1} parent=11 // pred_check_branch
        %349 = sbr.rel (%p347) target = $region28
      $region27: #{mobilevit_block_forward.1} parent=11 // pred_region
        _
      $region28: #{mobilevit_block_forward.1} parent=11 // pred_fallthru
        _
      // Predicated region
      $region29: #{mobilevit_block_forward.1} parent=11 // pred_check
        %p350 = pneg %p150
      $region30: #{mobilevit_block_forward.1} parent=11 // pred_check_branch
        %352 = sbr.rel (%p350) target = $region32
      $region31: #{mobilevit_block_forward.1} parent=11 // pred_region
        _
      $region32: #{mobilevit_block_forward.1} parent=11 // pred_fallthru
        _
      // Predicated region
      $region33: #{mobilevit_block_forward.1} parent=11 // pred_check
        %p353 = pneg %p171
      $region34: #{mobilevit_block_forward.1} parent=11 // pred_check_branch
        %355 = sbr.rel (%p353) target = $region36
      $region35: #{mobilevit_block_forward.1} parent=11 // pred_region
        _
      $region36: #{mobilevit_block_forward.1} parent=11 // pred_fallthru
        _
      // Predicated region
      $region37: #{mobilevit_block_forward.1} parent=11 // pred_check
        %p356 = pneg %p192
      $region38: #{mobilevit_block_forward.1} parent=11 // pred_check_branch
        %358 = sbr.rel (%p356) target = $region40
      $region39: #{mobilevit_block_forward.1} parent=11 // pred_region
        _
      $region40: #{mobilevit_block_forward.1} parent=11 // pred_fallthru
        _
      // Predicated region
      $region41: #{mobilevit_block_forward.1} parent=11 // pred_check
        %p359 = pneg %p213
      $region42: #{mobilevit_block_forward.1} parent=11 // pred_check_branch
        %361 = sbr.rel (%p359) target = $region44
      $region43: #{mobilevit_block_forward.1} parent=11 // pred_region
        _
      $region44: #{mobilevit_block_forward.1} parent=11 // pred_fallthru
        _
      // Predicated region
      $region45: #{mobilevit_block_forward.1} parent=11 // pred_check
        %p362 = pneg %p234
      $region46: #{mobilevit_block_forward.1} parent=11 // pred_check_branch
        %364 = sbr.rel (%p362) target = $region48
      $region47: #{mobilevit_block_forward.1} parent=11 // pred_region
        _
      $region48: #{mobilevit_block_forward.1} parent=11 // pred_fallthru
        _
      // Predicated region
      $region49: #{mobilevit_block_forward.1} parent=11 // pred_check
        %p365 = pneg %p255
      $region50: #{mobilevit_block_forward.1} parent=11 // pred_check_branch
        %367 = sbr.rel (%p365) target = $region52
      $region51: #{mobilevit_block_forward.1} parent=11 // pred_region
        _
      $region52: #{mobilevit_block_forward.1} parent=11 // pred_fallthru
        _
      // Predicated region
      $region53: #{mobilevit_block_forward.1} parent=11 // pred_check
        %p368 = pneg %p276
      $region54: #{mobilevit_block_forward.1} parent=11 // pred_check_branch
        %370 = sbr.rel (%p368) target = $region56
      $region55: #{mobilevit_block_forward.1} parent=11 // pred_region
        _
      $region56: #{mobilevit_block_forward.1} parent=11 // pred_fallthru
        _
      // Predicated region
      $region57: #{mobilevit_block_forward.1} parent=11 // pred_check
        %p371 = pneg %p297
      $region58: #{mobilevit_block_forward.1} parent=11 // pred_check_branch
        %373 = sbr.rel (%p371) target = $region60
      $region59: #{mobilevit_block_forward.1} parent=11 // pred_region
        _
      $region60: #{mobilevit_block_forward.1} parent=11 // pred_fallthru
        _
    $region12: #{mobilevit_block_forward.1} parent=5 // pred_fallthru
      _
    %p374 = scmp.lt.s32.totalorder %s19, 2
    // Predicated region
    $region61: #{mobilevit_block_forward.1} parent=5 // pred_check
      %p375 = pneg %p374
    $region62: #{mobilevit_block_forward.1} parent=5 // pred_check_branch
      %377 = sbr.rel (%p375) target = $region64
    $region63: #{mobilevit_block_forward.1} parent=5 // pred_region
      // Predicated region
      $region65: #{mobilevit_block_forward.1} parent=63 // pred_check
        %p378 = pneg %p39
      $region66: #{mobilevit_block_forward.1} parent=63 // pred_check_branch
        %380 = sbr.rel (%p378) target = $region68
      $region67: #{mobilevit_block_forward.1} parent=63 // pred_region
        %p381 = scmp.lt.s32.totalorder %s19, 1
        %s382 = scalar_select %p381, %s19, 1
        %s383 = smul.addr %s382, 4
        %s384 = smul.addr %s383, 8
        %s385 = scalar_lea.vmem %s0, %s384
      $region68: #{mobilevit_block_forward.1} parent=63 // pred_fallthru
        _
    $region64: #{mobilevit_block_forward.1} parent=5 // pred_fallthru
      _
    %p386 = scmp.le.s32.totalorder 1, %s19
    %p387 = scmp.lt.s32.totalorder %s19, 3
    %p388 = pnand %p386, %p387
    %p389 = pneg %p388
    // Predicated region
    $region69: #{mobilevit_block_forward.1} parent=5 // pred_check
      _
    $region70: #{mobilevit_block_forward.1} parent=5 // pred_check_branch
      %391 = sbr.rel (%p388) target = $region72
    $region71: #{mobilevit_block_forward.1} parent=5 // pred_region
      %s392 = ssub.s32 %s19, 1
      %p393 = scmp.lt.s32.totalorder %s24, 1
      %s394 = scalar_select %p393, %s24, 1
      %s395 = smul.addr %s394, 4
      %s396 = smul.addr %s395, 8
      %s397 = scalar_lea.vmem %s0, %s396
      %p398 = pneg %p45
      %p399 = pneg %p42
      %p400 = pneg %p66
      %p401 = pneg %p63
      %p402 = pneg %p87
      %p403 = pneg %p84
      %p404 = pneg %p108
      %p405 = pneg %p105
      %p406 = pneg %p129
      %p407 = pneg %p126
      %p408 = pneg %p150
      %p409 = pneg %p147
      %p410 = pneg %p171
      %p411 = pneg %p168
      %p412 = pneg %p192
      %p413 = pneg %p189
      %p414 = pneg %p213
      %p415 = pneg %p210
      %p416 = pneg %p234
      %p417 = pneg %p231
      %p418 = pneg %p255
      %p419 = pneg %p252
      %p420 = pneg %p276
      %p421 = pneg %p273
      %p422 = pneg %p297
      %p423 = pneg %p294
      %p424 = pneg %p323
      %p425 = pneg %p320
      %p426 = scmp.lt.s32.totalorder %s24, 1
      %s427 = scalar_select %p426, %s24, 1
      %s428 = smul.addr %s427, 4
      %s429 = smul.addr %s428, 8
      %s430 = scalar_lea.vmem %s13, %s429
      %p431 = scmp.lt.s32.totalorder %s24, 1
      %s432 = scalar_select %p431, %s24, 1
      %s433 = smul.addr %s432, 4
      %s434 = smul.addr %s433, 8
      %s435 = scalar_lea.vmem %s0, %s434
      %p436 = scmp.lt.s32.totalorder %s24, 1
      %s437 = scalar_select %p436, %s24, 1
      %s438 = smul.addr %s437, 4
      %s439 = smul.addr %s438, 8
      %s440 = scalar_lea.vmem %s13, %s439
      %v442 = vld [vmem:[%s435] sm:$0xff]
      %v443 = vld [vmem:[%s435 + $0x8] sm:$0xff]
      %v444 = vld [vmem:[%s435 + $0x10] sm:$0xff]
      %v445 = vld [vmem:[%s435 + $0x18] sm:$0xff]
      %446 = vrot.lane.b32.xlu0 %v442, 17
      %v447 = vpop.permute.xlu0 %446
      %448 = vrot.lane.b32.xlu0 %v444, 17
      %v449 = vpop.permute.xlu0 %448
      %450 = vrot.lane.b32.xlu0 %v443, 17
      %v451 = vpop.permute.xlu0 %450
      %452 = vrot.lane.b32.xlu0 %v445, 17
      %v453 = vpop.permute.xlu0 %452
      %v454 = vlaneseq
      %v455 = vand.u32 %v454, 127
      %vm456 = vcmp.lt.s32.totalorder %v455, 17
      %v457 = vsel %vm456, %v447, %v451
      %v458 = vsel %vm456, %v449, %v453
      %v459 = vsel %vm456, %v451, %v447
      %v460 = vsel %vm456, %v453, %v449
      %v461 = vld [vmem:[%s1] sm:$0xff]
      %v462 = vld [vmem:[%s1 + $0x8] sm:$0xff]
      %v463 = vld [vmem:[%s1 + $0x10] sm:$0xff]
      %v464 = vld [vmem:[%s1 + $0x18] sm:$0xff]
      %v465 = vmul.f32 %v459, %v461
      %v466 = vmul.f32 %v457, %v462
      %v467 = vmul.f32 %v460, %v463
      %v468 = vmul.f32 %v458, %v464
      %v469 = vadd.f32 %v465, 0.0
      %v470 = vadd.f32 %v466, 0.0
      %v471 = vadd.f32 %v467, 0.0
      %v472 = vadd.f32 %v468, 0.0
      %473 = vrot.lane.b32.xlu0 %v442, 16
      %v474 = vpop.permute.xlu0 %473
      %475 = vrot.lane.b32.xlu0 %v444, 16
      %v476 = vpop.permute.xlu0 %475
      %477 = vrot.lane.b32.xlu0 %v443, 16
      %v478 = vpop.permute.xlu0 %477
      %479 = vrot.lane.b32.xlu0 %v445, 16
      %v480 = vpop.permute.xlu0 %479
      %vm481 = vcmp.lt.s32.totalorder %v455, 16
      %v482 = vsel %vm481, %v474, %v478
      %v483 = vsel %vm481, %v476, %v480
      %v484 = vsel %vm481, %v478, %v474
      %v485 = vsel %vm481, %v480, %v476
      %s486 = scalar_lea.vmem %s1, 32
      %v487 = vld [vmem:[%s486] sm:$0xff]
      %v488 = vld [vmem:[%s486 + $0x8] sm:$0xff]
      %v489 = vld [vmem:[%s486 + $0x10] sm:$0xff]
      %v490 = vld [vmem:[%s486 + $0x18] sm:$0xff]
      %v491 = vmul.f32 %v484, %v487
      %v492 = vmul.f32 %v482, %v488
      %v493 = vmul.f32 %v485, %v489
      %v494 = vmul.f32 %v483, %v490
      %v495 = vadd.f32 %v469, %v491
      %v496 = vadd.f32 %v470, %v492
      %v497 = vadd.f32 %v471, %v493
      %v498 = vadd.f32 %v472, %v494
      %499 = vrot.lane.b32.xlu0 %v442, 15
      %v500 = vpop.permute.xlu0 %499
      %501 = vrot.lane.b32.xlu0 %v444, 15
      %v502 = vpop.permute.xlu0 %501
      %503 = vrot.lane.b32.xlu0 %v443, 15
      %v504 = vpop.permute.xlu0 %503
      %505 = vrot.lane.b32.xlu0 %v445, 15
      %v506 = vpop.permute.xlu0 %505
      %vm507 = vcmp.lt.s32.totalorder %v455, 15
      %v508 = vsel %vm507, %v500, %v504
      %v509 = vsel %vm507, %v502, %v506
      %v510 = vsel %vm507, %v504, %v500
      %v511 = vsel %vm507, %v506, %v502
      %s512 = scalar_lea.vmem %s1, 64
      %v513 = vld [vmem:[%s512] sm:$0xff]
      %v514 = vld [vmem:[%s512 + $0x8] sm:$0xff]
      %v515 = vld [vmem:[%s512 + $0x10] sm:$0xff]
      %v516 = vld [vmem:[%s512 + $0x18] sm:$0xff]
      %v517 = vmul.f32 %v510, %v513
      %v518 = vmul.f32 %v508, %v514
      %v519 = vmul.f32 %v511, %v515
      %v520 = vmul.f32 %v509, %v516
      %v521 = vadd.f32 %v495, %v517
      %v522 = vadd.f32 %v496, %v518
      %v523 = vadd.f32 %v497, %v519
      %v524 = vadd.f32 %v498, %v520
      %525 = vrot.lane.b32.xlu0 %v442, 1
      %v526 = vpop.permute.xlu0 %525
      %527 = vrot.lane.b32.xlu0 %v444, 1
      %v528 = vpop.permute.xlu0 %527
      %529 = vrot.lane.b32.xlu0 %v443, 1
      %v530 = vpop.permute.xlu0 %529
      %531 = vrot.lane.b32.xlu0 %v445, 1
      %v532 = vpop.permute.xlu0 %531
      %vm533 = vcmp.lt.s32.totalorder %v455, 1
      %v534 = vsel %vm533, %v526, %v530
      %v535 = vsel %vm533, %v528, %v532
      %v536 = vsel %vm533, %v530, %v526
      %v537 = vsel %vm533, %v532, %v528
      %s538 = scalar_lea.vmem %s1, 96
      %v539 = vld [vmem:[%s538] sm:$0xff]
      %v540 = vld [vmem:[%s538 + $0x8] sm:$0xff]
      %v541 = vld [vmem:[%s538 + $0x10] sm:$0xff]
      %v542 = vld [vmem:[%s538 + $0x18] sm:$0xff]
      %v543 = vmul.f32 %v536, %v539
      %v544 = vmul.f32 %v534, %v540
      %v545 = vmul.f32 %v537, %v541
      %v546 = vmul.f32 %v535, %v542
      %v547 = vadd.f32 %v521, %v543
      %v548 = vadd.f32 %v522, %v544
      %v549 = vadd.f32 %v523, %v545
      %v550 = vadd.f32 %v524, %v546
      %s551 = scalar_lea.vmem %s1, 128
      %v552 = vld [vmem:[%s551] sm:$0xff]
      %v553 = vld [vmem:[%s551 + $0x8] sm:$0xff]
      %v554 = vld [vmem:[%s551 + $0x10] sm:$0xff]
      %v555 = vld [vmem:[%s551 + $0x18] sm:$0xff]
      %v556 = vmul.f32 %v442, %v552
      %v557 = vmul.f32 %v443, %v553
      %v558 = vmul.f32 %v444, %v554
      %v559 = vmul.f32 %v445, %v555
      %v560 = vadd.f32 %v547, %v556
      %v561 = vadd.f32 %v548, %v557
      %v562 = vadd.f32 %v549, %v558
      %v563 = vadd.f32 %v550, %v559
      %564 = vrot.lane.b32.xlu0 %v442, 127
      %v565 = vpop.permute.xlu0 %564
      %566 = vrot.lane.b32.xlu0 %v444, 127
      %v567 = vpop.permute.xlu0 %566
      %568 = vrot.lane.b32.xlu0 %v443, 127
      %v569 = vpop.permute.xlu0 %568
      %570 = vrot.lane.b32.xlu0 %v445, 127
      %v571 = vpop.permute.xlu0 %570
      %vm572 = vcmp.lt.s32.totalorder %v455, 127
      %v573 = vsel %vm572, %v565, %v569
      %v574 = vsel %vm572, %v567, %v571
      %v575 = vsel %vm572, %v569, %v565
      %v576 = vsel %vm572, %v571, %v567
      %s577 = scalar_lea.vmem %s1, 160
      %v578 = vld [vmem:[%s577] sm:$0xff]
      %v579 = vld [vmem:[%s577 + $0x8] sm:$0xff]
      %v580 = vld [vmem:[%s577 + $0x10] sm:$0xff]
      %v581 = vld [vmem:[%s577 + $0x18] sm:$0xff]
      %v582 = vmul.f32 %v573, %v578
      %v583 = vmul.f32 %v575, %v579
      %v584 = vmul.f32 %v574, %v580
      %v585 = vmul.f32 %v576, %v581
      %v586 = vadd.f32 %v560, %v582
      %v587 = vadd.f32 %v561, %v583
      %v588 = vadd.f32 %v562, %v584
      %v589 = vadd.f32 %v563, %v585
      %590 = vrot.lane.b32.xlu0 %v442, 113
      %v591 = vpop.permute.xlu0 %590
      %592 = vrot.lane.b32.xlu0 %v444, 113
      %v593 = vpop.permute.xlu0 %592
      %594 = vrot.lane.b32.xlu0 %v443, 113
      %v595 = vpop.permute.xlu0 %594
      %596 = vrot.lane.b32.xlu0 %v445, 113
      %v597 = vpop.permute.xlu0 %596
      %vm598 = vcmp.lt.s32.totalorder %v455, 113
      %v599 = vsel %vm598, %v591, %v595
      %v600 = vsel %vm598, %v593, %v597
      %v601 = vsel %vm598, %v595, %v591
      %v602 = vsel %vm598, %v597, %v593
      %s603 = scalar_lea.vmem %s1, 192
      %v604 = vld [vmem:[%s603] sm:$0xff]
      %v605 = vld [vmem:[%s603 + $0x8] sm:$0xff]
      %v606 = vld [vmem:[%s603 + $0x10] sm:$0xff]
      %v607 = vld [vmem:[%s603 + $0x18] sm:$0xff]
      %v608 = vmul.f32 %v599, %v604
      %v609 = vmul.f32 %v601, %v605
      %v610 = vmul.f32 %v600, %v606
      %v611 = vmul.f32 %v602, %v607
      %v612 = vadd.f32 %v586, %v608
      %v613 = vadd.f32 %v587, %v609
      %v614 = vadd.f32 %v588, %v610
      %v615 = vadd.f32 %v589, %v611
      %616 = vrot.lane.b32.xlu0 %v442, 112
      %v617 = vpop.permute.xlu0 %616
      %618 = vrot.lane.b32.xlu0 %v444, 112
      %v619 = vpop.permute.xlu0 %618
      %620 = vrot.lane.b32.xlu0 %v443, 112
      %v621 = vpop.permute.xlu0 %620
      %622 = vrot.lane.b32.xlu0 %v445, 112
      %v623 = vpop.permute.xlu0 %622
      %vm624 = vcmp.lt.s32.totalorder %v455, 112
      %v625 = vsel %vm624, %v617, %v621
      %v626 = vsel %vm624, %v619, %v623
      %v627 = vsel %vm624, %v621, %v617
      %v628 = vsel %vm624, %v623, %v619
      %s629 = scalar_lea.vmem %s1, 224
      %v630 = vld [vmem:[%s629] sm:$0xff]
      %v631 = vld [vmem:[%s629 + $0x8] sm:$0xff]
      %v632 = vld [vmem:[%s629 + $0x10] sm:$0xff]
      %v633 = vld [vmem:[%s629 + $0x18] sm:$0xff]
      %v634 = vmul.f32 %v625, %v630
      %v635 = vmul.f32 %v627, %v631
      %v636 = vmul.f32 %v626, %v632
      %v637 = vmul.f32 %v628, %v633
      %v638 = vadd.f32 %v612, %v634
      %v639 = vadd.f32 %v613, %v635
      %v640 = vadd.f32 %v614, %v636
      %v641 = vadd.f32 %v615, %v637
      %642 = vrot.lane.b32.xlu0 %v442, 111
      %v643 = vpop.permute.xlu0 %642
      %644 = vrot.lane.b32.xlu0 %v444, 111
      %v645 = vpop.permute.xlu0 %644
      %646 = vrot.lane.b32.xlu0 %v443, 111
      %v647 = vpop.permute.xlu0 %646
      %648 = vrot.lane.b32.xlu0 %v445, 111
      %v649 = vpop.permute.xlu0 %648
      %vm650 = vcmp.lt.s32.totalorder %v455, 111
      %v651 = vsel %vm650, %v643, %v647
      %v652 = vsel %vm650, %v645, %v649
      %v653 = vsel %vm650, %v647, %v643
      %v654 = vsel %vm650, %v649, %v645
      %s655 = scalar_lea.vmem %s1, 256
      %v656 = vld [vmem:[%s655] sm:$0xff]
      %v657 = vld [vmem:[%s655 + $0x8] sm:$0xff]
      %v658 = vld [vmem:[%s655 + $0x10] sm:$0xff]
      %v659 = vld [vmem:[%s655 + $0x18] sm:$0xff]
      %v660 = vmul.f32 %v651, %v656
      %v661 = vmul.f32 %v653, %v657
      %v662 = vmul.f32 %v652, %v658
      %v663 = vmul.f32 %v654, %v659
      %v664 = vadd.f32 %v638, %v660
      %v665 = vadd.f32 %v639, %v661
      %v666 = vadd.f32 %v640, %v662
      %v667 = vadd.f32 %v641, %v663
      %v668 = vld [vmem:[%s2] sm:$0xff]
      %v669 = vld [vmem:[%s2 + $0x8] sm:$0xff]
      %671 = vset.pattern.permute.xlu0 0
      %672 = vperm.xlu0 %671, %v668
      %v673 = vpop.permute.xlu0 %672
      %676 = vset.pattern.permute.xlu0 0
      %677 = vperm.xlu0 %676, %v669
      %v678 = vpop.permute.xlu0 %677
      %v680 = vadd.f32 %v664, %v673
      %v681 = vadd.f32 %v665, %v673
      %v682 = vadd.f32 %v666, %v678
      %v683 = vadd.f32 %v667, %v678
      %v684 = vxor.u32 %v680, 2147483648
      %v685 = vxor.u32 %v681, 2147483648
      %v686 = vxor.u32 %v682, 2147483648
      %v687 = vxor.u32 %v683, 2147483648
      %v688 = vmul.f32 %v684, 1.442695
      %v689 = vpow.pop %v688
      %v690 = vmul.f32 %v685, 1.442695
      %v691 = vpow.pop %v690
      %v692 = vmul.f32 %v686, 1.442695
      %v693 = vpow.pop %v692
      %v694 = vmul.f32 %v687, 1.442695
      %v695 = vpow.pop %v694
      %v696 = vadd.f32 %v689, 1.0
      %v697 = vadd.f32 %v691, 1.0
      %v698 = vadd.f32 %v693, 1.0
      %v699 = vadd.f32 %v695, 1.0
      %v700 = vrcp.pop %v696
      %v701 = vmul.f32 1.0, %v700
      %v702 = vrcp.pop %v697
      %v703 = vmul.f32 1.0, %v702
      %v704 = vrcp.pop %v698
      %v705 = vmul.f32 1.0, %v704
      %v706 = vrcp.pop %v699
      %v707 = vmul.f32 1.0, %v706
      %v708 = vmul.f32 %v680, %v701
      %v709 = vmul.f32 %v681, %v703
      %v710 = vmul.f32 %v682, %v705
      %v711 = vmul.f32 %v683, %v707
      %v712 = vld [vmem:[%s3] sm:$0xf]
      %v713 = vld [vmem:[%s3 + $0x4] sm:$0xf]
      %v714 = vld [vmem:[%s3 + $0x8] sm:$0xf]
      %v715 = vld [vmem:[%s3 + $0xc] sm:$0xf]
      %v716 = vpack.c.bf16 %v710, %v708
      %v717 = vpack.c.bf16 %v711, %v709
      %v722 = vunpack.c.l.b16 %v712
      %v723 = vunpack.c.l.b16 %v713
      %v724 = vunpack.c.l.b16 %v714
      %v725 = vunpack.c.l.b16 %v715
      %v726 = vpack.c.b16 %v723, %v722
      %v727 = vpack.c.b16 %v725, %v724
      %vm728 = vcmask 130048
      %v730 = vsel %vm728, %v726, 0
      %v733 = vsel %vm728, %v727, 0
      %735 = vmatprep.subr.bf16.mxu0 0
      %736 = vmatpush1.bf16.msra.mxu0 0
      %737 = vmatprep.subr.bf16.mxu0 0
      %738 = vmatpush1.bf16.msra.mxu0 0
      %739 = vmatprep.subr.bf16.mxu0 0
      %740 = vmatpush1.bf16.msra.mxu0 0
      %741 = vmatprep.subr.bf16.mxu0 0
      %742 = vmatpush1.bf16.msra.mxu0 0
      %743 = vmatprep.subr.bf16.mxu0 0
      %744 = vmatpush1.bf16.msra.mxu0 0
      %745 = vmatprep.subr.bf16.mxu0 0
      %746 = vmatpush1.bf16.msra.mxu0 0
      %747 = vmatprep.subr.bf16.mxu0 0
      %748 = vmatpush1.bf16.msra.mxu0 0
      %749 = vmatprep.subr.bf16.mxu0 %v717
      %750 = vmatpush1.bf16.msra.mxu0 %v716
      %751 = vmatprep.subr.bf16.mxu0 0
      %752 = vmatpush2.bf16.msra.mxu0 0
      %753 = vmatprep.subr.bf16.mxu0 0
      %754 = vmatpush2.bf16.msra.mxu0 0
      %755 = vmatprep.subr.bf16.mxu0 0
      %756 = vmatpush2.bf16.msra.mxu0 0
      %757 = vmatprep.subr.bf16.mxu0 0
      %758 = vmatpush2.bf16.msra.mxu0 0
      %759 = vmatprep.subr.bf16.mxu0 0
      %760 = vmatpush2.bf16.msra.mxu0 0
      %761 = vmatprep.subr.bf16.mxu0 0
      %762 = vmatpush2.bf16.msra.mxu0 0
      %763 = vmatprep.subr.bf16.mxu0 0
      %764 = vmatpush2.bf16.msra.mxu0 0
      %765 = vmatprep.subr.bf16.mxu0 0
      %766 = vmatpush2.bf16.msra.mxu0 0
      %767 = vmatprep.mubr.bf16.mxu0 0
      %768 = vmatmul.mubr.bf16.gmra.mxu0 %v730
      %v769 = vpop.f32.mrf.mxu0
      %v770 = vadd.f32 0.0, %v769
      %v771 = vpop.f32.mrf.mxu0
      %v772 = vadd.f32 0.0, %v771
      %v773 = vpop.f32.mrf.mxu0
      %v774 = vadd.f32 0.0, %v773
      %v775 = vpop.f32.mrf.mxu0
      %v776 = vadd.f32 0.0, %v775
      %777 = vmatprep.mubr.bf16.mxu0 0
      %778 = vmatmul.mubr.bf16.gmra.mxu0 %v733
      %v779 = vpop.f32.mrf.mxu0
      %v780 = vadd.f32 0.0, %v779
      %v781 = vpop.f32.mrf.mxu0
      %v782 = vadd.f32 0.0, %v781
      %v783 = vpop.f32.mrf.mxu0
      %v784 = vadd.f32 0.0, %v783
      %v785 = vpop.f32.mrf.mxu0
      %v786 = vadd.f32 0.0, %v785
      %787 = vdwg.mxu0
      %v788 = vld [vmem:[%s4] sm:$0xff]
      %v789 = vld [vmem:[%s5] sm:$0xf]
      %v790 = vld [vmem:[%s5 + $0x4] sm:$0xf]
      %v791 = vld [vmem:[%s5 + $0x8] sm:$0xf]
      %v792 = vld [vmem:[%s5 + $0xc] sm:$0xf]
      %v793 = vld [vmem:[%s5 + $0x10] sm:$0xf]
      %v794 = vld [vmem:[%s5 + $0x14] sm:$0xf]
      %v795 = vld [vmem:[%s5 + $0x18] sm:$0xf]
      %v796 = vld [vmem:[%s5 + $0x1c] sm:$0xf]
      %v797 = vld [vmem:[%s5 + $0x20] sm:$0xf]
      %v798 = vld [vmem:[%s5 + $0x24] sm:$0xf]
      %v799 = vld [vmem:[%s5 + $0x28] sm:$0xf]
      %v800 = vld [vmem:[%s5 + $0x2c] sm:$0xf]
      %v801 = vld [vmem:[%s5 + $0x30] sm:$0xf]
      %v802 = vld [vmem:[%s5 + $0x34] sm:$0xf]
      %v803 = vld [vmem:[%s5 + $0x38] sm:$0xf]
      %v804 = vld [vmem:[%s5 + $0x3c] sm:$0xf]
      %v805 = vld [vmem:[%s5 + $0x40] sm:$0xf]
      %v806 = vld [vmem:[%s5 + $0x44] sm:$0xf]
      %v807 = vld [vmem:[%s5 + $0x48] sm:$0xf]
      %v808 = vld [vmem:[%s5 + $0x4c] sm:$0xf]
      %v809 = vld [vmem:[%s5 + $0x50] sm:$0xf]
      %v810 = vld [vmem:[%s5 + $0x54] sm:$0xf]
      %v811 = vld [vmem:[%s5 + $0x58] sm:$0xf]
      %v812 = vld [vmem:[%s5 + $0x5c] sm:$0xf]
      %v813 = vld [vmem:[%s5 + $0x60] sm:$0xf]
      %v814 = vld [vmem:[%s5 + $0x64] sm:$0xf]
      %v815 = vld [vmem:[%s5 + $0x68] sm:$0xf]
      %v816 = vld [vmem:[%s5 + $0x6c] sm:$0xf]
      %v817 = vld [vmem:[%s5 + $0x70] sm:$0xf]
      %v818 = vld [vmem:[%s5 + $0x74] sm:$0xf]
      %v819 = vld [vmem:[%s5 + $0x78] sm:$0xf]
      %v820 = vld [vmem:[%s5 + $0x7c] sm:$0xf]
      %v821 = vld [vmem:[%s6] sm:$0xff]
      %v822 = vld [vmem:[%s6 + $0x8] sm:$0xff]
      %v823 = vld [vmem:[%s6 + $0x10] sm:$0xff]
      %v824 = vld [vmem:[%s6 + $0x18] sm:$0xff]
      %v825 = vld [vmem:[%s6 + $0x20] sm:$0xff]
      %v826 = vld [vmem:[%s6 + $0x28] sm:$0xff]
      %v827 = vld [vmem:[%s6 + $0x30] sm:$0xff]
      %v828 = vld [vmem:[%s6 + $0x38] sm:$0xff]
      %v829 = vld [vmem:[%s6 + $0x40] sm:$0xff]
      %v830 = vld [vmem:[%s6 + $0x48] sm:$0xff]
      %v831 = vadd.f32 %v770, %v772
      %v832 = vadd.f32 %v831, %v774
      %v833 = vadd.f32 %v832, %v776
      %v834 = vadd.f32 %v833, %v780
      %v835 = vadd.f32 %v834, %v782
      %v836 = vadd.f32 %v835, %v784
      %v837 = vadd.f32 %v836, %v786
      %838 = vadd.xlane.f32.xlu0 %v837
      %v839 = vpop.xlane.xlu0 %838
      %v840 = vrot.slane %v839, 4
      %v841 = vadd.f32 %v839, %v840
      %v842 = vrot.slane %v841, 2
      %v843 = vadd.f32 %v841, %v842
      %v844 = vrot.slane %v843, 1
      %v845 = vadd.f32 %v843, %v844
      %s846 = vtos %v845
      %v847 = vrcp.pop 8192.0
      %s848 = vtos %v847
      %s849 = smul.f32 %s846, %s848
      %v850 = vmul.f32 %v770, %v770
      %v851 = vmul.f32 %v772, %v772
      %v852 = vmul.f32 %v774, %v774
      %v853 = vmul.f32 %v776, %v776
      %v854 = vmul.f32 %v780, %v780
      %v855 = vmul.f32 %v782, %v782
      %v856 = vmul.f32 %v784, %v784
      %v857 = vmul.f32 %v786, %v786
      %v858 = vadd.f32 %v850, %v851
      %v859 = vadd.f32 %v858, %v852
      %v860 = vadd.f32 %v859, %v853
      %v861 = vadd.f32 %v860, %v854
      %v862 = vadd.f32 %v861, %v855
      %v863 = vadd.f32 %v862, %v856
      %v864 = vadd.f32 %v863, %v857
      %865 = vadd.xlane.f32.xlu0 %v864
      %v866 = vpop.xlane.xlu0 %865
      %v867 = vrot.slane %v866, 4
      %v868 = vadd.f32 %v866, %v867
      %v869 = vrot.slane %v868, 2
      %v870 = vadd.f32 %v868, %v869
      %v871 = vrot.slane %v870, 1
      %v872 = vadd.f32 %v870, %v871
      %s873 = vtos %v872
      %v874 = vrcp.pop 8192.0
      %s875 = vtos %v874
      %s876 = smul.f32 %s873, %s875
      %s877 = smul.f32 %s849, %s849
      %s878 = ssub.f32 %s876, %s877
      %s879 = sadd.f32 %s878, 1e-05
      %v880 = vstv %s879
      %v881 = vrsqrt.pop %v880
      %s882 = vtos %v881
      %v883 = vstv %s882
      %v884 = vmul.f32 %v821, %v883
      %v885 = vmul.f32 %v822, %v883
      %v886 = vmul.f32 %v823, %v883
      %v887 = vmul.f32 %v824, %v883
      %v888 = vstv %s849
      %v889 = vmul.f32 %v888, %v884
      %v890 = vmul.f32 %v888, %v885
      %v891 = vmul.f32 %v888, %v886
      %v892 = vmul.f32 %v888, %v887
      %897 = vrot.lane.b32.xlu0 %v889, 1
      %v898 = vpop.permute.xlu0 %897
      %899 = vrot.lane.b32.xlu0 %v890, 1
      %v900 = vpop.permute.xlu0 %899
      %901 = vrot.lane.b32.xlu0 %v891, 1
      %v902 = vpop.permute.xlu0 %901
      %903 = vrot.lane.b32.xlu0 %v892, 1
      %v904 = vpop.permute.xlu0 %903
      %v909 = vsub.f32 %v821, %v898
      %v910 = vsub.f32 %v822, %v900
      %v911 = vsub.f32 %v823, %v902
      %v912 = vsub.f32 %v824, %v904
      %914 = vset.pattern.permute.xlu0 0
      %915 = vperm.xlu0 %914, %v884
      %v916 = vpop.permute.xlu0 %915
      %919 = vset.pattern.permute.xlu0 0
      %920 = vperm.xlu0 %919, %v885
      %v921 = vpop.permute.xlu0 %920
      %924 = vset.pattern.permute.xlu0 0
      %925 = vperm.xlu0 %924, %v886
      %v926 = vpop.permute.xlu0 %925
      %929 = vset.pattern.permute.xlu0 0
      %930 = vperm.xlu0 %929, %v887
      %v931 = vpop.permute.xlu0 %930
      %v933 = vmul.f32 %v770, %v916
      %v934 = vmul.f32 %v772, %v916
      %v935 = vmul.f32 %v774, %v921
      %v936 = vmul.f32 %v776, %v921
      %v937 = vmul.f32 %v780, %v926
      %v938 = vmul.f32 %v782, %v926
      %v939 = vmul.f32 %v784, %v931
      %v940 = vmul.f32 %v786, %v931
      %942 = vset.pattern.permute.xlu0 1
      %943 = vperm.xlu0 %942, %v909
      %v944 = vpop.permute.xlu0 %943
      %947 = vset.pattern.permute.xlu0 1
      %948 = vperm.xlu0 %947, %v910
      %v949 = vpop.permute.xlu0 %948
      %952 = vset.pattern.permute.xlu0 1
      %953 = vperm.xlu0 %952, %v911
      %v954 = vpop.permute.xlu0 %953
      %957 = vset.pattern.permute.xlu0 1
      %958 = vperm.xlu0 %957, %v912
      %v959 = vpop.permute.xlu0 %958
      %v961 = vadd.f32 %v933, %v944
      %v962 = vadd.f32 %v934, %v944
      %v963 = vadd.f32 %v935, %v949
      %v964 = vadd.f32 %v936, %v949
      %v965 = vadd.f32 %v937, %v954
      %v966 = vadd.f32 %v938, %v954
      %v967 = vadd.f32 %v939, %v959
      %v968 = vadd.f32 %v940, %v959
      %v969 = vld [vmem:[%s7] sm:$0xf]
      %v970 = vld [vmem:[%s7 + $0x4] sm:$0xf]
      %v971 = vld [vmem:[%s7 + $0x8] sm:$0xf]
      %v972 = vld [vmem:[%s7 + $0xc] sm:$0xf]
      %v973 = vld [vmem:[%s7 + $0x10] sm:$0xf]
      %v974 = vld [vmem:[%s7 + $0x14] sm:$0xf]
      %v975 = vld [vmem:[%s7 + $0x18] sm:$0xf]
      %v976 = vld [vmem:[%s7 + $0x1c] sm:$0xf]
      %v977 = vld [vmem:[%s7 + $0x20] sm:$0xf]
      %v978 = vld [vmem:[%s7 + $0x24] sm:$0xf]
      %v979 = vpack.c.bf16 %v963, %v961
      %v980 = vpack.c.bf16 %v964, %v962
      %v981 = vpack.c.bf16 %v967, %v965
      %v982 = vpack.c.bf16 %v968, %v966
      %984 = vset.pattern.permute.xlu0 2
      %985 = vperm.xlu0 %984, %v821
      %v986 = vpop.permute.xlu0 %985
      %989 = vset.pattern.permute.xlu0 2
      %990 = vperm.xlu0 %989, %v822
      %v991 = vpop.permute.xlu0 %990
      %994 = vset.pattern.permute.xlu0 2
      %995 = vperm.xlu0 %994, %v823
      %v996 = vpop.permute.xlu0 %995
      %999 = vset.pattern.permute.xlu0 2
      %1000 = vperm.xlu0 %999, %v824
      %v1001 = vpop.permute.xlu0 %1000
      %1004 = vset.pattern.permute.xlu0 2
      %1005 = vperm.xlu0 %1004, %v825
      %v1006 = vpop.permute.xlu0 %1005
      %1009 = vset.pattern.permute.xlu0 2
      %1010 = vperm.xlu0 %1009, %v826
      %v1011 = vpop.permute.xlu0 %1010
      %1014 = vset.pattern.permute.xlu0 2
      %1015 = vperm.xlu0 %1014, %v827
      %v1016 = vpop.permute.xlu0 %1015
      %1019 = vset.pattern.permute.xlu0 2
      %1020 = vperm.xlu0 %1019, %v828
      %v1021 = vpop.permute.xlu0 %1020
      %1024 = vset.pattern.permute.xlu0 2
      %1025 = vperm.xlu0 %1024, %v829
      %v1026 = vpop.permute.xlu0 %1025
      %1029 = vset.pattern.permute.xlu0 2
      %1030 = vperm.xlu0 %1029, %v830
      %v1031 = vpop.permute.xlu0 %1030
      %v1043 = vunpack.c.l.b16 %v969
      %v1044 = vunpack.c.l.b16 %v970
      %v1045 = vunpack.c.l.b16 %v971
      %v1046 = vunpack.c.l.b16 %v972
      %v1047 = vunpack.c.l.b16 %v973
      %v1048 = vunpack.c.l.b16 %v974
      %v1049 = vunpack.c.l.b16 %v975
      %v1050 = vunpack.c.l.b16 %v976
      %v1051 = vunpack.c.l.b16 %v977
      %v1052 = vunpack.c.l.b16 %v978
      %v1053 = vpack.c.b16 %v1044, %v1043
      %v1054 = vpack.c.b16 %v1046, %v1045
      %v1055 = vpack.c.b16 %v1048, %v1047
      %v1056 = vpack.c.b16 %v1050, %v1049
      %v1057 = vpack.c.b16 %v1052, %v1051
      %vm1058 = vcmask 261120
      %v1060 = vsel %vm1058, %v1053, 0
      %v1063 = vsel %vm1058, %v1054, 0
      %v1066 = vsel %vm1058, %v1055, 0
      %v1069 = vsel %vm1058, %v1056, 0
      %v1072 = vsel %vm1058, %v1057, 0
      %1074 = vmatprep.subr.bf16.mxu0 0
      %1075 = vmatpush1.bf16.msra.mxu0 0
      %1076 = vmatprep.subr.bf16.mxu0 0
      %1077 = vmatpush1.bf16.msra.mxu0 0
      %1078 = vmatprep.subr.bf16.mxu0 0
      %1079 = vmatpush1.bf16.msra.mxu0 0
      %1080 = vmatprep.subr.bf16.mxu0 0
      %1081 = vmatpush1.bf16.msra.mxu0 0
      %1082 = vmatprep.subr.bf16.mxu0 0
      %1083 = vmatpush1.bf16.msra.mxu0 0
      %1084 = vmatprep.subr.bf16.mxu0 0
      %1085 = vmatpush1.bf16.msra.mxu0 0
      %1086 = vmatprep.subr.bf16.mxu0 %v982
      %1087 = vmatpush1.bf16.msra.mxu0 %v981
      %1088 = vmatprep.subr.bf16.mxu0 %v980
      %1089 = vmatpush1.bf16.msra.mxu0 %v979
      %1090 = vmatprep.subr.bf16.mxu0 0
      %1091 = vmatpush2.bf16.msra.mxu0 0
      %1092 = vmatprep.subr.bf16.mxu0 0
      %1093 = vmatpush2.bf16.msra.mxu0 0
      %1094 = vmatprep.subr.bf16.mxu0 0
      %1095 = vmatpush2.bf16.msra.mxu0 0
      %1096 = vmatprep.subr.bf16.mxu0 0
      %1097 = vmatpush2.bf16.msra.mxu0 0
      %1098 = vmatprep.subr.bf16.mxu0 0
      %1099 = vmatpush2.bf16.msra.mxu0 0
      %1100 = vmatprep.subr.bf16.mxu0 0
      %1101 = vmatpush2.bf16.msra.mxu0 0
      %1102 = vmatprep.subr.bf16.mxu0 0
      %1103 = vmatpush2.bf16.msra.mxu0 0
      %1104 = vmatprep.subr.bf16.mxu0 0
      %1105 = vmatpush2.bf16.msra.mxu0 0
      %1106 = vmatprep.mubr.bf16.mxu0 0
      %1107 = vmatmul.mubr.bf16.gmra.mxu0 %v1060
      %v1108 = vpop.f32.mrf.mxu0
      %v1109 = vadd.f32 %v986, %v1108
      %v1110 = vpop.f32.mrf.mxu0
      %v1111 = vadd.f32 %v986, %v1110
      %v1112 = vpop.f32.mrf.mxu0
      %v1113 = vadd.f32 %v991, %v1112
      %v1114 = vpop.f32.mrf.mxu0
      %v1115 = vadd.f32 %v991, %v1114
      %1116 = vmatprep.mubr.bf16.mxu0 0
      %1117 = vmatmul.mubr.bf16.gmra.mxu0 %v1063
      %v1118 = vpop.f32.mrf.mxu0
      %v1119 = vadd.f32 %v996, %v1118
      %v1120 = vpop.f32.mrf.mxu0
      %v1121 = vadd.f32 %v996, %v1120
      %v1122 = vpop.f32.mrf.mxu0
      %v1123 = vadd.f32 %v1001, %v1122
      %v1124 = vpop.f32.mrf.mxu0
      %v1125 = vadd.f32 %v1001, %v1124
      %1126 = vmatprep.mubr.bf16.mxu0 0
      %1127 = vmatmul.mubr.bf16.gmra.mxu0 %v1066
      %v1128 = vpop.f32.mrf.mxu0
      %v1129 = vadd.f32 %v1006, %v1128
      %v1130 = vpop.f32.mrf.mxu0
      %v1131 = vadd.f32 %v1006, %v1130
      %v1132 = vpop.f32.mrf.mxu0
      %v1133 = vadd.f32 %v1011, %v1132
      %v1134 = vpop.f32.mrf.mxu0
      %v1135 = vadd.f32 %v1011, %v1134
      %1136 = vmatprep.mubr.bf16.mxu0 0
      %1137 = vmatmul.mubr.bf16.gmra.mxu0 %v1069
      %v1138 = vpop.f32.mrf.mxu0
      %v1139 = vadd.f32 %v1016, %v1138
      %v1140 = vpop.f32.mrf.mxu0
      %v1141 = vadd.f32 %v1016, %v1140
      %v1142 = vpop.f32.mrf.mxu0
      %v1143 = vadd.f32 %v1021, %v1142
      %v1144 = vpop.f32.mrf.mxu0
      %v1145 = vadd.f32 %v1021, %v1144
      %1146 = vmatprep.mubr.bf16.mxu0 0
      %1147 = vmatmul.mubr.bf16.gmra.mxu0 %v1072
      %v1148 = vpop.f32.mrf.mxu0
      %v1149 = vadd.f32 %v1026, %v1148
      %v1150 = vpop.f32.mrf.mxu0
      %v1151 = vadd.f32 %v1026, %v1150
      %v1152 = vpop.f32.mrf.mxu0
      %v1153 = vadd.f32 %v1031, %v1152
      %v1154 = vpop.f32.mrf.mxu0
      %v1155 = vadd.f32 %v1031, %v1154
      %1156 = vdwg.mxu0
      %vm1157 = vcmask 1040384
      %v1158 = vsel %vm1157, %v1133, -inf
      %v1159 = vsel %vm1157, %v1135, -inf
      %v1160 = vmax.f32 %v1158, %v1159
      %1161 = vmax.xlane.f32.xlu0 %v1160
      %v1162 = vpop.xlane.xlu0 %1161
      %v1163 = vrot.slane %v1162, 4
      %v1164 = vmax.f32 %v1162, %v1163
      %v1165 = vrot.slane %v1164, 2
      %v1166 = vmax.f32 %v1164, %v1165
      %v1167 = vrot.slane %v1166, 1
      %v1168 = vmax.f32 %v1166, %v1167
      %s1169 = vtos %v1168
      %v1170 = vstv %s1169
      %v1171 = vsub.f32 %v1133, %v1170
      %v1172 = vsub.f32 %v1135, %v1170
      %v1173 = vmul.f32 %v1171, 1.442695
      %v1174 = vpow.pop %v1173
      %v1175 = vmul.f32 %v1172, 1.442695
      %v1176 = vpow.pop %v1175
      %v1177 = vlaneseq
      %v1178 = vshrl.u32 %v1177, 7
      %v1179 = vsub.s32 0, %v1178
      %v1180 = vrot.slane %v1174, %v1179
      %v1181 = vlaneseq
      %v1182 = vshrl.u32 %v1181, 7
      %v1183 = vsub.s32 0, %v1182
      %v1184 = vrot.slane %v1176, %v1183
      %v1185 = vmul.f32 %v1109, %v1180
      %v1186 = vmul.f32 %v1111, %v1184
      %v1187 = vmul.f32 %v1113, %v1180
      %v1188 = vmul.f32 %v1115, %v1184
      %v1189 = vmul.f32 %v1119, %v1180
      %v1190 = vmul.f32 %v1121, %v1184
      %v1191 = vmul.f32 %v1123, %v1180
      %v1192 = vmul.f32 %v1125, %v1184
      %v1193 = vmul.f32 %v1129, %v1180
      %v1194 = vmul.f32 %v1131, %v1184
      %v1195 = vpack.c.bf16 %v1187, %v1185
      %v1196 = vpack.c.bf16 %v1188, %v1186
      %v1197 = vpack.c.bf16 %v1191, %v1189
      %v1198 = vpack.c.bf16 %v1192, %v1190
      %v1199 = vpack.c.bf16 %v1193, %v1193
      %v1200 = vpack.c.bf16 %v1194, %v1194
      %v1233 = vunpack.c.l.b16 %v789
      %v1234 = vunpack.c.l.b16 %v790
      %v1235 = vunpack.c.l.b16 %v791
      %v1236 = vunpack.c.l.b16 %v792
      %v1237 = vunpack.c.l.b16 %v793
      %v1238 = vunpack.c.l.b16 %v794
      %v1239 = vunpack.c.l.b16 %v795
      %v1240 = vunpack.c.l.b16 %v796
      %v1241 = vunpack.c.l.b16 %v797
      %v1242 = vunpack.c.l.b16 %v798
      %v1243 = vunpack.c.l.b16 %v799
      %v1244 = vunpack.c.l.b16 %v800
      %v1245 = vunpack.c.l.b16 %v801
      %v1246 = vunpack.c.l.b16 %v802
      %v1247 = vunpack.c.l.b16 %v803
      %v1248 = vunpack.c.l.b16 %v804
      %v1249 = vunpack.c.l.b16 %v805
      %v1250 = vunpack.c.l.b16 %v806
      %v1251 = vunpack.c.l.b16 %v807
      %v1252 = vunpack.c.l.b16 %v808
      %v1253 = vunpack.c.l.b16 %v809
      %v1254 = vunpack.c.l.b16 %v810
      %v1255 = vunpack.c.l.b16 %v811
      %v1256 = vunpack.c.l.b16 %v812
      %v1257 = vunpack.c.l.b16 %v813
      %v1258 = vunpack.c.l.b16 %v814
      %v1259 = vunpack.c.l.b16 %v815
      %v1260 = vunpack.c.l.b16 %v816
      %v1261 = vunpack.c.l.b16 %v817
      %v1262 = vunpack.c.l.b16 %v818
      %v1263 = vunpack.c.l.b16 %v819
      %v1264 = vunpack.c.l.b16 %v820
      %v1265 = vpack.c.b16 %v1234, %v1233
      %v1266 = vpack.c.b16 %v1236, %v1235
      %v1267 = vpack.c.b16 %v1238, %v1237
      %v1268 = vpack.c.b16 %v1240, %v1239
      %v1269 = vpack.c.b16 %v1242, %v1241
      %v1270 = vpack.c.b16 %v1244, %v1243
      %v1271 = vpack.c.b16 %v1246, %v1245
      %v1272 = vpack.c.b16 %v1248, %v1247
      %v1273 = vpack.c.b16 %v1250, %v1249
      %v1274 = vpack.c.b16 %v1252, %v1251
      %v1275 = vpack.c.b16 %v1254, %v1253
      %v1276 = vpack.c.b16 %v1256, %v1255
      %v1277 = vpack.c.b16 %v1258, %v1257
      %v1278 = vpack.c.b16 %v1260, %v1259
      %v1279 = vpack.c.b16 %v1262, %v1261
      %v1280 = vpack.c.b16 %v1264, %v1263
      %1297 = vmatprep.subr.bf16.mxu0 0
      %1298 = vmatpush1.bf16.msra.mxu0 %v1272
      %1299 = vmatprep.subr.bf16.mxu0 0
      %1300 = vmatpush1.bf16.msra.mxu0 %v1271
      %1301 = vmatprep.subr.bf16.mxu0 0
      %1302 = vmatpush1.bf16.msra.mxu0 %v1270
      %1303 = vmatprep.subr.bf16.mxu0 0
      %1304 = vmatpush1.bf16.msra.mxu0 %v1269
      %1305 = vmatprep.subr.bf16.mxu0 0
      %1306 = vmatpush1.bf16.msra.mxu0 %v1268
      %1307 = vmatprep.subr.bf16.mxu0 0
      %1308 = vmatpush1.bf16.msra.mxu0 %v1267
      %1309 = vmatprep.subr.bf16.mxu0 0
      %1310 = vmatpush1.bf16.msra.mxu0 %v1266
      %1311 = vmatprep.subr.bf16.mxu0 0
      %1312 = vmatpush1.bf16.msra.mxu0 %v1265
      %1313 = vmatprep.subr.bf16.mxu0 0
      %1314 = vmatpush2.bf16.msra.mxu0 %v1280
      %1315 = vmatprep.subr.bf16.mxu0 0
      %1316 = vmatpush2.bf16.msra.mxu0 %v1279
      %1317 = vmatprep.subr.bf16.mxu0 0
      %1318 = vmatpush2.bf16.msra.mxu0 %v1278
      %1319 = vmatprep.subr.bf16.mxu0 0
      %1320 = vmatpush2.bf16.msra.mxu0 %v1277
      %1321 = vmatprep.subr.bf16.mxu0 0
      %1322 = vmatpush2.bf16.msra.mxu0 %v1276
      %1323 = vmatprep.subr.bf16.mxu0 0
      %1324 = vmatpush2.bf16.msra.mxu0 %v1275
      %1325 = vmatprep.subr.bf16.mxu0 0
      %1326 = vmatpush2.bf16.msra.mxu0 %v1274
      %1327 = vmatprep.subr.bf16.mxu0 0
      %1328 = vmatpush2.bf16.msra.mxu0 %v1273
      %1329 = vmatprep.mubr.bf16.mxu0 %v1196
      %1330 = vmatmul.mubr.bf16.gmra.mxu0 %v1195
      %v1331 = vpop.f32.mrf.mxu0
      %v1332 = vadd.f32 0.0, %v1331
      %v1333 = vpop.f32.mrf.mxu0
      %v1334 = vpop.f32.mrf.mxu0
      %v1335 = vadd.f32 0.0, %v1334
      %v1336 = vpop.f32.mrf.mxu0
      %1337 = vmatprep.mubr.bf16.mxu0 %v1198
      %1338 = vmatmul.mubr.bf16.gmra.mxu0 %v1197
      %v1339 = vpop.f32.mrf.mxu0
      %v1340 = vadd.f32 0.0, %v1339
      %v1341 = vpop.f32.mrf.mxu0
      %v1342 = vpop.f32.mrf.mxu0
      %v1343 = vadd.f32 0.0, %v1342
      %v1344 = vpop.f32.mrf.mxu0
      %1345 = vmatprep.mubr.bf16.mxu0 %v1200
      %1346 = vmatmul.mubr.bf16.gmra.mxu0 %v1199
      %v1347 = vpop.f32.mrf.mxu0
      %v1348 = vadd.f32 0.0, %v1347
      %v1349 = vpop.f32.mrf.mxu0
      %v1350 = vpop.f32.mrf.mxu0
      %v1351 = vpop.f32.mrf.mxu0
      %1352 = vdwg.mxu0
      %v1353 = vmax.f32 %v1348, 1e-30
      %v1354 = vlaneseq
      %v1355 = vshrl.u32 %v1354, 7
      %v1356 = vsub.s32 0, %v1355
      %v1357 = vrot.slane %v1353, %v1356
      %v1358 = vrcp.pop %v1357
      %v1359 = vmul.f32 %v1332, %v1358
      %v1360 = vmul.f32 %v1335, %v1358
      %v1361 = vmul.f32 %v1340, %v1358
      %v1362 = vmul.f32 %v1343, %v1358
      %v1363 = vpack.c.bf16 %v1360, %v1359
      %v1364 = vpack.c.bf16 %v1362, %v1361
      %v1366 = vunpack.c.l.b16 %v788
      %v1367 = vunpack.c.h.b16 %v788
      %v1368 = vpack.c.b16 %v1366, %v1366
      %v1369 = vpack.c.b16 %v1367, %v1367
      %vm1370 = vcmask 64512
      %v1372 = vsel %vm1370, %v1363, 0
      %v1375 = vsel %vm1370, %v1364, 0
      %vm1377 = vcmask 1043456
      %v1379 = vsel %vm1377, %v1368, 0
      %v1382 = vsel %vm1377, %v1369, 0
      %1384 = vmatprep.subr.bf16.mxu0 0
      %1385 = vmatpush1.bf16.msra.mxu0 0
      %1386 = vmatprep.subr.bf16.mxu0 0
      %1387 = vmatpush1.bf16.msra.mxu0 0
      %1388 = vmatprep.subr.bf16.mxu0 0
      %1389 = vmatpush1.bf16.msra.mxu0 0
      %1390 = vmatprep.subr.bf16.mxu0 0
      %1391 = vmatpush1.bf16.msra.mxu0 0
      %1392 = vmatprep.subr.bf16.mxu0 0
      %1393 = vmatpush1.bf16.msra.mxu0 0
      %1394 = vmatprep.subr.bf16.mxu0 0
      %1395 = vmatpush1.bf16.msra.mxu0 0
      %1396 = vmatprep.subr.bf16.mxu0 0
      %1397 = vmatpush1.bf16.msra.mxu0 0
      %1398 = vmatprep.subr.bf16.mxu0 %v1382
      %1399 = vmatpush1.bf16.msra.mxu0 %v1379
      %1400 = vmatprep.subr.bf16.mxu0 0
      %1401 = vmatpush2.bf16.msra.mxu0 0
      %1402 = vmatprep.subr.bf16.mxu0 0
      %1403 = vmatpush2.bf16.msra.mxu0 0
      %1404 = vmatprep.subr.bf16.mxu0 0
      %1405 = vmatpush2.bf16.msra.mxu0 0
      %1406 = vmatprep.subr.bf16.mxu0 0
      %1407 = vmatpush2.bf16.msra.mxu0 0
      %1408 = vmatprep.subr.bf16.mxu0 0
      %1409 = vmatpush2.bf16.msra.mxu0 0
      %1410 = vmatprep.subr.bf16.mxu0 0
      %1411 = vmatpush2.bf16.msra.mxu0 0
      %1412 = vmatprep.subr.bf16.mxu0 0
      %1413 = vmatpush2.bf16.msra.mxu0 0
      %1414 = vmatprep.subr.bf16.mxu0 0
      %1415 = vmatpush2.bf16.msra.mxu0 0
      %1416 = vmatprep.mubr.bf16.mxu0 0
      %1417 = vmatmul.mubr.bf16.gmra.mxu0 %v1372
      %v1418 = vpop.f32.mrf.mxu0
      %v1419 = vadd.f32 0.0, %v1418
      %v1420 = vpop.f32.mrf.mxu0
      %v1421 = vadd.f32 0.0, %v1420
      %v1422 = vpop.f32.mrf.mxu0
      %v1423 = vadd.f32 0.0, %v1422
      %v1424 = vpop.f32.mrf.mxu0
      %v1425 = vadd.f32 0.0, %v1424
      %1426 = vmatprep.mubr.bf16.mxu0 0
      %1427 = vmatmul.mubr.bf16.gmra.mxu0 %v1375
      %v1428 = vpop.f32.mrf.mxu0
      %v1429 = vadd.f32 0.0, %v1428
      %v1430 = vpop.f32.mrf.mxu0
      %v1431 = vadd.f32 0.0, %v1430
      %v1432 = vpop.f32.mrf.mxu0
      %v1433 = vadd.f32 0.0, %v1432
      %v1434 = vpop.f32.mrf.mxu0
      %v1435 = vadd.f32 0.0, %v1434
      %1436 = vdwg.mxu0
      %v1437 = vmax.f32 %v1139, 0.0
      %v1438 = vmax.f32 %v1141, 0.0
      %v1439 = vmax.f32 %v1143, 0.0
      %v1440 = vmax.f32 %v1145, 0.0
      %v1441 = vmax.f32 %v1149, 0.0
      %v1442 = vmax.f32 %v1151, 0.0
      %v1443 = vmax.f32 %v1153, 0.0
      %v1444 = vmax.f32 %v1155, 0.0
      %v1445 = vmul.f32 %v1437, %v1419
      %v1446 = vmul.f32 %v1438, %v1421
      %v1447 = vmul.f32 %v1439, %v1423
      %v1448 = vmul.f32 %v1440, %v1425
      %v1449 = vmul.f32 %v1441, %v1429
      %v1450 = vmul.f32 %v1442, %v1431
      %v1451 = vmul.f32 %v1443, %v1433
      %v1452 = vmul.f32 %v1444, %v1435
      %v1453 = vld [vmem:[%s8] sm:$0xf]
      %v1454 = vld [vmem:[%s8 + $0x4] sm:$0xf]
      %v1455 = vld [vmem:[%s8 + $0x8] sm:$0xf]
      %v1456 = vld [vmem:[%s8 + $0xc] sm:$0xf]
      %v1457 = vpack.c.bf16 %v1447, %v1445
      %v1458 = vpack.c.bf16 %v1448, %v1446
      %v1459 = vpack.c.bf16 %v1451, %v1449
      %v1460 = vpack.c.bf16 %v1452, %v1450
      %1461 = vset.pattern.permute.xlu0 3
      %1462 = vperm.xlu0 %1461, %v821
      %v1463 = vpop.permute.xlu0 %1462
      %1465 = vset.pattern.permute.xlu0 3
      %1466 = vperm.xlu0 %1465, %v822
      %v1467 = vpop.permute.xlu0 %1466
      %1469 = vset.pattern.permute.xlu0 3
      %1470 = vperm.xlu0 %1469, %v823
      %v1471 = vpop.permute.xlu0 %1470
      %1473 = vset.pattern.permute.xlu0 3
      %1474 = vperm.xlu0 %1473, %v824
      %v1475 = vpop.permute.xlu0 %1474
      %v1481 = vunpack.c.l.b16 %v1453
      %v1482 = vunpack.c.l.b16 %v1454
      %v1483 = vunpack.c.l.b16 %v1455
      %v1484 = vunpack.c.l.b16 %v1456
      %v1485 = vpack.c.b16 %v1482, %v1481
      %v1486 = vpack.c.b16 %v1484, %v1483
      %v1488 = vsel %vm1058, %v1485, 0
      %v1491 = vsel %vm1058, %v1486, 0
      %1493 = vmatprep.subr.bf16.mxu0 0
      %1494 = vmatpush1.bf16.msra.mxu0 0
      %1495 = vmatprep.subr.bf16.mxu0 0
      %1496 = vmatpush1.bf16.msra.mxu0 0
      %1497 = vmatprep.subr.bf16.mxu0 0
      %1498 = vmatpush1.bf16.msra.mxu0 0
      %1499 = vmatprep.subr.bf16.mxu0 0
      %1500 = vmatpush1.bf16.msra.mxu0 0
      %1501 = vmatprep.subr.bf16.mxu0 0
      %1502 = vmatpush1.bf16.msra.mxu0 0
      %1503 = vmatprep.subr.bf16.mxu0 0
      %1504 = vmatpush1.bf16.msra.mxu0 0
      %1505 = vmatprep.subr.bf16.mxu0 %v1460
      %1506 = vmatpush1.bf16.msra.mxu0 %v1459
      %1507 = vmatprep.subr.bf16.mxu0 %v1458
      %1508 = vmatpush1.bf16.msra.mxu0 %v1457
      %1509 = vmatprep.subr.bf16.mxu0 0
      %1510 = vmatpush2.bf16.msra.mxu0 0
      %1511 = vmatprep.subr.bf16.mxu0 0
      %1512 = vmatpush2.bf16.msra.mxu0 0
      %1513 = vmatprep.subr.bf16.mxu0 0
      %1514 = vmatpush2.bf16.msra.mxu0 0
      %1515 = vmatprep.subr.bf16.mxu0 0
      %1516 = vmatpush2.bf16.msra.mxu0 0
      %1517 = vmatprep.subr.bf16.mxu0 0
      %1518 = vmatpush2.bf16.msra.mxu0 0
      %1519 = vmatprep.subr.bf16.mxu0 0
      %1520 = vmatpush2.bf16.msra.mxu0 0
      %1521 = vmatprep.subr.bf16.mxu0 0
      %1522 = vmatpush2.bf16.msra.mxu0 0
      %1523 = vmatprep.subr.bf16.mxu0 0
      %1524 = vmatpush2.bf16.msra.mxu0 0
      %1525 = vmatprep.mubr.bf16.mxu0 0
      %1526 = vmatmul.mubr.bf16.gmra.mxu0 %v1488
      %v1527 = vpop.f32.mrf.mxu0
      %v1528 = vadd.f32 %v1463, %v1527
      %v1529 = vpop.f32.mrf.mxu0
      %v1530 = vadd.f32 %v1463, %v1529
      %v1531 = vpop.f32.mrf.mxu0
      %v1532 = vadd.f32 %v1467, %v1531
      %v1533 = vpop.f32.mrf.mxu0
      %v1534 = vadd.f32 %v1467, %v1533
      %1535 = vmatprep.mubr.bf16.mxu0 0
      %1536 = vmatmul.mubr.bf16.gmra.mxu0 %v1491
      %v1537 = vpop.f32.mrf.mxu0
      %v1538 = vadd.f32 %v1471, %v1537
      %v1539 = vpop.f32.mrf.mxu0
      %v1540 = vadd.f32 %v1471, %v1539
      %v1541 = vpop.f32.mrf.mxu0
      %v1542 = vadd.f32 %v1475, %v1541
      %v1543 = vpop.f32.mrf.mxu0
      %v1544 = vadd.f32 %v1475, %v1543
      %1545 = vdwg.mxu0
      %v1546 = vadd.f32 %v770, %v1528
      %v1547 = vadd.f32 %v772, %v1530
      %v1548 = vadd.f32 %v774, %v1532
      %v1549 = vadd.f32 %v776, %v1534
      %v1550 = vadd.f32 %v780, %v1538
      %v1551 = vadd.f32 %v782, %v1540
      %v1552 = vadd.f32 %v784, %v1542
      %v1553 = vadd.f32 %v786, %v1544
      %v1554 = vadd.f32 %v1546, %v1547
      %v1555 = vadd.f32 %v1554, %v1548
      %v1556 = vadd.f32 %v1555, %v1549
      %v1557 = vadd.f32 %v1556, %v1550
      %v1558 = vadd.f32 %v1557, %v1551
      %v1559 = vadd.f32 %v1558, %v1552
      %v1560 = vadd.f32 %v1559, %v1553
      %1561 = vadd.xlane.f32.xlu0 %v1560
      %v1562 = vpop.xlane.xlu0 %1561
      %v1563 = vrot.slane %v1562, 4
      %v1564 = vadd.f32 %v1562, %v1563
      %v1565 = vrot.slane %v1564, 2
      %v1566 = vadd.f32 %v1564, %v1565
      %v1567 = vrot.slane %v1566, 1
      %v1568 = vadd.f32 %v1566, %v1567
      %s1569 = vtos %v1568
      %v1570 = vrcp.pop 8192.0
      %s1571 = vtos %v1570
      %s1572 = smul.f32 %s1569, %s1571
      %v1573 = vmul.f32 %v1546, %v1546
      %v1574 = vmul.f32 %v1547, %v1547
      %v1575 = vmul.f32 %v1548, %v1548
      %v1576 = vmul.f32 %v1549, %v1549
      %v1577 = vmul.f32 %v1550, %v1550
      %v1578 = vmul.f32 %v1551, %v1551
      %v1579 = vmul.f32 %v1552, %v1552
      %v1580 = vmul.f32 %v1553, %v1553
      %v1581 = vadd.f32 %v1573, %v1574
      %v1582 = vadd.f32 %v1581, %v1575
      %v1583 = vadd.f32 %v1582, %v1576
      %v1584 = vadd.f32 %v1583, %v1577
      %v1585 = vadd.f32 %v1584, %v1578
      %v1586 = vadd.f32 %v1585, %v1579
      %v1587 = vadd.f32 %v1586, %v1580
      %1588 = vadd.xlane.f32.xlu0 %v1587
      %v1589 = vpop.xlane.xlu0 %1588
      %v1590 = vrot.slane %v1589, 4
      %v1591 = vadd.f32 %v1589, %v1590
      %v1592 = vrot.slane %v1591, 2
      %v1593 = vadd.f32 %v1591, %v1592
      %v1594 = vrot.slane %v1593, 1
      %v1595 = vadd.f32 %v1593, %v1594
      %s1596 = vtos %v1595
      %v1597 = vrcp.pop 8192.0
      %s1598 = vtos %v1597
      %s1599 = smul.f32 %s1596, %s1598
      %s1600 = smul.f32 %s1572, %s1572
      %s1601 = ssub.f32 %s1599, %s1600
      %s1602 = sadd.f32 %s1601, 1e-05
      %v1603 = vstv %s1602
      %v1604 = vrsqrt.pop %v1603
      %s1605 = vtos %v1604
      %v1606 = vstv %s1605
      %v1607 = vmul.f32 %v821, %v1606
      %v1608 = vmul.f32 %v822, %v1606
      %v1609 = vmul.f32 %v823, %v1606
      %v1610 = vmul.f32 %v824, %v1606
      %v1611 = vstv %s1572
      %v1612 = vmul.f32 %v1611, %v1607
      %v1613 = vmul.f32 %v1611, %v1608
      %v1614 = vmul.f32 %v1611, %v1609
      %v1615 = vmul.f32 %v1611, %v1610
      %1620 = vrot.lane.b32.xlu0 %v1612, 1
      %v1621 = vpop.permute.xlu0 %1620
      %1622 = vrot.lane.b32.xlu0 %v1613, 1
      %v1623 = vpop.permute.xlu0 %1622
      %1624 = vrot.lane.b32.xlu0 %v1614, 1
      %v1625 = vpop.permute.xlu0 %1624
      %1626 = vrot.lane.b32.xlu0 %v1615, 1
      %v1627 = vpop.permute.xlu0 %1626
      %v1632 = vsub.f32 %v821, %v1621
      %v1633 = vsub.f32 %v822, %v1623
      %v1634 = vsub.f32 %v823, %v1625
      %v1635 = vsub.f32 %v824, %v1627
      %1637 = vset.pattern.permute.xlu0 4
      %1638 = vperm.xlu0 %1637, %v1607
      %v1639 = vpop.permute.xlu0 %1638
      %1642 = vset.pattern.permute.xlu0 4
      %1643 = vperm.xlu0 %1642, %v1608
      %v1644 = vpop.permute.xlu0 %1643
      %1647 = vset.pattern.permute.xlu0 4
      %1648 = vperm.xlu0 %1647, %v1609
      %v1649 = vpop.permute.xlu0 %1648
      %1652 = vset.pattern.permute.xlu0 4
      %1653 = vperm.xlu0 %1652, %v1610
      %v1654 = vpop.permute.xlu0 %1653
      %v1656 = vmul.f32 %v1546, %v1639
      %v1657 = vmul.f32 %v1547, %v1639
      %v1658 = vmul.f32 %v1548, %v1644
      %v1659 = vmul.f32 %v1549, %v1644
      %v1660 = vmul.f32 %v1550, %v1649
      %v1661 = vmul.f32 %v1551, %v1649
      %v1662 = vmul.f32 %v1552, %v1654
      %v1663 = vmul.f32 %v1553, %v1654
      %1665 = vset.pattern.permute.xlu0 5
      %1666 = vperm.xlu0 %1665, %v1632
      %v1667 = vpop.permute.xlu0 %1666
      %1670 = vset.pattern.permute.xlu0 5
      %1671 = vperm.xlu0 %1670, %v1633
      %v1672 = vpop.permute.xlu0 %1671
      %1675 = vset.pattern.permute.xlu0 5
      %1676 = vperm.xlu0 %1675, %v1634
      %v1677 = vpop.permute.xlu0 %1676
      %1680 = vset.pattern.permute.xlu0 5
      %1681 = vperm.xlu0 %1680, %v1635
      %v1682 = vpop.permute.xlu0 %1681
      %v1684 = vadd.f32 %v1656, %v1667
      %v1685 = vadd.f32 %v1657, %v1667
      %v1686 = vadd.f32 %v1658, %v1672
      %v1687 = vadd.f32 %v1659, %v1672
      %v1688 = vadd.f32 %v1660, %v1677
      %v1689 = vadd.f32 %v1661, %v1677
      %v1690 = vadd.f32 %v1662, %v1682
      %v1691 = vadd.f32 %v1663, %v1682
      %v1692 = vld [vmem:[%s9] sm:$0xf]
      %v1693 = vld [vmem:[%s9 + $0x4] sm:$0xf]
      %v1694 = vld [vmem:[%s9 + $0x8] sm:$0xf]
      %v1695 = vld [vmem:[%s9 + $0xc] sm:$0xf]
      %v1696 = vld [vmem:[%s9 + $0x10] sm:$0xf]
      %v1697 = vld [vmem:[%s9 + $0x14] sm:$0xf]
      %v1698 = vld [vmem:[%s9 + $0x18] sm:$0xf]
      %v1699 = vld [vmem:[%s9 + $0x1c] sm:$0xf]
      %v1700 = vpack.c.bf16 %v1686, %v1684
      %v1701 = vpack.c.bf16 %v1687, %v1685
      %v1702 = vpack.c.bf16 %v1690, %v1688
      %v1703 = vpack.c.bf16 %v1691, %v1689
      %1704 = vset.pattern.permute.xlu0 6
      %1705 = vperm.xlu0 %1704, %v821
      %v1706 = vpop.permute.xlu0 %1705
      %1708 = vset.pattern.permute.xlu0 6
      %1709 = vperm.xlu0 %1708, %v822
      %v1710 = vpop.permute.xlu0 %1709
      %1712 = vset.pattern.permute.xlu0 6
      %1713 = vperm.xlu0 %1712, %v823
      %v1714 = vpop.permute.xlu0 %1713
      %1716 = vset.pattern.permute.xlu0 6
      %1717 = vperm.xlu0 %1716, %v824
      %v1718 = vpop.permute.xlu0 %1717
      %1720 = vset.pattern.permute.xlu0 6
      %1721 = vperm.xlu0 %1720, %v825
      %v1722 = vpop.permute.xlu0 %1721
      %1724 = vset.pattern.permute.xlu0 6
      %1725 = vperm.xlu0 %1724, %v826
      %v1726 = vpop.permute.xlu0 %1725
      %1728 = vset.pattern.permute.xlu0 6
      %1729 = vperm.xlu0 %1728, %v827
      %v1730 = vpop.permute.xlu0 %1729
      %1732 = vset.pattern.permute.xlu0 6
      %1733 = vperm.xlu0 %1732, %v828
      %v1734 = vpop.permute.xlu0 %1733
      %v1744 = vunpack.c.l.b16 %v1692
      %v1745 = vunpack.c.l.b16 %v1693
      %v1746 = vunpack.c.l.b16 %v1694
      %v1747 = vunpack.c.l.b16 %v1695
      %v1748 = vunpack.c.l.b16 %v1696
      %v1749 = vunpack.c.l.b16 %v1697
      %v1750 = vunpack.c.l.b16 %v1698
      %v1751 = vunpack.c.l.b16 %v1699
      %v1752 = vpack.c.b16 %v1745, %v1744
      %v1753 = vpack.c.b16 %v1747, %v1746
      %v1754 = vpack.c.b16 %v1749, %v1748
      %v1755 = vpack.c.b16 %v1751, %v1750
      %v1757 = vsel %vm1058, %v1752, 0
      %v1760 = vsel %vm1058, %v1753, 0
      %v1763 = vsel %vm1058, %v1754, 0
      %v1766 = vsel %vm1058, %v1755, 0
      %1768 = vmatprep.subr.bf16.mxu0 0
      %1769 = vmatpush1.bf16.msra.mxu0 0
      %1770 = vmatprep.subr.bf16.mxu0 0
      %1771 = vmatpush1.bf16.msra.mxu0 0
      %1772 = vmatprep.subr.bf16.mxu0 0
      %1773 = vmatpush1.bf16.msra.mxu0 0
      %1774 = vmatprep.subr.bf16.mxu0 0
      %1775 = vmatpush1.bf16.msra.mxu0 0
      %1776 = vmatprep.subr.bf16.mxu0 0
      %1777 = vmatpush1.bf16.msra.mxu0 0
      %1778 = vmatprep.subr.bf16.mxu0 0
      %1779 = vmatpush1.bf16.msra.mxu0 0
      %1780 = vmatprep.subr.bf16.mxu0 %v1703
      %1781 = vmatpush1.bf16.msra.mxu0 %v1702
      %1782 = vmatprep.subr.bf16.mxu0 %v1701
      %1783 = vmatpush1.bf16.msra.mxu0 %v1700
      %1784 = vmatprep.subr.bf16.mxu0 0
      %1785 = vmatpush2.bf16.msra.mxu0 0
      %1786 = vmatprep.subr.bf16.mxu0 0
      %1787 = vmatpush2.bf16.msra.mxu0 0
      %1788 = vmatprep.subr.bf16.mxu0 0
      %1789 = vmatpush2.bf16.msra.mxu0 0
      %1790 = vmatprep.subr.bf16.mxu0 0
      %1791 = vmatpush2.bf16.msra.mxu0 0
      %1792 = vmatprep.subr.bf16.mxu0 0
      %1793 = vmatpush2.bf16.msra.mxu0 0
      %1794 = vmatprep.subr.bf16.mxu0 0
      %1795 = vmatpush2.bf16.msra.mxu0 0
      %1796 = vmatprep.subr.bf16.mxu0 0
      %1797 = vmatpush2.bf16.msra.mxu0 0
      %1798 = vmatprep.subr.bf16.mxu0 0
      %1799 = vmatpush2.bf16.msra.mxu0 0
      %1800 = vmatprep.mubr.bf16.mxu0 0
      %1801 = vmatmul.mubr.bf16.gmra.mxu0 %v1757
      %v1802 = vpop.f32.mrf.mxu0
      %v1803 = vadd.f32 %v1706, %v1802
      %v1804 = vpop.f32.mrf.mxu0
      %v1805 = vadd.f32 %v1706, %v1804
      %v1806 = vpop.f32.mrf.mxu0
      %v1807 = vadd.f32 %v1710, %v1806
      %v1808 = vpop.f32.mrf.mxu0
      %v1809 = vadd.f32 %v1710, %v1808
      %1810 = vmatprep.mubr.bf16.mxu0 0
      %1811 = vmatmul.mubr.bf16.gmra.mxu0 %v1760
      %v1812 = vpop.f32.mrf.mxu0
      %v1813 = vadd.f32 %v1714, %v1812
      %v1814 = vpop.f32.mrf.mxu0
      %v1815 = vadd.f32 %v1714, %v1814
      %v1816 = vpop.f32.mrf.mxu0
      %v1817 = vadd.f32 %v1718, %v1816
      %v1818 = vpop.f32.mrf.mxu0
      %v1819 = vadd.f32 %v1718, %v1818
      %1820 = vmatprep.mubr.bf16.mxu0 0
      %1821 = vmatmul.mubr.bf16.gmra.mxu0 %v1763
      %v1822 = vpop.f32.mrf.mxu0
      %v1823 = vadd.f32 %v1722, %v1822
      %v1824 = vpop.f32.mrf.mxu0
      %v1825 = vadd.f32 %v1722, %v1824
      %v1826 = vpop.f32.mrf.mxu0
      %v1827 = vadd.f32 %v1726, %v1826
      %v1828 = vpop.f32.mrf.mxu0
      %v1829 = vadd.f32 %v1726, %v1828
      %1830 = vmatprep.mubr.bf16.mxu0 0
      %1831 = vmatmul.mubr.bf16.gmra.mxu0 %v1766
      %v1832 = vpop.f32.mrf.mxu0
      %v1833 = vadd.f32 %v1730, %v1832
      %v1834 = vpop.f32.mrf.mxu0
      %v1835 = vadd.f32 %v1730, %v1834
      %v1836 = vpop.f32.mrf.mxu0
      %v1837 = vadd.f32 %v1734, %v1836
      %v1838 = vpop.f32.mrf.mxu0
      %v1839 = vadd.f32 %v1734, %v1838
      %1840 = vdwg.mxu0
      %v1841 = vxor.u32 %v1803, 2147483648
      %v1842 = vxor.u32 %v1805, 2147483648
      %v1843 = vxor.u32 %v1807, 2147483648
      %v1844 = vxor.u32 %v1809, 2147483648
      %v1845 = vxor.u32 %v1813, 2147483648
      %v1846 = vxor.u32 %v1815, 2147483648
      %v1847 = vxor.u32 %v1817, 2147483648
      %v1848 = vxor.u32 %v1819, 2147483648
      %v1849 = vxor.u32 %v1823, 2147483648
      %v1850 = vxor.u32 %v1825, 2147483648
      %v1851 = vxor.u32 %v1827, 2147483648
      %v1852 = vxor.u32 %v1829, 2147483648
      %v1853 = vxor.u32 %v1833, 2147483648
      %v1854 = vxor.u32 %v1835, 2147483648
      %v1855 = vxor.u32 %v1837, 2147483648
      %v1856 = vxor.u32 %v1839, 2147483648
      %v1857 = vmul.f32 %v1841, 1.442695
      %v1858 = vpow.pop %v1857
      %v1859 = vmul.f32 %v1842, 1.442695
      %v1860 = vpow.pop %v1859
      %v1861 = vmul.f32 %v1843, 1.442695
      %v1862 = vpow.pop %v1861
      %v1863 = vmul.f32 %v1844, 1.442695
      %v1864 = vpow.pop %v1863
      %v1865 = vmul.f32 %v1845, 1.442695
      %v1866 = vpow.pop %v1865
      %v1867 = vmul.f32 %v1846, 1.442695
      %v1868 = vpow.pop %v1867
      %v1869 = vmul.f32 %v1847, 1.442695
      %v1870 = vpow.pop %v1869
      %v1871 = vmul.f32 %v1848, 1.442695
      %v1872 = vpow.pop %v1871
      %v1873 = vmul.f32 %v1849, 1.442695
      %v1874 = vpow.pop %v1873
      %v1875 = vmul.f32 %v1850, 1.442695
      %v1876 = vpow.pop %v1875
      %v1877 = vmul.f32 %v1851, 1.442695
      %v1878 = vpow.pop %v1877
      %v1879 = vmul.f32 %v1852, 1.442695
      %v1880 = vpow.pop %v1879
      %v1881 = vmul.f32 %v1853, 1.442695
      %v1882 = vpow.pop %v1881
      %v1883 = vmul.f32 %v1854, 1.442695
      %v1884 = vpow.pop %v1883
      %v1885 = vmul.f32 %v1855, 1.442695
      %v1886 = vpow.pop %v1885
      %v1887 = vmul.f32 %v1856, 1.442695
      %v1888 = vpow.pop %v1887
      %v1889 = vadd.f32 %v1858, 1.0
      %v1890 = vadd.f32 %v1860, 1.0
      %v1891 = vadd.f32 %v1862, 1.0
      %v1892 = vadd.f32 %v1864, 1.0
      %v1893 = vadd.f32 %v1866, 1.0
      %v1894 = vadd.f32 %v1868, 1.0
      %v1895 = vadd.f32 %v1870, 1.0
      %v1896 = vadd.f32 %v1872, 1.0
      %v1897 = vadd.f32 %v1874, 1.0
      %v1898 = vadd.f32 %v1876, 1.0
      %v1899 = vadd.f32 %v1878, 1.0
      %v1900 = vadd.f32 %v1880, 1.0
      %v1901 = vadd.f32 %v1882, 1.0
      %v1902 = vadd.f32 %v1884, 1.0
      %v1903 = vadd.f32 %v1886, 1.0
      %v1904 = vadd.f32 %v1888, 1.0
      %v1905 = vrcp.pop %v1889
      %v1906 = vmul.f32 1.0, %v1905
      %v1907 = vrcp.pop %v1890
      %v1908 = vmul.f32 1.0, %v1907
      %v1909 = vrcp.pop %v1891
      %v1910 = vmul.f32 1.0, %v1909
      %v1911 = vrcp.pop %v1892
      %v1912 = vmul.f32 1.0, %v1911
      %v1913 = vrcp.pop %v1893
      %v1914 = vmul.f32 1.0, %v1913
      %v1915 = vrcp.pop %v1894
      %v1916 = vmul.f32 1.0, %v1915
      %v1917 = vrcp.pop %v1895
      %v1918 = vmul.f32 1.0, %v1917
      %v1919 = vrcp.pop %v1896
      %v1920 = vmul.f32 1.0, %v1919
      %v1921 = vrcp.pop %v1897
      %v1922 = vmul.f32 1.0, %v1921
      %v1923 = vrcp.pop %v1898
      %v1924 = vmul.f32 1.0, %v1923
      %v1925 = vrcp.pop %v1899
      %v1926 = vmul.f32 1.0, %v1925
      %v1927 = vrcp.pop %v1900
      %v1928 = vmul.f32 1.0, %v1927
      %v1929 = vrcp.pop %v1901
      %v1930 = vmul.f32 1.0, %v1929
      %v1931 = vrcp.pop %v1902
      %v1932 = vmul.f32 1.0, %v1931
      %v1933 = vrcp.pop %v1903
      %v1934 = vmul.f32 1.0, %v1933
      %v1935 = vrcp.pop %v1904
      %v1936 = vmul.f32 1.0, %v1935
      %v1937 = vmul.f32 %v1803, %v1906
      %v1938 = vmul.f32 %v1805, %v1908
      %v1939 = vmul.f32 %v1807, %v1910
      %v1940 = vmul.f32 %v1809, %v1912
      %v1941 = vmul.f32 %v1813, %v1914
      %v1942 = vmul.f32 %v1815, %v1916
      %v1943 = vmul.f32 %v1817, %v1918
      %v1944 = vmul.f32 %v1819, %v1920
      %v1945 = vmul.f32 %v1823, %v1922
      %v1946 = vmul.f32 %v1825, %v1924
      %v1947 = vmul.f32 %v1827, %v1926
      %v1948 = vmul.f32 %v1829, %v1928
      %v1949 = vmul.f32 %v1833, %v1930
      %v1950 = vmul.f32 %v1835, %v1932
      %v1951 = vmul.f32 %v1837, %v1934
      %v1952 = vmul.f32 %v1839, %v1936
      %v1953 = vld [vmem:[%s10] sm:$0xf]
      %v1954 = vld [vmem:[%s10 + $0x4] sm:$0xf]
      %v1955 = vld [vmem:[%s10 + $0x8] sm:$0xf]
      %v1956 = vld [vmem:[%s10 + $0xc] sm:$0xf]
      %v1957 = vpack.c.bf16 %v1939, %v1937
      %v1958 = vpack.c.bf16 %v1940, %v1938
      %v1959 = vpack.c.bf16 %v1943, %v1941
      %v1960 = vpack.c.bf16 %v1944, %v1942
      %v1961 = vpack.c.bf16 %v1947, %v1945
      %v1962 = vpack.c.bf16 %v1948, %v1946
      %v1963 = vpack.c.bf16 %v1951, %v1949
      %v1964 = vpack.c.bf16 %v1952, %v1950
      %1965 = vset.pattern.permute.xlu0 7
      %1966 = vperm.xlu0 %1965, %v821
      %v1967 = vpop.permute.xlu0 %1966
      %1969 = vset.pattern.permute.xlu0 7
      %1970 = vperm.xlu0 %1969, %v822
      %v1971 = vpop.permute.xlu0 %1970
      %1973 = vset.pattern.permute.xlu0 7
      %1974 = vperm.xlu0 %1973, %v823
      %v1975 = vpop.permute.xlu0 %1974
      %1977 = vset.pattern.permute.xlu0 7
      %1978 = vperm.xlu0 %1977, %v824
      %v1979 = vpop.permute.xlu0 %1978
      %v1985 = vunpack.c.l.b16 %v1953
      %v1986 = vunpack.c.l.b16 %v1954
      %v1987 = vunpack.c.l.b16 %v1955
      %v1988 = vunpack.c.l.b16 %v1956
      %v1989 = vpack.c.b16 %v1986, %v1985
      %v1990 = vpack.c.b16 %v1988, %v1987
      %vm1991 = vcmask 523264
      %v1993 = vsel %vm1991, %v1989, 0
      %v1996 = vsel %vm1991, %v1990, 0
      %1998 = vmatprep.subr.bf16.mxu0 0
      %1999 = vmatpush1.bf16.msra.mxu0 0
      %2000 = vmatprep.subr.bf16.mxu0 0
      %2001 = vmatpush1.bf16.msra.mxu0 0
      %2002 = vmatprep.subr.bf16.mxu0 0
      %2003 = vmatpush1.bf16.msra.mxu0 0
      %2004 = vmatprep.subr.bf16.mxu0 0
      %2005 = vmatpush1.bf16.msra.mxu0 0
      %2006 = vmatprep.subr.bf16.mxu0 %v1964
      %2007 = vmatpush1.bf16.msra.mxu0 %v1963
      %2008 = vmatprep.subr.bf16.mxu0 %v1962
      %2009 = vmatpush1.bf16.msra.mxu0 %v1961
      %2010 = vmatprep.subr.bf16.mxu0 %v1960
      %2011 = vmatpush1.bf16.msra.mxu0 %v1959
      %2012 = vmatprep.subr.bf16.mxu0 %v1958
      %2013 = vmatpush1.bf16.msra.mxu0 %v1957
      %2014 = vmatprep.subr.bf16.mxu0 0
      %2015 = vmatpush2.bf16.msra.mxu0 0
      %2016 = vmatprep.subr.bf16.mxu0 0
      %2017 = vmatpush2.bf16.msra.mxu0 0
      %2018 = vmatprep.subr.bf16.mxu0 0
      %2019 = vmatpush2.bf16.msra.mxu0 0
      %2020 = vmatprep.subr.bf16.mxu0 0
      %2021 = vmatpush2.bf16.msra.mxu0 0
      %2022 = vmatprep.subr.bf16.mxu0 0
      %2023 = vmatpush2.bf16.msra.mxu0 0
      %2024 = vmatprep.subr.bf16.mxu0 0
      %2025 = vmatpush2.bf16.msra.mxu0 0
      %2026 = vmatprep.subr.bf16.mxu0 0
      %2027 = vmatpush2.bf16.msra.mxu0 0
      %2028 = vmatprep.subr.bf16.mxu0 0
      %2029 = vmatpush2.bf16.msra.mxu0 0
      %2030 = vmatprep.mubr.bf16.mxu0 0
      %2031 = vmatmul.mubr.bf16.gmra.mxu0 %v1993
      %v2032 = vpop.f32.mrf.mxu0
      %v2033 = vadd.f32 %v1967, %v2032
      %v2034 = vpop.f32.mrf.mxu0
      %v2035 = vadd.f32 %v1967, %v2034
      %v2036 = vpop.f32.mrf.mxu0
      %v2037 = vadd.f32 %v1971, %v2036
      %v2038 = vpop.f32.mrf.mxu0
      %v2039 = vadd.f32 %v1971, %v2038
      %2040 = vmatprep.mubr.bf16.mxu0 0
      %2041 = vmatmul.mubr.bf16.gmra.mxu0 %v1996
      %v2042 = vpop.f32.mrf.mxu0
      %v2043 = vadd.f32 %v1975, %v2042
      %v2044 = vpop.f32.mrf.mxu0
      %v2045 = vadd.f32 %v1975, %v2044
      %v2046 = vpop.f32.mrf.mxu0
      %v2047 = vadd.f32 %v1979, %v2046
      %v2048 = vpop.f32.mrf.mxu0
      %v2049 = vadd.f32 %v1979, %v2048
      %2050 = vdwg.mxu0
      %v2051 = vadd.f32 %v1546, %v2033
      %v2052 = vadd.f32 %v1547, %v2035
      %v2053 = vadd.f32 %v1548, %v2037
      %v2054 = vadd.f32 %v1549, %v2039
      %v2055 = vadd.f32 %v1550, %v2043
      %v2056 = vadd.f32 %v1551, %v2045
      %v2057 = vadd.f32 %v1552, %v2047
      %v2058 = vadd.f32 %v1553, %v2049
      %s2059 = scalar_lea.vmem %s6, 80
      %v2060 = vld [vmem:[%s2059] sm:$0xff]
      %v2061 = vld [vmem:[%s2059 + $0x8] sm:$0xff]
      %v2062 = vld [vmem:[%s2059 + $0x10] sm:$0xff]
      %v2063 = vld [vmem:[%s2059 + $0x18] sm:$0xff]
      %v2064 = vld [vmem:[%s2059 + $0x20] sm:$0xff]
      %v2065 = vld [vmem:[%s2059 + $0x28] sm:$0xff]
      %v2066 = vld [vmem:[%s2059 + $0x30] sm:$0xff]
      %v2067 = vld [vmem:[%s2059 + $0x38] sm:$0xff]
      %v2068 = vld [vmem:[%s2059 + $0x40] sm:$0xff]
      %v2069 = vld [vmem:[%s2059 + $0x48] sm:$0xff]
      %v2070 = vadd.f32 %v2051, %v2052
      %v2071 = vadd.f32 %v2070, %v2053
      %v2072 = vadd.f32 %v2071, %v2054
      %v2073 = vadd.f32 %v2072, %v2055
      %v2074 = vadd.f32 %v2073, %v2056
      %v2075 = vadd.f32 %v2074, %v2057
      %v2076 = vadd.f32 %v2075, %v2058
      %2077 = vadd.xlane.f32.xlu0 %v2076
      %v2078 = vpop.xlane.xlu0 %2077
      %v2079 = vrot.slane %v2078, 4
      %v2080 = vadd.f32 %v2078, %v2079
      %v2081 = vrot.slane %v2080, 2
      %v2082 = vadd.f32 %v2080, %v2081
      %v2083 = vrot.slane %v2082, 1
      %v2084 = vadd.f32 %v2082, %v2083
      %s2085 = vtos %v2084
      %v2086 = vrcp.pop 8192.0
      %s2087 = vtos %v2086
      %s2088 = smul.f32 %s2085, %s2087
      %v2089 = vmul.f32 %v2051, %v2051
      %v2090 = vmul.f32 %v2052, %v2052
      %v2091 = vmul.f32 %v2053, %v2053
      %v2092 = vmul.f32 %v2054, %v2054
      %v2093 = vmul.f32 %v2055, %v2055
      %v2094 = vmul.f32 %v2056, %v2056
      %v2095 = vmul.f32 %v2057, %v2057
      %v2096 = vmul.f32 %v2058, %v2058
      %v2097 = vadd.f32 %v2089, %v2090
      %v2098 = vadd.f32 %v2097, %v2091
      %v2099 = vadd.f32 %v2098, %v2092
      %v2100 = vadd.f32 %v2099, %v2093
      %v2101 = vadd.f32 %v2100, %v2094
      %v2102 = vadd.f32 %v2101, %v2095
      %v2103 = vadd.f32 %v2102, %v2096
      %2104 = vadd.xlane.f32.xlu0 %v2103
      %v2105 = vpop.xlane.xlu0 %2104
      %v2106 = vrot.slane %v2105, 4
      %v2107 = vadd.f32 %v2105, %v2106
      %v2108 = vrot.slane %v2107, 2
      %v2109 = vadd.f32 %v2107, %v2108
      %v2110 = vrot.slane %v2109, 1
      %v2111 = vadd.f32 %v2109, %v2110
      %s2112 = vtos %v2111
      %v2113 = vrcp.pop 8192.0
      %s2114 = vtos %v2113
      %s2115 = smul.f32 %s2112, %s2114
      %s2116 = smul.f32 %s2088, %s2088
      %s2117 = ssub.f32 %s2115, %s2116
      %s2118 = sadd.f32 %s2117, 1e-05
      %v2119 = vstv %s2118
      %v2120 = vrsqrt.pop %v2119
      %s2121 = vtos %v2120
      %v2122 = vstv %s2121
      %v2123 = vmul.f32 %v2060, %v2122
      %v2124 = vmul.f32 %v2061, %v2122
      %v2125 = vmul.f32 %v2062, %v2122
      %v2126 = vmul.f32 %v2063, %v2122
      %v2127 = vstv %s2088
      %v2128 = vmul.f32 %v2127, %v2123
      %v2129 = vmul.f32 %v2127, %v2124
      %v2130 = vmul.f32 %v2127, %v2125
      %v2131 = vmul.f32 %v2127, %v2126
      %2136 = vrot.lane.b32.xlu0 %v2128, 1
      %v2137 = vpop.permute.xlu0 %2136
      %2138 = vrot.lane.b32.xlu0 %v2129, 1
      %v2139 = vpop.permute.xlu0 %2138
      %2140 = vrot.lane.b32.xlu0 %v2130, 1
      %v2141 = vpop.permute.xlu0 %2140
      %2142 = vrot.lane.b32.xlu0 %v2131, 1
      %v2143 = vpop.permute.xlu0 %2142
      %v2148 = vsub.f32 %v2060, %v2137
      %v2149 = vsub.f32 %v2061, %v2139
      %v2150 = vsub.f32 %v2062, %v2141
      %v2151 = vsub.f32 %v2063, %v2143
      %2153 = vset.pattern.permute.xlu0 0
      %2154 = vperm.xlu0 %2153, %v2123
      %v2155 = vpop.permute.xlu0 %2154
      %2158 = vset.pattern.permute.xlu0 0
      %2159 = vperm.xlu0 %2158, %v2124
      %v2160 = vpop.permute.xlu0 %2159
      %2163 = vset.pattern.permute.xlu0 0
      %2164 = vperm.xlu0 %2163, %v2125
      %v2165 = vpop.permute.xlu0 %2164
      %2168 = vset.pattern.permute.xlu0 0
      %2169 = vperm.xlu0 %2168, %v2126
      %v2170 = vpop.permute.xlu0 %2169
      %v2172 = vmul.f32 %v2051, %v2155
      %v2173 = vmul.f32 %v2052, %v2155
      %v2174 = vmul.f32 %v2053, %v2160
      %v2175 = vmul.f32 %v2054, %v2160
      %v2176 = vmul.f32 %v2055, %v2165
      %v2177 = vmul.f32 %v2056, %v2165
      %v2178 = vmul.f32 %v2057, %v2170
      %v2179 = vmul.f32 %v2058, %v2170
      %2181 = vset.pattern.permute.xlu0 1
      %2182 = vperm.xlu0 %2181, %v2148
      %v2183 = vpop.permute.xlu0 %2182
      %2186 = vset.pattern.permute.xlu0 1
      %2187 = vperm.xlu0 %2186, %v2149
      %v2188 = vpop.permute.xlu0 %2187
      %2191 = vset.pattern.permute.xlu0 1
      %2192 = vperm.xlu0 %2191, %v2150
      %v2193 = vpop.permute.xlu0 %2192
      %2196 = vset.pattern.permute.xlu0 1
      %2197 = vperm.xlu0 %2196, %v2151
      %v2198 = vpop.permute.xlu0 %2197
      %v2200 = vadd.f32 %v2172, %v2183
      %v2201 = vadd.f32 %v2173, %v2183
      %v2202 = vadd.f32 %v2174, %v2188
      %v2203 = vadd.f32 %v2175, %v2188
      %v2204 = vadd.f32 %v2176, %v2193
      %v2205 = vadd.f32 %v2177, %v2193
      %v2206 = vadd.f32 %v2178, %v2198
      %v2207 = vadd.f32 %v2179, %v2198
      %s2208 = scalar_lea.vmem %s7, 40
      %v2209 = vld [vmem:[%s2208] sm:$0xf]
      %v2210 = vld [vmem:[%s2208 + $0x4] sm:$0xf]
      %v2211 = vld [vmem:[%s2208 + $0x8] sm:$0xf]
      %v2212 = vld [vmem:[%s2208 + $0xc] sm:$0xf]
      %v2213 = vld [vmem:[%s2208 + $0x10] sm:$0xf]
      %v2214 = vld [vmem:[%s2208 + $0x14] sm:$0xf]
      %v2215 = vld [vmem:[%s2208 + $0x18] sm:$0xf]
      %v2216 = vld [vmem:[%s2208 + $0x1c] sm:$0xf]
      %v2217 = vld [vmem:[%s2208 + $0x20] sm:$0xf]
      %v2218 = vld [vmem:[%s2208 + $0x24] sm:$0xf]
      %v2219 = vpack.c.bf16 %v2202, %v2200
      %v2220 = vpack.c.bf16 %v2203, %v2201
      %v2221 = vpack.c.bf16 %v2206, %v2204
      %v2222 = vpack.c.bf16 %v2207, %v2205
      %2224 = vset.pattern.permute.xlu0 2
      %2225 = vperm.xlu0 %2224, %v2060
      %v2226 = vpop.permute.xlu0 %2225
      %2229 = vset.pattern.permute.xlu0 2
      %2230 = vperm.xlu0 %2229, %v2061
      %v2231 = vpop.permute.xlu0 %2230
      %2234 = vset.pattern.permute.xlu0 2
      %2235 = vperm.xlu0 %2234, %v2062
      %v2236 = vpop.permute.xlu0 %2235
      %2239 = vset.pattern.permute.xlu0 2
      %2240 = vperm.xlu0 %2239, %v2063
      %v2241 = vpop.permute.xlu0 %2240
      %2244 = vset.pattern.permute.xlu0 2
      %2245 = vperm.xlu0 %2244, %v2064
      %v2246 = vpop.permute.xlu0 %2245
      %2249 = vset.pattern.permute.xlu0 2
      %2250 = vperm.xlu0 %2249, %v2065
      %v2251 = vpop.permute.xlu0 %2250
      %2254 = vset.pattern.permute.xlu0 2
      %2255 = vperm.xlu0 %2254, %v2066
      %v2256 = vpop.permute.xlu0 %2255
      %2259 = vset.pattern.permute.xlu0 2
      %2260 = vperm.xlu0 %2259, %v2067
      %v2261 = vpop.permute.xlu0 %2260
      %2264 = vset.pattern.permute.xlu0 2
      %2265 = vperm.xlu0 %2264, %v2068
      %v2266 = vpop.permute.xlu0 %2265
      %2269 = vset.pattern.permute.xlu0 2
      %2270 = vperm.xlu0 %2269, %v2069
      %v2271 = vpop.permute.xlu0 %2270
      %v2283 = vunpack.c.l.b16 %v2209
      %v2284 = vunpack.c.l.b16 %v2210
      %v2285 = vunpack.c.l.b16 %v2211
      %v2286 = vunpack.c.l.b16 %v2212
      %v2287 = vunpack.c.l.b16 %v2213
      %v2288 = vunpack.c.l.b16 %v2214
      %v2289 = vunpack.c.l.b16 %v2215
      %v2290 = vunpack.c.l.b16 %v2216
      %v2291 = vunpack.c.l.b16 %v2217
      %v2292 = vunpack.c.l.b16 %v2218
      %v2293 = vpack.c.b16 %v2284, %v2283
      %v2294 = vpack.c.b16 %v2286, %v2285
      %v2295 = vpack.c.b16 %v2288, %v2287
      %v2296 = vpack.c.b16 %v2290, %v2289
      %v2297 = vpack.c.b16 %v2292, %v2291
      %v2299 = vsel %vm1058, %v2293, 0
      %v2302 = vsel %vm1058, %v2294, 0
      %v2305 = vsel %vm1058, %v2295, 0
      %v2308 = vsel %vm1058, %v2296, 0
      %v2311 = vsel %vm1058, %v2297, 0
      %2313 = vmatprep.subr.bf16.mxu0 0
      %2314 = vmatpush1.bf16.msra.mxu0 0
      %2315 = vmatprep.subr.bf16.mxu0 0
      %2316 = vmatpush1.bf16.msra.mxu0 0
      %2317 = vmatprep.subr.bf16.mxu0 0
      %2318 = vmatpush1.bf16.msra.mxu0 0
      %2319 = vmatprep.subr.bf16.mxu0 0
      %2320 = vmatpush1.bf16.msra.mxu0 0
      %2321 = vmatprep.subr.bf16.mxu0 0
      %2322 = vmatpush1.bf16.msra.mxu0 0
      %2323 = vmatprep.subr.bf16.mxu0 0
      %2324 = vmatpush1.bf16.msra.mxu0 0
      %2325 = vmatprep.subr.bf16.mxu0 %v2222
      %2326 = vmatpush1.bf16.msra.mxu0 %v2221
      %2327 = vmatprep.subr.bf16.mxu0 %v2220
      %2328 = vmatpush1.bf16.msra.mxu0 %v2219
      %2329 = vmatprep.subr.bf16.mxu0 0
      %2330 = vmatpush2.bf16.msra.mxu0 0
      %2331 = vmatprep.subr.bf16.mxu0 0
      %2332 = vmatpush2.bf16.msra.mxu0 0
      %2333 = vmatprep.subr.bf16.mxu0 0
      %2334 = vmatpush2.bf16.msra.mxu0 0
      %2335 = vmatprep.subr.bf16.mxu0 0
      %2336 = vmatpush2.bf16.msra.mxu0 0
      %2337 = vmatprep.subr.bf16.mxu0 0
      %2338 = vmatpush2.bf16.msra.mxu0 0
      %2339 = vmatprep.subr.bf16.mxu0 0
      %2340 = vmatpush2.bf16.msra.mxu0 0
      %2341 = vmatprep.subr.bf16.mxu0 0
      %2342 = vmatpush2.bf16.msra.mxu0 0
      %2343 = vmatprep.subr.bf16.mxu0 0
      %2344 = vmatpush2.bf16.msra.mxu0 0
      %2345 = vmatprep.mubr.bf16.mxu0 0
      %2346 = vmatmul.mubr.bf16.gmra.mxu0 %v2299
      %v2347 = vpop.f32.mrf.mxu0
      %v2348 = vadd.f32 %v2226, %v2347
      %v2349 = vpop.f32.mrf.mxu0
      %v2350 = vadd.f32 %v2226, %v2349
      %v2351 = vpop.f32.mrf.mxu0
      %v2352 = vadd.f32 %v2231, %v2351
      %v2353 = vpop.f32.mrf.mxu0
      %v2354 = vadd.f32 %v2231, %v2353
      %2355 = vmatprep.mubr.bf16.mxu0 0
      %2356 = vmatmul.mubr.bf16.gmra.mxu0 %v2302
      %v2357 = vpop.f32.mrf.mxu0
      %v2358 = vadd.f32 %v2236, %v2357
      %v2359 = vpop.f32.mrf.mxu0
      %v2360 = vadd.f32 %v2236, %v2359
      %v2361 = vpop.f32.mrf.mxu0
      %v2362 = vadd.f32 %v2241, %v2361
      %v2363 = vpop.f32.mrf.mxu0
      %v2364 = vadd.f32 %v2241, %v2363
      %2365 = vmatprep.mubr.bf16.mxu0 0
      %2366 = vmatmul.mubr.bf16.gmra.mxu0 %v2305
      %v2367 = vpop.f32.mrf.mxu0
      %v2368 = vadd.f32 %v2246, %v2367
      %v2369 = vpop.f32.mrf.mxu0
      %v2370 = vadd.f32 %v2246, %v2369
      %v2371 = vpop.f32.mrf.mxu0
      %v2372 = vadd.f32 %v2251, %v2371
      %v2373 = vpop.f32.mrf.mxu0
      %v2374 = vadd.f32 %v2251, %v2373
      %2375 = vmatprep.mubr.bf16.mxu0 0
      %2376 = vmatmul.mubr.bf16.gmra.mxu0 %v2308
      %v2377 = vpop.f32.mrf.mxu0
      %v2378 = vadd.f32 %v2256, %v2377
      %v2379 = vpop.f32.mrf.mxu0
      %v2380 = vadd.f32 %v2256, %v2379
      %v2381 = vpop.f32.mrf.mxu0
      %v2382 = vadd.f32 %v2261, %v2381
      %v2383 = vpop.f32.mrf.mxu0
      %v2384 = vadd.f32 %v2261, %v2383
      %2385 = vmatprep.mubr.bf16.mxu0 0
      %2386 = vmatmul.mubr.bf16.gmra.mxu0 %v2311
      %v2387 = vpop.f32.mrf.mxu0
      %v2388 = vadd.f32 %v2266, %v2387
      %v2389 = vpop.f32.mrf.mxu0
      %v2390 = vadd.f32 %v2266, %v2389
      %v2391 = vpop.f32.mrf.mxu0
      %v2392 = vadd.f32 %v2271, %v2391
      %v2393 = vpop.f32.mrf.mxu0
      %v2394 = vadd.f32 %v2271, %v2393
      %2395 = vdwg.mxu0
      %v2396 = vsel %vm1157, %v2372, -inf
      %v2397 = vsel %vm1157, %v2374, -inf
      %v2398 = vmax.f32 %v2396, %v2397
      %2399 = vmax.xlane.f32.xlu0 %v2398
      %v2400 = vpop.xlane.xlu0 %2399
      %v2401 = vrot.slane %v2400, 4
      %v2402 = vmax.f32 %v2400, %v2401
      %v2403 = vrot.slane %v2402, 2
      %v2404 = vmax.f32 %v2402, %v2403
      %v2405 = vrot.slane %v2404, 1
      %v2406 = vmax.f32 %v2404, %v2405
      %s2407 = vtos %v2406
      %v2408 = vstv %s2407
      %v2409 = vsub.f32 %v2372, %v2408
      %v2410 = vsub.f32 %v2374, %v2408
      %v2411 = vmul.f32 %v2409, 1.442695
      %v2412 = vpow.pop %v2411
      %v2413 = vmul.f32 %v2410, 1.442695
      %v2414 = vpow.pop %v2413
      %v2415 = vlaneseq
      %v2416 = vshrl.u32 %v2415, 7
      %v2417 = vsub.s32 0, %v2416
      %v2418 = vrot.slane %v2412, %v2417
      %v2419 = vlaneseq
      %v2420 = vshrl.u32 %v2419, 7
      %v2421 = vsub.s32 0, %v2420
      %v2422 = vrot.slane %v2414, %v2421
      %v2423 = vmul.f32 %v2348, %v2418
      %v2424 = vmul.f32 %v2350, %v2422
      %v2425 = vmul.f32 %v2352, %v2418
      %v2426 = vmul.f32 %v2354, %v2422
      %v2427 = vmul.f32 %v2358, %v2418
      %v2428 = vmul.f32 %v2360, %v2422
      %v2429 = vmul.f32 %v2362, %v2418
      %v2430 = vmul.f32 %v2364, %v2422
      %v2431 = vmul.f32 %v2368, %v2418
      %v2432 = vmul.f32 %v2370, %v2422
      %v2433 = vpack.c.bf16 %v2425, %v2423
      %v2434 = vpack.c.bf16 %v2426, %v2424
      %v2435 = vpack.c.bf16 %v2429, %v2427
      %v2436 = vpack.c.bf16 %v2430, %v2428
      %v2437 = vpack.c.bf16 %v2431, %v2431
      %v2438 = vpack.c.bf16 %v2432, %v2432
      %2439 = vmatprep.subr.bf16.mxu0 0
      %2440 = vmatpush1.bf16.msra.mxu0 %v1272
      %2441 = vmatprep.subr.bf16.mxu0 0
      %2442 = vmatpush1.bf16.msra.mxu0 %v1271
      %2443 = vmatprep.subr.bf16.mxu0 0
      %2444 = vmatpush1.bf16.msra.mxu0 %v1270
      %2445 = vmatprep.subr.bf16.mxu0 0
      %2446 = vmatpush1.bf16.msra.mxu0 %v1269
      %2447 = vmatprep.subr.bf16.mxu0 0
      %2448 = vmatpush1.bf16.msra.mxu0 %v1268
      %2449 = vmatprep.subr.bf16.mxu0 0
      %2450 = vmatpush1.bf16.msra.mxu0 %v1267
      %2451 = vmatprep.subr.bf16.mxu0 0
      %2452 = vmatpush1.bf16.msra.mxu0 %v1266
      %2453 = vmatprep.subr.bf16.mxu0 0
      %2454 = vmatpush1.bf16.msra.mxu0 %v1265
      %2455 = vmatprep.subr.bf16.mxu0 0
      %2456 = vmatpush2.bf16.msra.mxu0 %v1280
      %2457 = vmatprep.subr.bf16.mxu0 0
      %2458 = vmatpush2.bf16.msra.mxu0 %v1279
      %2459 = vmatprep.subr.bf16.mxu0 0
      %2460 = vmatpush2.bf16.msra.mxu0 %v1278
      %2461 = vmatprep.subr.bf16.mxu0 0
      %2462 = vmatpush2.bf16.msra.mxu0 %v1277
      %2463 = vmatprep.subr.bf16.mxu0 0
      %2464 = vmatpush2.bf16.msra.mxu0 %v1276
      %2465 = vmatprep.subr.bf16.mxu0 0
      %2466 = vmatpush2.bf16.msra.mxu0 %v1275
      %2467 = vmatprep.subr.bf16.mxu0 0
      %2468 = vmatpush2.bf16.msra.mxu0 %v1274
      %2469 = vmatprep.subr.bf16.mxu0 0
      %2470 = vmatpush2.bf16.msra.mxu0 %v1273
      %2471 = vmatprep.mubr.bf16.mxu0 %v2434
      %2472 = vmatmul.mubr.bf16.gmra.mxu0 %v2433
      %v2473 = vpop.f32.mrf.mxu0
      %v2474 = vadd.f32 0.0, %v2473
      %v2475 = vpop.f32.mrf.mxu0
      %v2476 = vpop.f32.mrf.mxu0
      %v2477 = vadd.f32 0.0, %v2476
      %v2478 = vpop.f32.mrf.mxu0
      %2479 = vmatprep.mubr.bf16.mxu0 %v2436
      %2480 = vmatmul.mubr.bf16.gmra.mxu0 %v2435
      %v2481 = vpop.f32.mrf.mxu0
      %v2482 = vadd.f32 0.0, %v2481
      %v2483 = vpop.f32.mrf.mxu0
      %v2484 = vpop.f32.mrf.mxu0
      %v2485 = vadd.f32 0.0, %v2484
      %v2486 = vpop.f32.mrf.mxu0
      %2487 = vmatprep.mubr.bf16.mxu0 %v2438
      %2488 = vmatmul.mubr.bf16.gmra.mxu0 %v2437
      %v2489 = vpop.f32.mrf.mxu0
      %v2490 = vadd.f32 0.0, %v2489
      %v2491 = vpop.f32.mrf.mxu0
      %v2492 = vpop.f32.mrf.mxu0
      %v2493 = vpop.f32.mrf.mxu0
      %2494 = vdwg.mxu0
      %v2495 = vmax.f32 %v2490, 1e-30
      %v2496 = vlaneseq
      %v2497 = vshrl.u32 %v2496, 7
      %v2498 = vsub.s32 0, %v2497
      %v2499 = vrot.slane %v2495, %v2498
      %v2500 = vrcp.pop %v2499
      %v2501 = vmul.f32 %v2474, %v2500
      %v2502 = vmul.f32 %v2477, %v2500
      %v2503 = vmul.f32 %v2482, %v2500
      %v2504 = vmul.f32 %v2485, %v2500
      %v2505 = vpack.c.bf16 %v2502, %v2501
      %v2506 = vpack.c.bf16 %v2504, %v2503
      %v2508 = vsel %vm1370, %v2505, 0
      %v2511 = vsel %vm1370, %v2506, 0
      %2513 = vmatprep.subr.bf16.mxu0 0
      %2514 = vmatpush1.bf16.msra.mxu0 0
      %2515 = vmatprep.subr.bf16.mxu0 0
      %2516 = vmatpush1.bf16.msra.mxu0 0
      %2517 = vmatprep.subr.bf16.mxu0 0
      %2518 = vmatpush1.bf16.msra.mxu0 0
      %2519 = vmatprep.subr.bf16.mxu0 0
      %2520 = vmatpush1.bf16.msra.mxu0 0
      %2521 = vmatprep.subr.bf16.mxu0 0
      %2522 = vmatpush1.bf16.msra.mxu0 0
      %2523 = vmatprep.subr.bf16.mxu0 0
      %2524 = vmatpush1.bf16.msra.mxu0 0
      %2525 = vmatprep.subr.bf16.mxu0 0
      %2526 = vmatpush1.bf16.msra.mxu0 0
      %2527 = vmatprep.subr.bf16.mxu0 %v1382
      %2528 = vmatpush1.bf16.msra.mxu0 %v1379
      %2529 = vmatprep.subr.bf16.mxu0 0
      %2530 = vmatpush2.bf16.msra.mxu0 0
      %2531 = vmatprep.subr.bf16.mxu0 0
      %2532 = vmatpush2.bf16.msra.mxu0 0
      %2533 = vmatprep.subr.bf16.mxu0 0
      %2534 = vmatpush2.bf16.msra.mxu0 0
      %2535 = vmatprep.subr.bf16.mxu0 0
      %2536 = vmatpush2.bf16.msra.mxu0 0
      %2537 = vmatprep.subr.bf16.mxu0 0
      %2538 = vmatpush2.bf16.msra.mxu0 0
      %2539 = vmatprep.subr.bf16.mxu0 0
      %2540 = vmatpush2.bf16.msra.mxu0 0
      %2541 = vmatprep.subr.bf16.mxu0 0
      %2542 = vmatpush2.bf16.msra.mxu0 0
      %2543 = vmatprep.subr.bf16.mxu0 0
      %2544 = vmatpush2.bf16.msra.mxu0 0
      %2545 = vmatprep.mubr.bf16.mxu0 0
      %2546 = vmatmul.mubr.bf16.gmra.mxu0 %v2508
      %v2547 = vpop.f32.mrf.mxu0
      %v2548 = vadd.f32 0.0, %v2547
      %v2549 = vpop.f32.mrf.mxu0
      %v2550 = vadd.f32 0.0, %v2549
      %v2551 = vpop.f32.mrf.mxu0
      %v2552 = vadd.f32 0.0, %v2551
      %v2553 = vpop.f32.mrf.mxu0
      %v2554 = vadd.f32 0.0, %v2553
      %2555 = vmatprep.mubr.bf16.mxu0 0
      %2556 = vmatmul.mubr.bf16.gmra.mxu0 %v2511
      %v2557 = vpop.f32.mrf.mxu0
      %v2558 = vadd.f32 0.0, %v2557
      %v2559 = vpop.f32.mrf.mxu0
      %v2560 = vadd.f32 0.0, %v2559
      %v2561 = vpop.f32.mrf.mxu0
      %v2562 = vadd.f32 0.0, %v2561
      %v2563 = vpop.f32.mrf.mxu0
      %v2564 = vadd.f32 0.0, %v2563
      %2565 = vdwg.mxu0
      %v2566 = vmax.f32 %v2378, 0.0
      %v2567 = vmax.f32 %v2380, 0.0
      %v2568 = vmax.f32 %v2382, 0.0
      %v2569 = vmax.f32 %v2384, 0.0
      %v2570 = vmax.f32 %v2388, 0.0
      %v2571 = vmax.f32 %v2390, 0.0
      %v2572 = vmax.f32 %v2392, 0.0
      %v2573 = vmax.f32 %v2394, 0.0
      %v2574 = vmul.f32 %v2566, %v2548
      %v2575 = vmul.f32 %v2567, %v2550
      %v2576 = vmul.f32 %v2568, %v2552
      %v2577 = vmul.f32 %v2569, %v2554
      %v2578 = vmul.f32 %v2570, %v2558
      %v2579 = vmul.f32 %v2571, %v2560
      %v2580 = vmul.f32 %v2572, %v2562
      %v2581 = vmul.f32 %v2573, %v2564
      %s2582 = scalar_lea.vmem %s8, 16
      %v2583 = vld [vmem:[%s2582] sm:$0xf]
      %v2584 = vld [vmem:[%s2582 + $0x4] sm:$0xf]
      %v2585 = vld [vmem:[%s2582 + $0x8] sm:$0xf]
      %v2586 = vld [vmem:[%s2582 + $0xc] sm:$0xf]
      %v2587 = vpack.c.bf16 %v2576, %v2574
      %v2588 = vpack.c.bf16 %v2577, %v2575
      %v2589 = vpack.c.bf16 %v2580, %v2578
      %v2590 = vpack.c.bf16 %v2581, %v2579
      %2591 = vset.pattern.permute.xlu0 3
      %2592 = vperm.xlu0 %2591, %v2060
      %v2593 = vpop.permute.xlu0 %2592
      %2595 = vset.pattern.permute.xlu0 3
      %2596 = vperm.xlu0 %2595, %v2061
      %v2597 = vpop.permute.xlu0 %2596
      %2599 = vset.pattern.permute.xlu0 3
      %2600 = vperm.xlu0 %2599, %v2062
      %v2601 = vpop.permute.xlu0 %2600
      %2603 = vset.pattern.permute.xlu0 3
      %2604 = vperm.xlu0 %2603, %v2063
      %v2605 = vpop.permute.xlu0 %2604
      %v2611 = vunpack.c.l.b16 %v2583
      %v2612 = vunpack.c.l.b16 %v2584
      %v2613 = vunpack.c.l.b16 %v2585
      %v2614 = vunpack.c.l.b16 %v2586
      %v2615 = vpack.c.b16 %v2612, %v2611
      %v2616 = vpack.c.b16 %v2614, %v2613
      %v2618 = vsel %vm1058, %v2615, 0
      %v2621 = vsel %vm1058, %v2616, 0
      %2623 = vmatprep.subr.bf16.mxu0 0
      %2624 = vmatpush1.bf16.msra.mxu0 0
      %2625 = vmatprep.subr.bf16.mxu0 0
      %2626 = vmatpush1.bf16.msra.mxu0 0
      %2627 = vmatprep.subr.bf16.mxu0 0
      %2628 = vmatpush1.bf16.msra.mxu0 0
      %2629 = vmatprep.subr.bf16.mxu0 0
      %2630 = vmatpush1.bf16.msra.mxu0 0
      %2631 = vmatprep.subr.bf16.mxu0 0
      %2632 = vmatpush1.bf16.msra.mxu0 0
      %2633 = vmatprep.subr.bf16.mxu0 0
      %2634 = vmatpush1.bf16.msra.mxu0 0
      %2635 = vmatprep.subr.bf16.mxu0 %v2590
      %2636 = vmatpush1.bf16.msra.mxu0 %v2589
      %2637 = vmatprep.subr.bf16.mxu0 %v2588
      %2638 = vmatpush1.bf16.msra.mxu0 %v2587
      %2639 = vmatprep.subr.bf16.mxu0 0
      %2640 = vmatpush2.bf16.msra.mxu0 0
      %2641 = vmatprep.subr.bf16.mxu0 0
      %2642 = vmatpush2.bf16.msra.mxu0 0
      %2643 = vmatprep.subr.bf16.mxu0 0
      %2644 = vmatpush2.bf16.msra.mxu0 0
      %2645 = vmatprep.subr.bf16.mxu0 0
      %2646 = vmatpush2.bf16.msra.mxu0 0
      %2647 = vmatprep.subr.bf16.mxu0 0
      %2648 = vmatpush2.bf16.msra.mxu0 0
      %2649 = vmatprep.subr.bf16.mxu0 0
      %2650 = vmatpush2.bf16.msra.mxu0 0
      %2651 = vmatprep.subr.bf16.mxu0 0
      %2652 = vmatpush2.bf16.msra.mxu0 0
      %2653 = vmatprep.subr.bf16.mxu0 0
      %2654 = vmatpush2.bf16.msra.mxu0 0
      %2655 = vmatprep.mubr.bf16.mxu0 0
      %2656 = vmatmul.mubr.bf16.gmra.mxu0 %v2618
      %v2657 = vpop.f32.mrf.mxu0
      %v2658 = vadd.f32 %v2593, %v2657
      %v2659 = vpop.f32.mrf.mxu0
      %v2660 = vadd.f32 %v2593, %v2659
      %v2661 = vpop.f32.mrf.mxu0
      %v2662 = vadd.f32 %v2597, %v2661
      %v2663 = vpop.f32.mrf.mxu0
      %v2664 = vadd.f32 %v2597, %v2663
      %2665 = vmatprep.mubr.bf16.mxu0 0
      %2666 = vmatmul.mubr.bf16.gmra.mxu0 %v2621
      %v2667 = vpop.f32.mrf.mxu0
      %v2668 = vadd.f32 %v2601, %v2667
      %v2669 = vpop.f32.mrf.mxu0
      %v2670 = vadd.f32 %v2601, %v2669
      %v2671 = vpop.f32.mrf.mxu0
      %v2672 = vadd.f32 %v2605, %v2671
      %v2673 = vpop.f32.mrf.mxu0
      %v2674 = vadd.f32 %v2605, %v2673
      %2675 = vdwg.mxu0
      %v2676 = vadd.f32 %v2051, %v2658
      %v2677 = vadd.f32 %v2052, %v2660
      %v2678 = vadd.f32 %v2053, %v2662
      %v2679 = vadd.f32 %v2054, %v2664
      %v2680 = vadd.f32 %v2055, %v2668
      %v2681 = vadd.f32 %v2056, %v2670
      %v2682 = vadd.f32 %v2057, %v2672
      %v2683 = vadd.f32 %v2058, %v2674
      %v2684 = vadd.f32 %v2676, %v2677
      %v2685 = vadd.f32 %v2684, %v2678
      %v2686 = vadd.f32 %v2685, %v2679
      %v2687 = vadd.f32 %v2686, %v2680
      %v2688 = vadd.f32 %v2687, %v2681
      %v2689 = vadd.f32 %v2688, %v2682
      %v2690 = vadd.f32 %v2689, %v2683
      %2691 = vadd.xlane.f32.xlu0 %v2690
      %v2692 = vpop.xlane.xlu0 %2691
      %v2693 = vrot.slane %v2692, 4
      %v2694 = vadd.f32 %v2692, %v2693
      %v2695 = vrot.slane %v2694, 2
      %v2696 = vadd.f32 %v2694, %v2695
      %v2697 = vrot.slane %v2696, 1
      %v2698 = vadd.f32 %v2696, %v2697
      %s2699 = vtos %v2698
      %v2700 = vrcp.pop 8192.0
      %s2701 = vtos %v2700
      %s2702 = smul.f32 %s2699, %s2701
      %v2703 = vmul.f32 %v2676, %v2676
      %v2704 = vmul.f32 %v2677, %v2677
      %v2705 = vmul.f32 %v2678, %v2678
      %v2706 = vmul.f32 %v2679, %v2679
      %v2707 = vmul.f32 %v2680, %v2680
      %v2708 = vmul.f32 %v2681, %v2681
      %v2709 = vmul.f32 %v2682, %v2682
      %v2710 = vmul.f32 %v2683, %v2683
      %v2711 = vadd.f32 %v2703, %v2704
      %v2712 = vadd.f32 %v2711, %v2705
      %v2713 = vadd.f32 %v2712, %v2706
      %v2714 = vadd.f32 %v2713, %v2707
      %v2715 = vadd.f32 %v2714, %v2708
      %v2716 = vadd.f32 %v2715, %v2709
      %v2717 = vadd.f32 %v2716, %v2710
      %2718 = vadd.xlane.f32.xlu0 %v2717
      %v2719 = vpop.xlane.xlu0 %2718
      %v2720 = vrot.slane %v2719, 4
      %v2721 = vadd.f32 %v2719, %v2720
      %v2722 = vrot.slane %v2721, 2
      %v2723 = vadd.f32 %v2721, %v2722
      %v2724 = vrot.slane %v2723, 1
      %v2725 = vadd.f32 %v2723, %v2724
      %s2726 = vtos %v2725
      %v2727 = vrcp.pop 8192.0
      %s2728 = vtos %v2727
      %s2729 = smul.f32 %s2726, %s2728
      %s2730 = smul.f32 %s2702, %s2702
      %s2731 = ssub.f32 %s2729, %s2730
      %s2732 = sadd.f32 %s2731, 1e-05
      %v2733 = vstv %s2732
      %v2734 = vrsqrt.pop %v2733
      %s2735 = vtos %v2734
      %v2736 = vstv %s2735
      %v2737 = vmul.f32 %v2060, %v2736
      %v2738 = vmul.f32 %v2061, %v2736
      %v2739 = vmul.f32 %v2062, %v2736
      %v2740 = vmul.f32 %v2063, %v2736
      %v2741 = vstv %s2702
      %v2742 = vmul.f32 %v2741, %v2737
      %v2743 = vmul.f32 %v2741, %v2738
      %v2744 = vmul.f32 %v2741, %v2739
      %v2745 = vmul.f32 %v2741, %v2740
      %2750 = vrot.lane.b32.xlu0 %v2742, 1
      %v2751 = vpop.permute.xlu0 %2750
      %2752 = vrot.lane.b32.xlu0 %v2743, 1
      %v2753 = vpop.permute.xlu0 %2752
      %2754 = vrot.lane.b32.xlu0 %v2744, 1
      %v2755 = vpop.permute.xlu0 %2754
      %2756 = vrot.lane.b32.xlu0 %v2745, 1
      %v2757 = vpop.permute.xlu0 %2756
      %v2762 = vsub.f32 %v2060, %v2751
      %v2763 = vsub.f32 %v2061, %v2753
      %v2764 = vsub.f32 %v2062, %v2755
      %v2765 = vsub.f32 %v2063, %v2757
      %2767 = vset.pattern.permute.xlu0 4
      %2768 = vperm.xlu0 %2767, %v2737
      %v2769 = vpop.permute.xlu0 %2768
      %2772 = vset.pattern.permute.xlu0 4
      %2773 = vperm.xlu0 %2772, %v2738
      %v2774 = vpop.permute.xlu0 %2773
      %2777 = vset.pattern.permute.xlu0 4
      %2778 = vperm.xlu0 %2777, %v2739
      %v2779 = vpop.permute.xlu0 %2778
      %2782 = vset.pattern.permute.xlu0 4
      %2783 = vperm.xlu0 %2782, %v2740
      %v2784 = vpop.permute.xlu0 %2783
      %v2786 = vmul.f32 %v2676, %v2769
      %v2787 = vmul.f32 %v2677, %v2769
      %v2788 = vmul.f32 %v2678, %v2774
      %v2789 = vmul.f32 %v2679, %v2774
      %v2790 = vmul.f32 %v2680, %v2779
      %v2791 = vmul.f32 %v2681, %v2779
      %v2792 = vmul.f32 %v2682, %v2784
      %v2793 = vmul.f32 %v2683, %v2784
      %2795 = vset.pattern.permute.xlu0 5
      %2796 = vperm.xlu0 %2795, %v2762
      %v2797 = vpop.permute.xlu0 %2796
      %2800 = vset.pattern.permute.xlu0 5
      %2801 = vperm.xlu0 %2800, %v2763
      %v2802 = vpop.permute.xlu0 %2801
      %2805 = vset.pattern.permute.xlu0 5
      %2806 = vperm.xlu0 %2805, %v2764
      %v2807 = vpop.permute.xlu0 %2806
      %2810 = vset.pattern.permute.xlu0 5
      %2811 = vperm.xlu0 %2810, %v2765
      %v2812 = vpop.permute.xlu0 %2811
      %v2814 = vadd.f32 %v2786, %v2797
      %v2815 = vadd.f32 %v2787, %v2797
      %v2816 = vadd.f32 %v2788, %v2802
      %v2817 = vadd.f32 %v2789, %v2802
      %v2818 = vadd.f32 %v2790, %v2807
      %v2819 = vadd.f32 %v2791, %v2807
      %v2820 = vadd.f32 %v2792, %v2812
      %v2821 = vadd.f32 %v2793, %v2812
      %s2822 = scalar_lea.vmem %s9, 32
      %v2823 = vld [vmem:[%s2822] sm:$0xf]
      %v2824 = vld [vmem:[%s2822 + $0x4] sm:$0xf]
      %v2825 = vld [vmem:[%s2822 + $0x8] sm:$0xf]
      %v2826 = vld [vmem:[%s2822 + $0xc] sm:$0xf]
      %v2827 = vld [vmem:[%s2822 + $0x10] sm:$0xf]
      %v2828 = vld [vmem:[%s2822 + $0x14] sm:$0xf]
      %v2829 = vld [vmem:[%s2822 + $0x18] sm:$0xf]
      %v2830 = vld [vmem:[%s2822 + $0x1c] sm:$0xf]
      %v2831 = vpack.c.bf16 %v2816, %v2814
      %v2832 = vpack.c.bf16 %v2817, %v2815
      %v2833 = vpack.c.bf16 %v2820, %v2818
      %v2834 = vpack.c.bf16 %v2821, %v2819
      %2835 = vset.pattern.permute.xlu0 6
      %2836 = vperm.xlu0 %2835, %v2060
      %v2837 = vpop.permute.xlu0 %2836
      %2839 = vset.pattern.permute.xlu0 6
      %2840 = vperm.xlu0 %2839, %v2061
      %v2841 = vpop.permute.xlu0 %2840
      %2843 = vset.pattern.permute.xlu0 6
      %2844 = vperm.xlu0 %2843, %v2062
      %v2845 = vpop.permute.xlu0 %2844
      %2847 = vset.pattern.permute.xlu0 6
      %2848 = vperm.xlu0 %2847, %v2063
      %v2849 = vpop.permute.xlu0 %2848
      %2851 = vset.pattern.permute.xlu0 6
      %2852 = vperm.xlu0 %2851, %v2064
      %v2853 = vpop.permute.xlu0 %2852
      %2855 = vset.pattern.permute.xlu0 6
      %2856 = vperm.xlu0 %2855, %v2065
      %v2857 = vpop.permute.xlu0 %2856
      %2859 = vset.pattern.permute.xlu0 6
      %2860 = vperm.xlu0 %2859, %v2066
      %v2861 = vpop.permute.xlu0 %2860
      %2863 = vset.pattern.permute.xlu0 6
      %2864 = vperm.xlu0 %2863, %v2067
      %v2865 = vpop.permute.xlu0 %2864
      %v2875 = vunpack.c.l.b16 %v2823
      %v2876 = vunpack.c.l.b16 %v2824
      %v2877 = vunpack.c.l.b16 %v2825
      %v2878 = vunpack.c.l.b16 %v2826
      %v2879 = vunpack.c.l.b16 %v2827
      %v2880 = vunpack.c.l.b16 %v2828
      %v2881 = vunpack.c.l.b16 %v2829
      %v2882 = vunpack.c.l.b16 %v2830
      %v2883 = vpack.c.b16 %v2876, %v2875
      %v2884 = vpack.c.b16 %v2878, %v2877
      %v2885 = vpack.c.b16 %v2880, %v2879
      %v2886 = vpack.c.b16 %v2882, %v2881
      %v2888 = vsel %vm1058, %v2883, 0
      %v2891 = vsel %vm1058, %v2884, 0
      %v2894 = vsel %vm1058, %v2885, 0
      %v2897 = vsel %vm1058, %v2886, 0
      %2899 = vmatprep.subr.bf16.mxu0 0
      %2900 = vmatpush1.bf16.msra.mxu0 0
      %2901 = vmatprep.subr.bf16.mxu0 0
      %2902 = vmatpush1.bf16.msra.mxu0 0
      %2903 = vmatprep.subr.bf16.mxu0 0
      %2904 = vmatpush1.bf16.msra.mxu0 0
      %2905 = vmatprep.subr.bf16.mxu0 0
      %2906 = vmatpush1.bf16.msra.mxu0 0
      %2907 = vmatprep.subr.bf16.mxu0 0
      %2908 = vmatpush1.bf16.msra.mxu0 0
      %2909 = vmatprep.subr.bf16.mxu0 0
      %2910 = vmatpush1.bf16.msra.mxu0 0
      %2911 = vmatprep.subr.bf16.mxu0 %v2834
      %2912 = vmatpush1.bf16.msra.mxu0 %v2833
      %2913 = vmatprep.subr.bf16.mxu0 %v2832
      %2914 = vmatpush1.bf16.msra.mxu0 %v2831
      %2915 = vmatprep.subr.bf16.mxu0 0
      %2916 = vmatpush2.bf16.msra.mxu0 0
      %2917 = vmatprep.subr.bf16.mxu0 0
      %2918 = vmatpush2.bf16.msra.mxu0 0
      %2919 = vmatprep.subr.bf16.mxu0 0
      %2920 = vmatpush2.bf16.msra.mxu0 0
      %2921 = vmatprep.subr.bf16.mxu0 0
      %2922 = vmatpush2.bf16.msra.mxu0 0
      %2923 = vmatprep.subr.bf16.mxu0 0
      %2924 = vmatpush2.bf16.msra.mxu0 0
      %2925 = vmatprep.subr.bf16.mxu0 0
      %2926 = vmatpush2.bf16.msra.mxu0 0
      %2927 = vmatprep.subr.bf16.mxu0 0
      %2928 = vmatpush2.bf16.msra.mxu0 0
      %2929 = vmatprep.subr.bf16.mxu0 0
      %2930 = vmatpush2.bf16.msra.mxu0 0
      %2931 = vmatprep.mubr.bf16.mxu0 0
      %2932 = vmatmul.mubr.bf16.gmra.mxu0 %v2888
      %v2933 = vpop.f32.mrf.mxu0
      %v2934 = vadd.f32 %v2837, %v2933
      %v2935 = vpop.f32.mrf.mxu0
      %v2936 = vadd.f32 %v2837, %v2935
      %v2937 = vpop.f32.mrf.mxu0
      %v2938 = vadd.f32 %v2841, %v2937
      %v2939 = vpop.f32.mrf.mxu0
      %v2940 = vadd.f32 %v2841, %v2939
      %2941 = vmatprep.mubr.bf16.mxu0 0
      %2942 = vmatmul.mubr.bf16.gmra.mxu0 %v2891
      %v2943 = vpop.f32.mrf.mxu0
      %v2944 = vadd.f32 %v2845, %v2943
      %v2945 = vpop.f32.mrf.mxu0
      %v2946 = vadd.f32 %v2845, %v2945
      %v2947 = vpop.f32.mrf.mxu0
      %v2948 = vadd.f32 %v2849, %v2947
      %v2949 = vpop.f32.mrf.mxu0
      %v2950 = vadd.f32 %v2849, %v2949
      %2951 = vmatprep.mubr.bf16.mxu0 0
      %2952 = vmatmul.mubr.bf16.gmra.mxu0 %v2894
      %v2953 = vpop.f32.mrf.mxu0
      %v2954 = vadd.f32 %v2853, %v2953
      %v2955 = vpop.f32.mrf.mxu0
      %v2956 = vadd.f32 %v2853, %v2955
      %v2957 = vpop.f32.mrf.mxu0
      %v2958 = vadd.f32 %v2857, %v2957
      %v2959 = vpop.f32.mrf.mxu0
      %v2960 = vadd.f32 %v2857, %v2959
      %2961 = vmatprep.mubr.bf16.mxu0 0
      %2962 = vmatmul.mubr.bf16.gmra.mxu0 %v2897
      %v2963 = vpop.f32.mrf.mxu0
      %v2964 = vadd.f32 %v2861, %v2963
      %v2965 = vpop.f32.mrf.mxu0
      %v2966 = vadd.f32 %v2861, %v2965
      %v2967 = vpop.f32.mrf.mxu0
      %v2968 = vadd.f32 %v2865, %v2967
      %v2969 = vpop.f32.mrf.mxu0
      %v2970 = vadd.f32 %v2865, %v2969
      %2971 = vdwg.mxu0
      %v2972 = vxor.u32 %v2934, 2147483648
      %v2973 = vxor.u32 %v2936, 2147483648
      %v2974 = vxor.u32 %v2938, 2147483648
      %v2975 = vxor.u32 %v2940, 2147483648
      %v2976 = vxor.u32 %v2944, 2147483648
      %v2977 = vxor.u32 %v2946, 2147483648
      %v2978 = vxor.u32 %v2948, 2147483648
      %v2979 = vxor.u32 %v2950, 2147483648
      %v2980 = vxor.u32 %v2954, 2147483648
      %v2981 = vxor.u32 %v2956, 2147483648
      %v2982 = vxor.u32 %v2958, 2147483648
      %v2983 = vxor.u32 %v2960, 2147483648
      %v2984 = vxor.u32 %v2964, 2147483648
      %v2985 = vxor.u32 %v2966, 2147483648
      %v2986 = vxor.u32 %v2968, 2147483648
      %v2987 = vxor.u32 %v2970, 2147483648
      %v2988 = vmul.f32 %v2972, 1.442695
      %v2989 = vpow.pop %v2988
      %v2990 = vmul.f32 %v2973, 1.442695
      %v2991 = vpow.pop %v2990
      %v2992 = vmul.f32 %v2974, 1.442695
      %v2993 = vpow.pop %v2992
      %v2994 = vmul.f32 %v2975, 1.442695
      %v2995 = vpow.pop %v2994
      %v2996 = vmul.f32 %v2976, 1.442695
      %v2997 = vpow.pop %v2996
      %v2998 = vmul.f32 %v2977, 1.442695
      %v2999 = vpow.pop %v2998
      %v3000 = vmul.f32 %v2978, 1.442695
      %v3001 = vpow.pop %v3000
      %v3002 = vmul.f32 %v2979, 1.442695
      %v3003 = vpow.pop %v3002
      %v3004 = vmul.f32 %v2980, 1.442695
      %v3005 = vpow.pop %v3004
      %v3006 = vmul.f32 %v2981, 1.442695
      %v3007 = vpow.pop %v3006
      %v3008 = vmul.f32 %v2982, 1.442695
      %v3009 = vpow.pop %v3008
      %v3010 = vmul.f32 %v2983, 1.442695
      %v3011 = vpow.pop %v3010
      %v3012 = vmul.f32 %v2984, 1.442695
      %v3013 = vpow.pop %v3012
      %v3014 = vmul.f32 %v2985, 1.442695
      %v3015 = vpow.pop %v3014
      %v3016 = vmul.f32 %v2986, 1.442695
      %v3017 = vpow.pop %v3016
      %v3018 = vmul.f32 %v2987, 1.442695
      %v3019 = vpow.pop %v3018
      %v3020 = vadd.f32 %v2989, 1.0
      %v3021 = vadd.f32 %v2991, 1.0
      %v3022 = vadd.f32 %v2993, 1.0
      %v3023 = vadd.f32 %v2995, 1.0
      %v3024 = vadd.f32 %v2997, 1.0
      %v3025 = vadd.f32 %v2999, 1.0
      %v3026 = vadd.f32 %v3001, 1.0
      %v3027 = vadd.f32 %v3003, 1.0
      %v3028 = vadd.f32 %v3005, 1.0
      %v3029 = vadd.f32 %v3007, 1.0
      %v3030 = vadd.f32 %v3009, 1.0
      %v3031 = vadd.f32 %v3011, 1.0
      %v3032 = vadd.f32 %v3013, 1.0
      %v3033 = vadd.f32 %v3015, 1.0
      %v3034 = vadd.f32 %v3017, 1.0
      %v3035 = vadd.f32 %v3019, 1.0
      %v3036 = vrcp.pop %v3020
      %v3037 = vmul.f32 1.0, %v3036
      %v3038 = vrcp.pop %v3021
      %v3039 = vmul.f32 1.0, %v3038
      %v3040 = vrcp.pop %v3022
      %v3041 = vmul.f32 1.0, %v3040
      %v3042 = vrcp.pop %v3023
      %v3043 = vmul.f32 1.0, %v3042
      %v3044 = vrcp.pop %v3024
      %v3045 = vmul.f32 1.0, %v3044
      %v3046 = vrcp.pop %v3025
      %v3047 = vmul.f32 1.0, %v3046
      %v3048 = vrcp.pop %v3026
      %v3049 = vmul.f32 1.0, %v3048
      %v3050 = vrcp.pop %v3027
      %v3051 = vmul.f32 1.0, %v3050
      %v3052 = vrcp.pop %v3028
      %v3053 = vmul.f32 1.0, %v3052
      %v3054 = vrcp.pop %v3029
      %v3055 = vmul.f32 1.0, %v3054
      %v3056 = vrcp.pop %v3030
      %v3057 = vmul.f32 1.0, %v3056
      %v3058 = vrcp.pop %v3031
      %v3059 = vmul.f32 1.0, %v3058
      %v3060 = vrcp.pop %v3032
      %v3061 = vmul.f32 1.0, %v3060
      %v3062 = vrcp.pop %v3033
      %v3063 = vmul.f32 1.0, %v3062
      %v3064 = vrcp.pop %v3034
      %v3065 = vmul.f32 1.0, %v3064
      %v3066 = vrcp.pop %v3035
      %v3067 = vmul.f32 1.0, %v3066
      %v3068 = vmul.f32 %v2934, %v3037
      %v3069 = vmul.f32 %v2936, %v3039
      %v3070 = vmul.f32 %v2938, %v3041
      %v3071 = vmul.f32 %v2940, %v3043
      %v3072 = vmul.f32 %v2944, %v3045
      %v3073 = vmul.f32 %v2946, %v3047
      %v3074 = vmul.f32 %v2948, %v3049
      %v3075 = vmul.f32 %v2950, %v3051
      %v3076 = vmul.f32 %v2954, %v3053
      %v3077 = vmul.f32 %v2956, %v3055
      %v3078 = vmul.f32 %v2958, %v3057
      %v3079 = vmul.f32 %v2960, %v3059
      %v3080 = vmul.f32 %v2964, %v3061
      %v3081 = vmul.f32 %v2966, %v3063
      %v3082 = vmul.f32 %v2968, %v3065
      %v3083 = vmul.f32 %v2970, %v3067
      %s3084 = scalar_lea.vmem %s10, 16
      %v3085 = vld [vmem:[%s3084] sm:$0xf]
      %v3086 = vld [vmem:[%s3084 + $0x4] sm:$0xf]
      %v3087 = vld [vmem:[%s3084 + $0x8] sm:$0xf]
      %v3088 = vld [vmem:[%s3084 + $0xc] sm:$0xf]
      %v3089 = vpack.c.bf16 %v3070, %v3068
      %v3090 = vpack.c.bf16 %v3071, %v3069
      %v3091 = vpack.c.bf16 %v3074, %v3072
      %v3092 = vpack.c.bf16 %v3075, %v3073
      %v3093 = vpack.c.bf16 %v3078, %v3076
      %v3094 = vpack.c.bf16 %v3079, %v3077
      %v3095 = vpack.c.bf16 %v3082, %v3080
      %v3096 = vpack.c.bf16 %v3083, %v3081
      %3097 = vset.pattern.permute.xlu0 7
      %3098 = vperm.xlu0 %3097, %v2060
      %v3099 = vpop.permute.xlu0 %3098
      %3101 = vset.pattern.permute.xlu0 7
      %3102 = vperm.xlu0 %3101, %v2061
      %v3103 = vpop.permute.xlu0 %3102
      %3105 = vset.pattern.permute.xlu0 7
      %3106 = vperm.xlu0 %3105, %v2062
      %v3107 = vpop.permute.xlu0 %3106
      %3109 = vset.pattern.permute.xlu0 7
      %3110 = vperm.xlu0 %3109, %v2063
      %v3111 = vpop.permute.xlu0 %3110
      %v3117 = vunpack.c.l.b16 %v3085
      %v3118 = vunpack.c.l.b16 %v3086
      %v3119 = vunpack.c.l.b16 %v3087
      %v3120 = vunpack.c.l.b16 %v3088
      %v3121 = vpack.c.b16 %v3118, %v3117
      %v3122 = vpack.c.b16 %v3120, %v3119
      %v3124 = vsel %vm1991, %v3121, 0
      %v3127 = vsel %vm1991, %v3122, 0
      %3129 = vmatprep.subr.bf16.mxu0 0
      %3130 = vmatpush1.bf16.msra.mxu0 0
      %3131 = vmatprep.subr.bf16.mxu0 0
      %3132 = vmatpush1.bf16.msra.mxu0 0
      %3133 = vmatprep.subr.bf16.mxu0 0
      %3134 = vmatpush1.bf16.msra.mxu0 0
      %3135 = vmatprep.subr.bf16.mxu0 0
      %3136 = vmatpush1.bf16.msra.mxu0 0
      %3137 = vmatprep.subr.bf16.mxu0 %v3096
      %3138 = vmatpush1.bf16.msra.mxu0 %v3095
      %3139 = vmatprep.subr.bf16.mxu0 %v3094
      %3140 = vmatpush1.bf16.msra.mxu0 %v3093
      %3141 = vmatprep.subr.bf16.mxu0 %v3092
      %3142 = vmatpush1.bf16.msra.mxu0 %v3091
      %3143 = vmatprep.subr.bf16.mxu0 %v3090
      %3144 = vmatpush1.bf16.msra.mxu0 %v3089
      %3145 = vmatprep.subr.bf16.mxu0 0
      %3146 = vmatpush2.bf16.msra.mxu0 0
      %3147 = vmatprep.subr.bf16.mxu0 0
      %3148 = vmatpush2.bf16.msra.mxu0 0
      %3149 = vmatprep.subr.bf16.mxu0 0
      %3150 = vmatpush2.bf16.msra.mxu0 0
      %3151 = vmatprep.subr.bf16.mxu0 0
      %3152 = vmatpush2.bf16.msra.mxu0 0
      %3153 = vmatprep.subr.bf16.mxu0 0
      %3154 = vmatpush2.bf16.msra.mxu0 0
      %3155 = vmatprep.subr.bf16.mxu0 0
      %3156 = vmatpush2.bf16.msra.mxu0 0
      %3157 = vmatprep.subr.bf16.mxu0 0
      %3158 = vmatpush2.bf16.msra.mxu0 0
      %3159 = vmatprep.subr.bf16.mxu0 0
      %3160 = vmatpush2.bf16.msra.mxu0 0
      %3161 = vmatprep.mubr.bf16.mxu0 0
      %3162 = vmatmul.mubr.bf16.gmra.mxu0 %v3124
      %v3163 = vpop.f32.mrf.mxu0
      %v3164 = vadd.f32 %v3099, %v3163
      %v3165 = vpop.f32.mrf.mxu0
      %v3166 = vadd.f32 %v3099, %v3165
      %v3167 = vpop.f32.mrf.mxu0
      %v3168 = vadd.f32 %v3103, %v3167
      %v3169 = vpop.f32.mrf.mxu0
      %v3170 = vadd.f32 %v3103, %v3169
      %3171 = vmatprep.mubr.bf16.mxu0 0
      %3172 = vmatmul.mubr.bf16.gmra.mxu0 %v3127
      %v3173 = vpop.f32.mrf.mxu0
      %v3174 = vadd.f32 %v3107, %v3173
      %v3175 = vpop.f32.mrf.mxu0
      %v3176 = vadd.f32 %v3107, %v3175
      %v3177 = vpop.f32.mrf.mxu0
      %v3178 = vadd.f32 %v3111, %v3177
      %v3179 = vpop.f32.mrf.mxu0
      %v3180 = vadd.f32 %v3111, %v3179
      %3181 = vdwg.mxu0
      %v3182 = vadd.f32 %v2676, %v3164
      %v3183 = vadd.f32 %v2677, %v3166
      %v3184 = vadd.f32 %v2678, %v3168
      %v3185 = vadd.f32 %v2679, %v3170
      %v3186 = vadd.f32 %v2680, %v3174
      %v3187 = vadd.f32 %v2681, %v3176
      %v3188 = vadd.f32 %v2682, %v3178
      %v3189 = vadd.f32 %v2683, %v3180
      %v3190 = vld [vmem:[%s11] sm:$0xff]
      %v3191 = vld [vmem:[%s11 + $0x8] sm:$0xff]
      %v3192 = vld [vmem:[%s11 + $0x10] sm:$0xff]
      %v3193 = vld [vmem:[%s11 + $0x18] sm:$0xff]
      %v3194 = vadd.f32 %v3182, %v3183
      %v3195 = vadd.f32 %v3194, %v3184
      %v3196 = vadd.f32 %v3195, %v3185
      %v3197 = vadd.f32 %v3196, %v3186
      %v3198 = vadd.f32 %v3197, %v3187
      %v3199 = vadd.f32 %v3198, %v3188
      %v3200 = vadd.f32 %v3199, %v3189
      %3201 = vadd.xlane.f32.xlu0 %v3200
      %v3202 = vpop.xlane.xlu0 %3201
      %v3203 = vrot.slane %v3202, 4
      %v3204 = vadd.f32 %v3202, %v3203
      %v3205 = vrot.slane %v3204, 2
      %v3206 = vadd.f32 %v3204, %v3205
      %v3207 = vrot.slane %v3206, 1
      %v3208 = vadd.f32 %v3206, %v3207
      %s3209 = vtos %v3208
      %v3210 = vrcp.pop 8192.0
      %s3211 = vtos %v3210
      %s3212 = smul.f32 %s3209, %s3211
      %v3213 = vmul.f32 %v3182, %v3182
      %v3214 = vmul.f32 %v3183, %v3183
      %v3215 = vmul.f32 %v3184, %v3184
      %v3216 = vmul.f32 %v3185, %v3185
      %v3217 = vmul.f32 %v3186, %v3186
      %v3218 = vmul.f32 %v3187, %v3187
      %v3219 = vmul.f32 %v3188, %v3188
      %v3220 = vmul.f32 %v3189, %v3189
      %v3221 = vadd.f32 %v3213, %v3214
      %v3222 = vadd.f32 %v3221, %v3215
      %v3223 = vadd.f32 %v3222, %v3216
      %v3224 = vadd.f32 %v3223, %v3217
      %v3225 = vadd.f32 %v3224, %v3218
      %v3226 = vadd.f32 %v3225, %v3219
      %v3227 = vadd.f32 %v3226, %v3220
      %3228 = vadd.xlane.f32.xlu0 %v3227
      %v3229 = vpop.xlane.xlu0 %3228
      %v3230 = vrot.slane %v3229, 4
      %v3231 = vadd.f32 %v3229, %v3230
      %v3232 = vrot.slane %v3231, 2
      %v3233 = vadd.f32 %v3231, %v3232
      %v3234 = vrot.slane %v3233, 1
      %v3235 = vadd.f32 %v3233, %v3234
      %s3236 = vtos %v3235
      %v3237 = vrcp.pop 8192.0
      %s3238 = vtos %v3237
      %s3239 = smul.f32 %s3236, %s3238
      %s3240 = smul.f32 %s3212, %s3212
      %s3241 = ssub.f32 %s3239, %s3240
      %s3242 = sadd.f32 %s3241, 1e-05
      %v3243 = vstv %s3242
      %v3244 = vrsqrt.pop %v3243
      %s3245 = vtos %v3244
      %v3246 = vstv %s3245
      %v3247 = vmul.f32 %v3190, %v3246
      %v3248 = vmul.f32 %v3191, %v3246
      %v3249 = vmul.f32 %v3192, %v3246
      %v3250 = vmul.f32 %v3193, %v3246
      %v3251 = vstv %s3212
      %v3252 = vmul.f32 %v3251, %v3247
      %v3253 = vmul.f32 %v3251, %v3248
      %v3254 = vmul.f32 %v3251, %v3249
      %v3255 = vmul.f32 %v3251, %v3250
      %3260 = vrot.lane.b32.xlu0 %v3252, 1
      %v3261 = vpop.permute.xlu0 %3260
      %3262 = vrot.lane.b32.xlu0 %v3253, 1
      %v3263 = vpop.permute.xlu0 %3262
      %3264 = vrot.lane.b32.xlu0 %v3254, 1
      %v3265 = vpop.permute.xlu0 %3264
      %3266 = vrot.lane.b32.xlu0 %v3255, 1
      %v3267 = vpop.permute.xlu0 %3266
      %v3272 = vsub.f32 %v3190, %v3261
      %v3273 = vsub.f32 %v3191, %v3263
      %v3274 = vsub.f32 %v3192, %v3265
      %v3275 = vsub.f32 %v3193, %v3267
      %3277 = vset.pattern.permute.xlu0 0
      %3278 = vperm.xlu0 %3277, %v3247
      %v3279 = vpop.permute.xlu0 %3278
      %3282 = vset.pattern.permute.xlu0 0
      %3283 = vperm.xlu0 %3282, %v3248
      %v3284 = vpop.permute.xlu0 %3283
      %3287 = vset.pattern.permute.xlu0 0
      %3288 = vperm.xlu0 %3287, %v3249
      %v3289 = vpop.permute.xlu0 %3288
      %3292 = vset.pattern.permute.xlu0 0
      %3293 = vperm.xlu0 %3292, %v3250
      %v3294 = vpop.permute.xlu0 %3293
      %v3296 = vmul.f32 %v3182, %v3279
      %v3297 = vmul.f32 %v3183, %v3279
      %v3298 = vmul.f32 %v3184, %v3284
      %v3299 = vmul.f32 %v3185, %v3284
      %v3300 = vmul.f32 %v3186, %v3289
      %v3301 = vmul.f32 %v3187, %v3289
      %v3302 = vmul.f32 %v3188, %v3294
      %v3303 = vmul.f32 %v3189, %v3294
      %3305 = vset.pattern.permute.xlu0 1
      %3306 = vperm.xlu0 %3305, %v3272
      %v3307 = vpop.permute.xlu0 %3306
      %3310 = vset.pattern.permute.xlu0 1
      %3311 = vperm.xlu0 %3310, %v3273
      %v3312 = vpop.permute.xlu0 %3311
      %3315 = vset.pattern.permute.xlu0 1
      %3316 = vperm.xlu0 %3315, %v3274
      %v3317 = vpop.permute.xlu0 %3316
      %3320 = vset.pattern.permute.xlu0 1
      %3321 = vperm.xlu0 %3320, %v3275
      %v3322 = vpop.permute.xlu0 %3321
      %v3324 = vadd.f32 %v3296, %v3307
      %v3325 = vadd.f32 %v3297, %v3307
      %v3326 = vadd.f32 %v3298, %v3312
      %v3327 = vadd.f32 %v3299, %v3312
      %v3328 = vadd.f32 %v3300, %v3317
      %v3329 = vadd.f32 %v3301, %v3317
      %v3330 = vadd.f32 %v3302, %v3322
      %v3331 = vadd.f32 %v3303, %v3322
      %v3332 = vld [vmem:[%s12] sm:$0xf]
      %v3333 = vld [vmem:[%s12 + $0x4] sm:$0xf]
      %v3334 = vpack.c.bf16 %v3326, %v3324
      %v3335 = vpack.c.bf16 %v3327, %v3325
      %v3336 = vpack.c.bf16 %v3330, %v3328
      %v3337 = vpack.c.bf16 %v3331, %v3329
      %v3340 = vunpack.c.l.b16 %v3332
      %v3341 = vunpack.c.l.b16 %v3333
      %v3342 = vpack.c.b16 %v3341, %v3340
      %v3344 = vsel %vm1058, %v3342, 0
      %3346 = vmatprep.subr.bf16.mxu0 0
      %3347 = vmatpush1.bf16.msra.mxu0 0
      %3348 = vmatprep.subr.bf16.mxu0 0
      %3349 = vmatpush1.bf16.msra.mxu0 0
      %3350 = vmatprep.subr.bf16.mxu0 0
      %3351 = vmatpush1.bf16.msra.mxu0 0
      %3352 = vmatprep.subr.bf16.mxu0 0
      %3353 = vmatpush1.bf16.msra.mxu0 0
      %3354 = vmatprep.subr.bf16.mxu0 0
      %3355 = vmatpush1.bf16.msra.mxu0 0
      %3356 = vmatprep.subr.bf16.mxu0 0
      %3357 = vmatpush1.bf16.msra.mxu0 0
      %3358 = vmatprep.subr.bf16.mxu0 %v3337
      %3359 = vmatpush1.bf16.msra.mxu0 %v3336
      %3360 = vmatprep.subr.bf16.mxu0 %v3335
      %3361 = vmatpush1.bf16.msra.mxu0 %v3334
      %3362 = vmatprep.subr.bf16.mxu0 0
      %3363 = vmatpush2.bf16.msra.mxu0 0
      %3364 = vmatprep.subr.bf16.mxu0 0
      %3365 = vmatpush2.bf16.msra.mxu0 0
      %3366 = vmatprep.subr.bf16.mxu0 0
      %3367 = vmatpush2.bf16.msra.mxu0 0
      %3368 = vmatprep.subr.bf16.mxu0 0
      %3369 = vmatpush2.bf16.msra.mxu0 0
      %3370 = vmatprep.subr.bf16.mxu0 0
      %3371 = vmatpush2.bf16.msra.mxu0 0
      %3372 = vmatprep.subr.bf16.mxu0 0
      %3373 = vmatpush2.bf16.msra.mxu0 0
      %3374 = vmatprep.subr.bf16.mxu0 0
      %3375 = vmatpush2.bf16.msra.mxu0 0
      %3376 = vmatprep.subr.bf16.mxu0 0
      %3377 = vmatpush2.bf16.msra.mxu0 0
      %3378 = vmatprep.mubr.bf16.mxu0 0
      %3379 = vmatmul.mubr.bf16.gmra.mxu0 %v3344
      %v3380 = vpop.f32.mrf.mxu0
      %v3381 = vadd.f32 0.0, %v3380
      %v3382 = vpop.f32.mrf.mxu0
      %v3383 = vadd.f32 0.0, %v3382
      %v3384 = vpop.f32.mrf.mxu0
      %v3385 = vadd.f32 0.0, %v3384
      %v3386 = vpop.f32.mrf.mxu0
      %v3387 = vadd.f32 0.0, %v3386
      %3388 = vdwg.mxu0
      %3389 = vset.pattern.permute.xlu0 1
      %3390 = vperm.xlu0 %3389, %v668
      %v3391 = vpop.permute.xlu0 %3390
      %3393 = vset.pattern.permute.xlu0 1
      %3394 = vperm.xlu0 %3393, %v669
      %v3395 = vpop.permute.xlu0 %3394
      %v3397 = vmul.f32 %v3381, %v3391
      %v3398 = vmul.f32 %v3383, %v3391
      %v3399 = vmul.f32 %v3385, %v3395
      %v3400 = vmul.f32 %v3387, %v3395
      %3401 = vset.pattern.permute.xlu0 2
      %3402 = vperm.xlu0 %3401, %v668
      %v3403 = vpop.permute.xlu0 %3402
      %3405 = vset.pattern.permute.xlu0 2
      %3406 = vperm.xlu0 %3405, %v669
      %v3407 = vpop.permute.xlu0 %3406
      %v3409 = vadd.f32 %v3397, %v3403
      %v3410 = vadd.f32 %v3398, %v3403
      %v3411 = vadd.f32 %v3399, %v3407
      %v3412 = vadd.f32 %v3400, %v3407
      %v3413 = vxor.u32 %v3409, 2147483648
      %v3414 = vxor.u32 %v3410, 2147483648
      %v3415 = vxor.u32 %v3411, 2147483648
      %v3416 = vxor.u32 %v3412, 2147483648
      %v3417 = vmul.f32 %v3413, 1.442695
      %v3418 = vpow.pop %v3417
      %v3419 = vmul.f32 %v3414, 1.442695
      %v3420 = vpow.pop %v3419
      %v3421 = vmul.f32 %v3415, 1.442695
      %v3422 = vpow.pop %v3421
      %v3423 = vmul.f32 %v3416, 1.442695
      %v3424 = vpow.pop %v3423
      %v3425 = vadd.f32 %v3418, 1.0
      %v3426 = vadd.f32 %v3420, 1.0
      %v3427 = vadd.f32 %v3422, 1.0
      %v3428 = vadd.f32 %v3424, 1.0
      %v3429 = vrcp.pop %v3425
      %v3430 = vmul.f32 1.0, %v3429
      %v3431 = vrcp.pop %v3426
      %v3432 = vmul.f32 1.0, %v3431
      %v3433 = vrcp.pop %v3427
      %v3434 = vmul.f32 1.0, %v3433
      %v3435 = vrcp.pop %v3428
      %v3436 = vmul.f32 1.0, %v3435
      %v3437 = vmul.f32 %v3409, %v3430
      %v3438 = vmul.f32 %v3410, %v3432
      %v3439 = vmul.f32 %v3411, %v3434
      %v3440 = vmul.f32 %v3412, %v3436
      %3441 = vst [vmem:[%s440] sm:$0xff] %v3437
      %3442 = vst [vmem:[%s440 + $0x8] sm:$0xff] %v3438
      %3443 = vst [vmem:[%s440 + $0x10] sm:$0xff] %v3439
      %3444 = vst [vmem:[%s440 + $0x18] sm:$0xff] %v3440
      %p3445 = scmp.lt.s32.totalorder %s24, 1
      %s3446 = scalar_select %p3445, %s24, 1
      %s3447 = smul.addr %s3446, 4
      %s3448 = smul.addr %s3447, 8
      %s3449 = scalar_lea.vmem %s13, %s3448
      // Predicated region
      $region73: #{mobilevit_block_forward.1} parent=71 // pred_check
        %p3450 = pneg %p320
      $region74: #{mobilevit_block_forward.1} parent=71 // pred_check_branch
        %3452 = sbr.rel (%p3450) target = $region76
      $region75: #{mobilevit_block_forward.1} parent=71 // pred_region
        _
      $region76: #{mobilevit_block_forward.1} parent=71 // pred_fallthru
        _
    $region72: #{mobilevit_block_forward.1} parent=5 // pred_fallthru
      _
    %p3453 = scmp.le.s32.totalorder 2, %s19
    // Predicated region
    $region77: #{mobilevit_block_forward.1} parent=5 // pred_check
      %p3454 = pneg %p3453
    $region78: #{mobilevit_block_forward.1} parent=5 // pred_check_branch
      %3456 = sbr.rel (%p3454) target = $region80
    $region79: #{mobilevit_block_forward.1} parent=5 // pred_region
      %s3457 = ssub.s32 %s19, 2
      // Predicated region
      $region81: #{mobilevit_block_forward.1} parent=79 // pred_check
        %p3458 = pneg %p326
      $region82: #{mobilevit_block_forward.1} parent=79 // pred_check_branch
        %3460 = sbr.rel (%p3458) target = $region84
      $region83: #{mobilevit_block_forward.1} parent=79 // pred_region
        %p3461 = scmp.lt.s32.totalorder %s25, 1
        %s3462 = scalar_select %p3461, %s25, 1
        %s3463 = smul.addr %s3462, 4
        %s3464 = smul.addr %s3463, 8
        %s3465 = scalar_lea.vmem %s13, %s3464
      $region84: #{mobilevit_block_forward.1} parent=79 // pred_fallthru
        _
    $region80: #{mobilevit_block_forward.1} parent=5 // pred_fallthru
      _
  $region6: #{mobilevit_block_forward.1} parent=0 // loop_footer
    %s23 = sadd.s32 1, %s19
  $region7: #{mobilevit_block_forward.1} parent=0 // loop_footer_branch
    %18 = sbr.rel target = $region3
  $region8: #{mobilevit_block_forward.1} parent=0 // loop_exit
    _

</llo_original>
